<compile_context>
chip_gen: v7x
topology: tpu7x:2x2x1
jax: 0.10.0
libtpu: 0.0.40
codegen_flags: <defaults>
</compile_context>

<pallas_src>
import jax
import jax.numpy as jnp
from jax.experimental import pallas as pl
from jax.experimental.pallas import tpu as pltpu

_DIMS = [1433, 512, 128, 16, 7]
_ACTS = [True, True, True, False]  # sigmoid for gcn1..gcn3, None for gcn4


def _fused_gcn_kernel(a_ref, x_ref,
                      w1_ref, b1_ref, w2_ref, b2_ref,
                      w3_ref, b3_ref, w4_ref, b4_ref,
                      o_ref):
    a = a_ref[...]          # (N, N) adjacency, stays resident for all 4 layers
    h = x_ref[...]          # (N, 1433) input features

    def layer(h, w_ref, b_ref, apply_sigmoid):
        # Reassociated: A @ (H @ W) + b  ==  (A @ H) @ W + b, but cheaper since Din > Dout.
        hw = jnp.dot(h, w_ref[...], preferred_element_type=jnp.float32)   # (N, Dout)
        out = jnp.dot(a, hw, preferred_element_type=jnp.float32) + b_ref[...]
        if apply_sigmoid:
            out = jax.nn.sigmoid(out)
        return out

    h = layer(h, w1_ref, b1_ref, _ACTS[0])
    h = layer(h, w2_ref, b2_ref, _ACTS[1])
    h = layer(h, w3_ref, b3_ref, _ACTS[2])
    h = layer(h, w4_ref, b4_ref, _ACTS[3])
    o_ref[...] = h.astype(o_ref.dtype)


def net_forward(a, features, params):
    """Full 4-layer GCN forward as a single fused Pallas kernel."""
    n = a.shape[0]
    d_out = params[-1][0].shape[1]

    flat_params = []
    for w, b in params:
        flat_params.extend([w, b])

    # Advisory cost estimate for the XLA scheduler.
    flops = 0
    transcendentals = 0
    bytes_accessed = (a.size + features.size + n * d_out) * 4
    for (w, b), act in zip(params, _ACTS):
        din, dout = w.shape
        flops += 2 * n * din * dout      # H @ W
        flops += 2 * n * n * dout        # A @ (H @ W)
        flops += n * dout                # + b
        if act:
            transcendentals += n * dout  # sigmoid
        bytes_accessed += (w.size + b.size) * 4

    return pl.pallas_call(
        _fused_gcn_kernel,
        out_shape=jax.ShapeDtypeStruct((n, d_out), jnp.float32),
        # Whole-array blocks: everything (A 16KB, X 367KB, W1 2.9MB, rest tiny)
        # fits comfortably in VMEM at these sizes. Grid-less, single invocation.
        # TODO(synk): row-tile A / K-tile W1 with a grid if N grows to Cora scale.
        in_specs=[pl.BlockSpec(memory_space=pltpu.MemorySpace.VMEM)]
                 * (2 + len(flat_params)),
        out_specs=pl.BlockSpec(memory_space=pltpu.MemorySpace.VMEM),
        compiler_params=pltpu.CompilerParams(vmem_limit_bytes=64 * 1024 * 1024),
        cost_estimate=pl.CostEstimate(
            flops=flops,
            transcendentals=transcendentals,
            bytes_accessed=bytes_accessed,
        ),
    )(a, features, *flat_params)


# ---- parameter setup (deterministic, matches nn.Linear default init shapes) ----
def init_params(key):
    params = []
    for i in range(4):
        key, k_w, k_b = jax.random.split(key, 3)
        fan_in = _DIMS[i]
        bound = 1.0 / (fan_in ** 0.5)
        # stored as (in, out) so the kernel does h @ W (transpose of torch's (out, in))
        w = jax.random.uniform(k_w, (_DIMS[i], _DIMS[i + 1]), jnp.float32, -bound, bound)
        b = jax.random.uniform(k_b, (1, _DIMS[i + 1]), jnp.float32, -bound, bound)
        params.append((w, b))
    return params


def net_forward_ref(a, features, params):
    # Pure-JAX reference for correctness checking (original association order).
    h = features
    for (w, b), act in zip(params, _ACTS):
        h = (a @ h) @ w + b
        if act:
            h = jax.nn.sigmoid(h)
    return h


if __name__ == "__main__":
    key = jax.random.PRNGKey(0)
    k_feat, k_adj, k_params = jax.random.split(key, 3)

    N = 64  # small node count; feature dims fixed by the module (1433 -> ... -> 7)
    features = jax.random.normal(k_feat, (N, _DIMS[0]), jnp.float32)
    # Random sparse-ish directed graph as a dense adjacency (row i = in-neighbors of i).
    adj = (jax.random.uniform(k_adj, (N, N)) < 0.1).astype(jnp.float32)

    params = init_params(k_params)

    out = net_forward(adj, features, params)
    out = jax.block_until_ready(out)

    ref = net_forward_ref(adj, features, params)
    assert out.shape == (N, 7), out.shape
    assert jnp.allclose(out, ref, atol=1e-3, rtol=1e-3), "mismatch vs. JAX reference"

    print("KERNEL_OK")
</pallas_src>

<mosaic_0001>
module attributes {stable_mosaic.version = 11 : i64} {
  func.func @_fused_gcn_kernel(%arg0: memref<64x64xf32, #tpu.memory_space<vmem>>, %arg1: memref<64x1433xf32, #tpu.memory_space<vmem>>, %arg2: memref<1433x512xf32, #tpu.memory_space<vmem>>, %arg3: memref<1x512xf32, #tpu.memory_space<vmem>>, %arg4: memref<512x128xf32, #tpu.memory_space<vmem>>, %arg5: memref<1x128xf32, #tpu.memory_space<vmem>>, %arg6: memref<128x16xf32, #tpu.memory_space<vmem>>, %arg7: memref<1x16xf32, #tpu.memory_space<vmem>>, %arg8: memref<16x7xf32, #tpu.memory_space<vmem>>, %arg9: memref<1x7xf32, #tpu.memory_space<vmem>>, %arg10: memref<64x7xf32, #tpu.memory_space<vmem>>) attributes {dimension_semantics = [], scalar_prefetch = 0 : i64, scratch_operands = 0 : i64, tpu.core_type = #tpu.core_type<tc>} {
    %c0 = arith.constant 0 : index
    %c0_0 = arith.constant 0 : index
    %0 = vector.load %arg0[%c0, %c0_0] : memref<64x64xf32, #tpu.memory_space<vmem>>, vector<64x64xf32>
    %c0_1 = arith.constant 0 : index
    %c0_2 = arith.constant 0 : index
    %1 = vector.load %arg1[%c0_1, %c0_2] : memref<64x1433xf32, #tpu.memory_space<vmem>>, vector<64x1433xf32>
    %c0_3 = arith.constant 0 : index
    %c0_4 = arith.constant 0 : index
    %2 = vector.load %arg2[%c0_3, %c0_4] : memref<1433x512xf32, #tpu.memory_space<vmem>>, vector<1433x512xf32>
    %cst = arith.constant dense<0.000000e+00> : vector<64x512xf32>
    %3 = tpu.matmul %1, %2, %cst {dimension_numbers = #tpu.dot_dimension_numbers<[1], [0], [0], [1], [0, 0, 1, 1], [], []>} : vector<64x1433xf32>, vector<1433x512xf32>, vector<64x512xf32> -> vector<64x512xf32>
    %cst_5 = arith.constant dense<0.000000e+00> : vector<64x512xf32>
    %4 = tpu.matmul %0, %3, %cst_5 {dimension_numbers = #tpu.dot_dimension_numbers<[1], [0], [0], [1], [0, 0, 1, 1], [], []>} : vector<64x64xf32>, vector<64x512xf32>, vector<64x512xf32> -> vector<64x512xf32>
    %c0_6 = arith.constant 0 : index
    %c0_7 = arith.constant 0 : index
    %5 = vector.load %arg3[%c0_6, %c0_7] : memref<1x512xf32, #tpu.memory_space<vmem>>, vector<1x512xf32>
    %6 = vector.broadcast %5 : vector<1x512xf32> to vector<64x512xf32>
    %7 = arith.addf %4, %6 : vector<64x512xf32>
    %8 = arith.negf %7 : vector<64x512xf32>
    %9 = math.exp %8 : vector<64x512xf32>
    %cst_8 = arith.constant 1.000000e+00 : f32
    %10 = vector.broadcast %cst_8 : f32 to vector<64x512xf32>
    %11 = arith.addf %10, %9 : vector<64x512xf32>
    %12 = arith.divf %10, %11 : vector<64x512xf32>
    %c0_9 = arith.constant 0 : index
    %c0_10 = arith.constant 0 : index
    %13 = vector.load %arg4[%c0_9, %c0_10] : memref<512x128xf32, #tpu.memory_space<vmem>>, vector<512x128xf32>
    %cst_11 = arith.constant dense<0.000000e+00> : vector<64x128xf32>
    %14 = tpu.matmul %12, %13, %cst_11 {dimension_numbers = #tpu.dot_dimension_numbers<[1], [0], [0], [1], [0, 0, 1, 1], [], []>} : vector<64x512xf32>, vector<512x128xf32>, vector<64x128xf32> -> vector<64x128xf32>
    %cst_12 = arith.constant dense<0.000000e+00> : vector<64x128xf32>
    %15 = tpu.matmul %0, %14, %cst_12 {dimension_numbers = #tpu.dot_dimension_numbers<[1], [0], [0], [1], [0, 0, 1, 1], [], []>} : vector<64x64xf32>, vector<64x128xf32>, vector<64x128xf32> -> vector<64x128xf32>
    %c0_13 = arith.constant 0 : index
    %c0_14 = arith.constant 0 : index
    %16 = vector.load %arg5[%c0_13, %c0_14] : memref<1x128xf32, #tpu.memory_space<vmem>>, vector<1x128xf32>
    %17 = vector.broadcast %16 : vector<1x128xf32> to vector<64x128xf32>
    %18 = arith.addf %15, %17 : vector<64x128xf32>
    %19 = arith.negf %18 : vector<64x128xf32>
    %20 = math.exp %19 : vector<64x128xf32>
    %cst_15 = arith.constant 1.000000e+00 : f32
    %21 = vector.broadcast %cst_15 : f32 to vector<64x128xf32>
    %22 = arith.addf %21, %20 : vector<64x128xf32>
    %23 = arith.divf %21, %22 : vector<64x128xf32>
    %c0_16 = arith.constant 0 : index
    %c0_17 = arith.constant 0 : index
    %24 = vector.load %arg6[%c0_16, %c0_17] : memref<128x16xf32, #tpu.memory_space<vmem>>, vector<128x16xf32>
    %cst_18 = arith.constant dense<0.000000e+00> : vector<64x16xf32>
    %25 = tpu.matmul %23, %24, %cst_18 {dimension_numbers = #tpu.dot_dimension_numbers<[1], [0], [0], [1], [0, 0, 1, 1], [], []>} : vector<64x128xf32>, vector<128x16xf32>, vector<64x16xf32> -> vector<64x16xf32>
    %cst_19 = arith.constant dense<0.000000e+00> : vector<64x16xf32>
    %26 = tpu.matmul %0, %25, %cst_19 {dimension_numbers = #tpu.dot_dimension_numbers<[1], [0], [0], [1], [0, 0, 1, 1], [], []>} : vector<64x64xf32>, vector<64x16xf32>, vector<64x16xf32> -> vector<64x16xf32>
    %c0_20 = arith.constant 0 : index
    %c0_21 = arith.constant 0 : index
    %27 = vector.load %arg7[%c0_20, %c0_21] : memref<1x16xf32, #tpu.memory_space<vmem>>, vector<1x16xf32>
    %28 = vector.broadcast %27 : vector<1x16xf32> to vector<64x16xf32>
    %29 = arith.addf %26, %28 : vector<64x16xf32>
    %30 = arith.negf %29 : vector<64x16xf32>
    %31 = math.exp %30 : vector<64x16xf32>
    %cst_22 = arith.constant 1.000000e+00 : f32
    %32 = vector.broadcast %cst_22 : f32 to vector<64x16xf32>
    %33 = arith.addf %32, %31 : vector<64x16xf32>
    %34 = arith.divf %32, %33 : vector<64x16xf32>
    %c0_23 = arith.constant 0 : index
    %c0_24 = arith.constant 0 : index
    %35 = vector.load %arg8[%c0_23, %c0_24] : memref<16x7xf32, #tpu.memory_space<vmem>>, vector<16x7xf32>
    %cst_25 = arith.constant dense<0.000000e+00> : vector<64x7xf32>
    %36 = tpu.matmul %34, %35, %cst_25 {dimension_numbers = #tpu.dot_dimension_numbers<[1], [0], [0], [1], [0, 0, 1, 1], [], []>} : vector<64x16xf32>, vector<16x7xf32>, vector<64x7xf32> -> vector<64x7xf32>
    %cst_26 = arith.constant dense<0.000000e+00> : vector<64x7xf32>
    %37 = tpu.matmul %0, %36, %cst_26 {dimension_numbers = #tpu.dot_dimension_numbers<[1], [0], [0], [1], [0, 0, 1, 1], [], []>} : vector<64x64xf32>, vector<64x7xf32>, vector<64x7xf32> -> vector<64x7xf32>
    %c0_27 = arith.constant 0 : index
    %c0_28 = arith.constant 0 : index
    %38 = vector.load %arg9[%c0_27, %c0_28] : memref<1x7xf32, #tpu.memory_space<vmem>>, vector<1x7xf32>
    %39 = vector.broadcast %38 : vector<1x7xf32> to vector<64x7xf32>
    %40 = arith.addf %37, %39 : vector<64x7xf32>
    %c0_29 = arith.constant 0 : index
    %c0_30 = arith.constant 0 : index
    %41 = vector.load %arg10[%c0_29, %c0_30] : memref<64x7xf32, #tpu.memory_space<vmem>>, vector<64x7xf32>
    tpu.vector_store %arg10[%c0_29, %c0_30], %40 {strides = array<i32>} : memref<64x7xf32, #tpu.memory_space<vmem>>, vector<64x7xf32>,
    return
  }
}

</mosaic_0001>

<llo_original>
// kernel: tpu_custom_call.1
$region0: #{tpu_custom_call.1}
  #allocation0 [shape = 'u32[]', space=smem, size = 0x4, offset = 0x4, fixed_abs, tag = 'smem constant byte address 0x4 - core index']
  #allocation1 [shape = 'u32[144,128]{1,0:T(1,128)}', space=vmem, size = 0x12000, scoped, tag = 'internal scratch']
  %s0 = inlined_call_operand.hbm [shape: f32[64,64], index: 0, kind: input, shape index: {}]
  %s1 = inlined_call_operand.hbm [shape: f32[64,1433], index: 1, kind: input, shape index: {}]
  %s2 = inlined_call_operand.hbm [shape: f32[1433,512], index: 2, kind: input, shape index: {}]
  %s3 = inlined_call_operand.hbm [shape: f32[1,512], index: 3, kind: input, shape index: {}]
  %s4 = inlined_call_operand.hbm [shape: f32[512,128], index: 4, kind: input, shape index: {}]
  %s5 = inlined_call_operand.hbm [shape: f32[1,128], index: 5, kind: input, shape index: {}]
  %s6 = inlined_call_operand.hbm [shape: f32[128,16], index: 6, kind: input, shape index: {}]
  %s7 = inlined_call_operand.hbm [shape: f32[1,16], index: 7, kind: input, shape index: {}]
  %s8 = inlined_call_operand.hbm [shape: f32[16,7], index: 8, kind: input, shape index: {}]
  %s9 = inlined_call_operand.hbm [shape: f32[1,7], index: 9, kind: input, shape index: {}]
  %s10 = inlined_call_operand.hbm [shape: f32[64,7], index: 10, kind: output, shape index: {}]
  %s11 = sld [smem:[#allocation0]]
  $region90: #{tpu_custom_call.1} parent=0
    _
  %s13 = ssub.s32 1, %s11
  %s14 = scalar_select 0, %s13, %s11
  $region1: #{tpu_custom_call.1} parent=0
    #allocation2 [shape = 'u8[32768]{0}', space=vmem, size = 0x8000, scoped, tag = 'input window, operand 0, single buffered']
    #allocation3 [shape = 's32[1]{0}', space=sflag, size = 0x4, scoped, tag = 'scoped memory for tpu_custom_call.1']
    #allocation4 [shape = 's32[1]{0}', space=sflag, size = 0x4, scoped, tag = 'scoped memory for tpu_custom_call.1']
    #allocation5 [shape = 'u8[393216]{0}', space=vmem, size = 0x60000, scoped, tag = 'input window, operand 1, single buffered']
    #allocation6 [shape = 's32[1]{0}', space=sflag, size = 0x4, scoped, tag = 'scoped memory for tpu_custom_call.1']
    #allocation7 [shape = 'u8[2949120]{0}', space=vmem, size = 0x2d0000, scoped, tag = 'input window, operand 2, single buffered']
    #allocation8 [shape = 'u8[2048]{0}', space=vmem, size = 0x800, scoped, tag = 'input window, operand 3, single buffered']
    #allocation9 [shape = 's32[1]{0}', space=sflag, size = 0x4, scoped, tag = 'scoped memory for tpu_custom_call.1']
    #allocation10 [shape = 'u8[262144]{0}', space=vmem, size = 0x40000, scoped, tag = 'input window, operand 4, single buffered']
    #allocation11 [shape = 'u8[512]{0}', space=vmem, size = 0x400, scoped, tag = 'input window, operand 5, single buffered']
    #allocation12 [shape = 's32[1]{0}', space=sflag, size = 0x4, scoped, tag = 'scoped memory for tpu_custom_call.1']
    #allocation13 [shape = 'u8[65536]{0}', space=vmem, size = 0x10000, scoped, tag = 'input window, operand 6, single buffered']
    #allocation14 [shape = 'u8[512]{0}', space=vmem, size = 0x400, scoped, tag = 'input window, operand 7, single buffered']
    #allocation15 [shape = 's32[1]{0}', space=sflag, size = 0x4, scoped, tag = 'scoped memory for tpu_custom_call.1']
    #allocation16 [shape = 'u8[8192]{0}', space=vmem, size = 0x2000, scoped, tag = 'input window, operand 8, single buffered']
    #allocation17 [shape = 'u8[512]{0}', space=vmem, size = 0x400, scoped, tag = 'input window, operand 9, single buffered']
    #allocation18 [shape = 's32[1]{0}', space=sflag, size = 0x4, scoped, tag = 'scoped memory for tpu_custom_call.1']
    #allocation19 [shape = 'u8[32768]{0}', space=vmem, size = 0x8000, scoped, tag = 'output window, operand 0, single buffered']
    %15 = vsyncpa [#allocation3], 0
    %16 = vsyncpa [#allocation6], 0
    %17 = vsyncpa [#allocation9], 0
    %18 = vsyncpa [#allocation12], 0
    %19 = vsyncpa [#allocation15], 0
    %20 = vsyncpa [#allocation18], 0
    %21 = vsyncpa [#allocation4], 0
    // Predicated region
    $region2: #{tpu_custom_call.1} parent=1 // pred_check
      _
    $region3: #{tpu_custom_call.1} parent=1 // pred_check_branch
      %23 = sbr.rel (0) target = $region5
    $region4: #{tpu_custom_call.1} parent=1 // pred_region
      %s25 = ssub.s32 1024, 1024
      %26 = vsyncadd [#allocation3], %s25
      %s27 = sshll.u32 [#allocation2], 4
      %s28 = int_to_ptr.vmem [resolvable:$true] %s27
      %33 = dma.hbm_to_vmem [thread:$0]  %s0, 1024, %s28, [#allocation3], 128, 128, 8
    $region5: #{tpu_custom_call.1} parent=1 // pred_fallthru
      _
    // Predicated region
    $region6: #{tpu_custom_call.1} parent=1 // pred_check
      _
    $region7: #{tpu_custom_call.1} parent=1 // pred_check_branch
      %35 = sbr.rel (0) target = $region9
    $region8: #{tpu_custom_call.1} parent=1 // pred_region
      %s37 = ssub.s32 12288, 12288
      %38 = vsyncadd [#allocation6], %s37
      %s39 = sshll.u32 [#allocation5], 4
      %s40 = int_to_ptr.vmem [resolvable:$true] %s39
      %45 = dma.hbm_to_vmem [thread:$0]  %s1, 12288, %s40, [#allocation6], 1536, 1536, 96
    $region9: #{tpu_custom_call.1} parent=1 // pred_fallthru
      _
    // Predicated region
    $region10: #{tpu_custom_call.1} parent=1 // pred_check
      _
    $region11: #{tpu_custom_call.1} parent=1 // pred_check_branch
      %47 = sbr.rel (0) target = $region13
    $region12: #{tpu_custom_call.1} parent=1 // pred_region
      %s49 = ssub.s32 92160, 92160
      %50 = vsyncadd [#allocation6], %s49
      %s51 = sshll.u32 [#allocation7], 4
      %s52 = int_to_ptr.vmem [resolvable:$true] %s51
      %57 = dma.hbm_to_vmem [thread:$0]  %s2, 92160, %s52, [#allocation6], 512, 512, 32
    $region13: #{tpu_custom_call.1} parent=1 // pred_fallthru
      _
    // Predicated region
    $region14: #{tpu_custom_call.1} parent=1 // pred_check
      _
    $region15: #{tpu_custom_call.1} parent=1 // pred_check_branch
      %59 = sbr.rel (0) target = $region17
    $region16: #{tpu_custom_call.1} parent=1 // pred_region
      %s61 = ssub.s32 64, 64
      %62 = vsyncadd [#allocation9], %s61
      %s64 = sshll.u32 [#allocation8], 4
      %s65 = int_to_ptr.vmem [resolvable:$true] %s64
      %67 = dma.hbm_to_vmem [thread:$0]  %s3, 64, %s65, [#allocation9]
    $region17: #{tpu_custom_call.1} parent=1 // pred_fallthru
      _
    // Predicated region
    $region18: #{tpu_custom_call.1} parent=1 // pred_check
      _
    $region19: #{tpu_custom_call.1} parent=1 // pred_check_branch
      %69 = sbr.rel (0) target = $region21
    $region20: #{tpu_custom_call.1} parent=1 // pred_region
      %s71 = ssub.s32 8192, 8192
      %72 = vsyncadd [#allocation9], %s71
      %s73 = sshll.u32 [#allocation10], 4
      %s74 = int_to_ptr.vmem [resolvable:$true] %s73
      %79 = dma.hbm_to_vmem [thread:$0]  %s4, 8192, %s74, [#allocation9], 128, 128, 8
    $region21: #{tpu_custom_call.1} parent=1 // pred_fallthru
      _
    // Predicated region
    $region22: #{tpu_custom_call.1} parent=1 // pred_check
      _
    $region23: #{tpu_custom_call.1} parent=1 // pred_check_branch
      %81 = sbr.rel (0) target = $region25
    $region24: #{tpu_custom_call.1} parent=1 // pred_region
      %s83 = ssub.s32 16, 16
      %84 = vsyncadd [#allocation12], %s83
      %s86 = sshll.u32 [#allocation11], 4
      %s87 = int_to_ptr.vmem [resolvable:$true] %s86
      %89 = dma.hbm_to_vmem [thread:$0]  %s5, 16, %s87, [#allocation12]
    $region25: #{tpu_custom_call.1} parent=1 // pred_fallthru
      _
    // Predicated region
    $region26: #{tpu_custom_call.1} parent=1 // pred_check
      _
    $region27: #{tpu_custom_call.1} parent=1 // pred_check_branch
      %91 = sbr.rel (0) target = $region29
    $region28: #{tpu_custom_call.1} parent=1 // pred_region
      %s93 = ssub.s32 2048, 2048
      %94 = vsyncadd [#allocation12], %s93
      %s95 = sshll.u32 [#allocation13], 4
      %s96 = int_to_ptr.vmem [resolvable:$true] %s95
      %101 = dma.hbm_to_vmem [thread:$0]  %s6, 2048, %s96, [#allocation12], 128, 128, 8
    $region29: #{tpu_custom_call.1} parent=1 // pred_fallthru
      _
    // Predicated region
    $region30: #{tpu_custom_call.1} parent=1 // pred_check
      _
    $region31: #{tpu_custom_call.1} parent=1 // pred_check_branch
      %103 = sbr.rel (0) target = $region33
    $region32: #{tpu_custom_call.1} parent=1 // pred_region
      %s105 = ssub.s32 16, 16
      %106 = vsyncadd [#allocation15], %s105
      %s108 = sshll.u32 [#allocation14], 4
      %s109 = int_to_ptr.vmem [resolvable:$true] %s108
      %111 = dma.hbm_to_vmem [thread:$0]  %s7, 16, %s109, [#allocation15]
    $region33: #{tpu_custom_call.1} parent=1 // pred_fallthru
      _
    // Predicated region
    $region34: #{tpu_custom_call.1} parent=1 // pred_check
      _
    $region35: #{tpu_custom_call.1} parent=1 // pred_check_branch
      %113 = sbr.rel (0) target = $region37
    $region36: #{tpu_custom_call.1} parent=1 // pred_region
      %s115 = ssub.s32 256, 256
      %116 = vsyncadd [#allocation15], %s115
      %s117 = sshll.u32 [#allocation16], 4
      %s118 = int_to_ptr.vmem [resolvable:$true] %s117
      %123 = dma.hbm_to_vmem [thread:$0]  %s8, 256, %s118, [#allocation15], 128, 128, 8
    $region37: #{tpu_custom_call.1} parent=1 // pred_fallthru
      _
    // Predicated region
    $region38: #{tpu_custom_call.1} parent=1 // pred_check
      _
    $region39: #{tpu_custom_call.1} parent=1 // pred_check_branch
      %125 = sbr.rel (0) target = $region41
    $region40: #{tpu_custom_call.1} parent=1 // pred_region
      %s127 = ssub.s32 16, 16
      %128 = vsyncadd [#allocation18], %s127
      %s130 = sshll.u32 [#allocation17], 4
      %s131 = int_to_ptr.vmem [resolvable:$true] %s130
      %133 = dma.hbm_to_vmem [thread:$0]  %s9, 16, %s131, [#allocation18]
    $region41: #{tpu_custom_call.1} parent=1 // pred_fallthru
      _
    // Predicated region
    $region42: #{tpu_custom_call.1} parent=1 // pred_check
      _
    $region43: #{tpu_custom_call.1} parent=1 // pred_check_branch
      %135 = sbr.rel (0) target = $region45
    $region44: #{tpu_custom_call.1} parent=1 // pred_region
      %136 = dma.done [#allocation3], 1024
    $region45: #{tpu_custom_call.1} parent=1 // pred_fallthru
      _
    // Predicated region
    $region46: #{tpu_custom_call.1} parent=1 // pred_check
      _
    $region47: #{tpu_custom_call.1} parent=1 // pred_check_branch
      %138 = sbr.rel (0) target = $region49
    $region48: #{tpu_custom_call.1} parent=1 // pred_region
      %139 = dma.done [#allocation6], 12288
    $region49: #{tpu_custom_call.1} parent=1 // pred_fallthru
      _
    // Predicated region
    $region50: #{tpu_custom_call.1} parent=1 // pred_check
      _
    $region51: #{tpu_custom_call.1} parent=1 // pred_check_branch
      %141 = sbr.rel (0) target = $region53
    $region52: #{tpu_custom_call.1} parent=1 // pred_region
      %142 = dma.done [#allocation6], 92160
    $region53: #{tpu_custom_call.1} parent=1 // pred_fallthru
      _
    // Predicated region
    $region54: #{tpu_custom_call.1} parent=1 // pred_check
      _
    $region55: #{tpu_custom_call.1} parent=1 // pred_check_branch
      %144 = sbr.rel (0) target = $region57
    $region56: #{tpu_custom_call.1} parent=1 // pred_region
      %145 = dma.done [#allocation9], 64
    $region57: #{tpu_custom_call.1} parent=1 // pred_fallthru
      _
    // Predicated region
    $region58: #{tpu_custom_call.1} parent=1 // pred_check
      _
    $region59: #{tpu_custom_call.1} parent=1 // pred_check_branch
      %147 = sbr.rel (0) target = $region61
    $region60: #{tpu_custom_call.1} parent=1 // pred_region
      %148 = dma.done [#allocation9], 8192
    $region61: #{tpu_custom_call.1} parent=1 // pred_fallthru
      _
    // Predicated region
    $region62: #{tpu_custom_call.1} parent=1 // pred_check
      _
    $region63: #{tpu_custom_call.1} parent=1 // pred_check_branch
      %150 = sbr.rel (0) target = $region65
    $region64: #{tpu_custom_call.1} parent=1 // pred_region
      %151 = dma.done [#allocation12], 16
    $region65: #{tpu_custom_call.1} parent=1 // pred_fallthru
      _
    // Predicated region
    $region66: #{tpu_custom_call.1} parent=1 // pred_check
      _
    $region67: #{tpu_custom_call.1} parent=1 // pred_check_branch
      %153 = sbr.rel (0) target = $region69
    $region68: #{tpu_custom_call.1} parent=1 // pred_region
      %154 = dma.done [#allocation12], 2048
    $region69: #{tpu_custom_call.1} parent=1 // pred_fallthru
      _
    // Predicated region
    $region70: #{tpu_custom_call.1} parent=1 // pred_check
      _
    $region71: #{tpu_custom_call.1} parent=1 // pred_check_branch
      %156 = sbr.rel (0) target = $region73
    $region72: #{tpu_custom_call.1} parent=1 // pred_region
      %157 = dma.done [#allocation15], 16
    $region73: #{tpu_custom_call.1} parent=1 // pred_fallthru
      _
    // Predicated region
    $region74: #{tpu_custom_call.1} parent=1 // pred_check
      _
    $region75: #{tpu_custom_call.1} parent=1 // pred_check_branch
      %159 = sbr.rel (0) target = $region77
    $region76: #{tpu_custom_call.1} parent=1 // pred_region
      %160 = dma.done [#allocation15], 256
    $region77: #{tpu_custom_call.1} parent=1 // pred_fallthru
      _
    // Predicated region
    $region78: #{tpu_custom_call.1} parent=1 // pred_check
      _
    $region79: #{tpu_custom_call.1} parent=1 // pred_check_branch
      %162 = sbr.rel (0) target = $region81
    $region80: #{tpu_custom_call.1} parent=1 // pred_region
      %163 = dma.done [#allocation18], 16
    $region81: #{tpu_custom_call.1} parent=1 // pred_fallthru
      _
    %v164 = vld [vmem:[#allocation2] sm:$0xff]
    %v165 = vld [vmem:[#allocation2 + $0x8] sm:$0xff]
    %v166 = vld [vmem:[#allocation2 + $0x10] sm:$0xff]
    %v167 = vld [vmem:[#allocation2 + $0x18] sm:$0xff]
    %v168 = vld [vmem:[#allocation2 + $0x20] sm:$0xff]
    %v169 = vld [vmem:[#allocation2 + $0x28] sm:$0xff]
    %v170 = vld [vmem:[#allocation2 + $0x30] sm:$0xff]
    %v171 = vld [vmem:[#allocation2 + $0x38] sm:$0xff]
    %v172 = vld [vmem:[#allocation5] sm:$0xff]
    %v173 = vld [vmem:[#allocation5 + $0x8] sm:$0xff]
    %v174 = vld [vmem:[#allocation5 + $0x10] sm:$0xff]
    %v175 = vld [vmem:[#allocation5 + $0x18] sm:$0xff]
    %v176 = vld [vmem:[#allocation5 + $0x20] sm:$0xff]
    %v177 = vld [vmem:[#allocation5 + $0x28] sm:$0xff]
    %v178 = vld [vmem:[#allocation5 + $0x30] sm:$0xff]
    %v179 = vld [vmem:[#allocation5 + $0x38] sm:$0xff]
    %v180 = vld [vmem:[#allocation5 + $0x40] sm:$0xff]
    %v181 = vld [vmem:[#allocation5 + $0x48] sm:$0xff]
    %v182 = vld [vmem:[#allocation5 + $0x50] sm:$0xff]
    %v183 = vld [vmem:[#allocation5 + $0x58] sm:$0xff]
    %v184 = vld [vmem:[#allocation5 + $0x60] sm:$0xff]
    %v185 = vld [vmem:[#allocation5 + $0x68] sm:$0xff]
    %v186 = vld [vmem:[#allocation5 + $0x70] sm:$0xff]
    %v187 = vld [vmem:[#allocation5 + $0x78] sm:$0xff]
    %v188 = vld [vmem:[#allocation5 + $0x80] sm:$0xff]
    %v189 = vld [vmem:[#allocation5 + $0x88] sm:$0xff]
    %v190 = vld [vmem:[#allocation5 + $0x90] sm:$0xff]
    %v191 = vld [vmem:[#allocation5 + $0x98] sm:$0xff]
    %v192 = vld [vmem:[#allocation5 + $0xa0] sm:$0xff]
    %v193 = vld [vmem:[#allocation5 + $0xa8] sm:$0xff]
    %v194 = vld [vmem:[#allocation5 + $0xb0] sm:$0xff]
    %v195 = vld [vmem:[#allocation5 + $0xb8] sm:$0xff]
    %v196 = vld [vmem:[#allocation5 + $0xc0] sm:$0xff]
    %v197 = vld [vmem:[#allocation5 + $0xc8] sm:$0xff]
    %v198 = vld [vmem:[#allocation5 + $0xd0] sm:$0xff]
    %v199 = vld [vmem:[#allocation5 + $0xd8] sm:$0xff]
    %v200 = vld [vmem:[#allocation5 + $0xe0] sm:$0xff]
    %v201 = vld [vmem:[#allocation5 + $0xe8] sm:$0xff]
    %v202 = vld [vmem:[#allocation5 + $0xf0] sm:$0xff]
    %v203 = vld [vmem:[#allocation5 + $0xf8] sm:$0xff]
    %v204 = vld [vmem:[#allocation5 + $0x100] sm:$0xff]
    %v205 = vld [vmem:[#allocation5 + $0x108] sm:$0xff]
    %v206 = vld [vmem:[#allocation5 + $0x110] sm:$0xff]
    %v207 = vld [vmem:[#allocation5 + $0x118] sm:$0xff]
    %v208 = vld [vmem:[#allocation5 + $0x120] sm:$0xff]
    %v209 = vld [vmem:[#allocation5 + $0x128] sm:$0xff]
    %v210 = vld [vmem:[#allocation5 + $0x130] sm:$0xff]
    %v211 = vld [vmem:[#allocation5 + $0x138] sm:$0xff]
    %v212 = vld [vmem:[#allocation5 + $0x140] sm:$0xff]
    %v213 = vld [vmem:[#allocation5 + $0x148] sm:$0xff]
    %v214 = vld [vmem:[#allocation5 + $0x150] sm:$0xff]
    %v215 = vld [vmem:[#allocation5 + $0x158] sm:$0xff]
    %v216 = vld [vmem:[#allocation5 + $0x160] sm:$0xff]
    %v217 = vld [vmem:[#allocation5 + $0x168] sm:$0xff]
    %v218 = vld [vmem:[#allocation5 + $0x170] sm:$0xff]
    %v219 = vld [vmem:[#allocation5 + $0x178] sm:$0xff]
    %v220 = vld [vmem:[#allocation5 + $0x180] sm:$0xff]
    %v221 = vld [vmem:[#allocation5 + $0x188] sm:$0xff]
    %v222 = vld [vmem:[#allocation5 + $0x190] sm:$0xff]
    %v223 = vld [vmem:[#allocation5 + $0x198] sm:$0xff]
    %v224 = vld [vmem:[#allocation5 + $0x1a0] sm:$0xff]
    %v225 = vld [vmem:[#allocation5 + $0x1a8] sm:$0xff]
    %v226 = vld [vmem:[#allocation5 + $0x1b0] sm:$0xff]
    %v227 = vld [vmem:[#allocation5 + $0x1b8] sm:$0xff]
    %v228 = vld [vmem:[#allocation5 + $0x1c0] sm:$0xff]
    %v229 = vld [vmem:[#allocation5 + $0x1c8] sm:$0xff]
    %v230 = vld [vmem:[#allocation5 + $0x1d0] sm:$0xff]
    %v231 = vld [vmem:[#allocation5 + $0x1d8] sm:$0xff]
    %v232 = vld [vmem:[#allocation5 + $0x1e0] sm:$0xff]
    %v233 = vld [vmem:[#allocation5 + $0x1e8] sm:$0xff]
    %v234 = vld [vmem:[#allocation5 + $0x1f0] sm:$0xff]
    %v235 = vld [vmem:[#allocation5 + $0x1f8] sm:$0xff]
    %v236 = vld [vmem:[#allocation5 + $0x200] sm:$0xff]
    %v237 = vld [vmem:[#allocation5 + $0x208] sm:$0xff]
    %v238 = vld [vmem:[#allocation5 + $0x210] sm:$0xff]
    %v239 = vld [vmem:[#allocation5 + $0x218] sm:$0xff]
    %v240 = vld [vmem:[#allocation5 + $0x220] sm:$0xff]
    %v241 = vld [vmem:[#allocation5 + $0x228] sm:$0xff]
    %v242 = vld [vmem:[#allocation5 + $0x230] sm:$0xff]
    %v243 = vld [vmem:[#allocation5 + $0x238] sm:$0xff]
    %v244 = vld [vmem:[#allocation5 + $0x240] sm:$0xff]
    %v245 = vld [vmem:[#allocation5 + $0x248] sm:$0xff]
    %v246 = vld [vmem:[#allocation5 + $0x250] sm:$0xff]
    %v247 = vld [vmem:[#allocation5 + $0x258] sm:$0xff]
    %v248 = vld [vmem:[#allocation5 + $0x260] sm:$0xff]
    %v249 = vld [vmem:[#allocation5 + $0x268] sm:$0xff]
    %v250 = vld [vmem:[#allocation5 + $0x270] sm:$0xff]
    %v251 = vld [vmem:[#allocation5 + $0x278] sm:$0xff]
    %v252 = vld [vmem:[#allocation5 + $0x280] sm:$0xff]
    %v253 = vld [vmem:[#allocation5 + $0x288] sm:$0xff]
    %v254 = vld [vmem:[#allocation5 + $0x290] sm:$0xff]
    %v255 = vld [vmem:[#allocation5 + $0x298] sm:$0xff]
    %v256 = vld [vmem:[#allocation5 + $0x2a0] sm:$0xff]
    %v257 = vld [vmem:[#allocation5 + $0x2a8] sm:$0xff]
    %v258 = vld [vmem:[#allocation5 + $0x2b0] sm:$0xff]
    %v259 = vld [vmem:[#allocation5 + $0x2b8] sm:$0xff]
    %v260 = vld [vmem:[#allocation5 + $0x2c0] sm:$0xff]
    %v261 = vld [vmem:[#allocation5 + $0x2c8] sm:$0xff]
    %v262 = vld [vmem:[#allocation5 + $0x2d0] sm:$0xff]
    %v263 = vld [vmem:[#allocation5 + $0x2d8] sm:$0xff]
    %v264 = vld [vmem:[#allocation5 + $0x2e0] sm:$0xff]
    %v265 = vld [vmem:[#allocation5 + $0x2e8] sm:$0xff]
    %v266 = vld [vmem:[#allocation5 + $0x2f0] sm:$0xff]
    %v267 = vld [vmem:[#allocation5 + $0x2f8] sm:$0xff]
    %v268 = vld [vmem:[#allocation7] sm:$0xff]
    %v269 = vld [vmem:[#allocation7 + $0x8] sm:$0xff]
    %v270 = vld [vmem:[#allocation7 + $0x10] sm:$0xff]
    %v271 = vld [vmem:[#allocation7 + $0x18] sm:$0xff]
    %v272 = vld [vmem:[#allocation7 + $0x20] sm:$0xff]
    %v273 = vld [vmem:[#allocation7 + $0x28] sm:$0xff]
    %v274 = vld [vmem:[#allocation7 + $0x30] sm:$0xff]
    %v275 = vld [vmem:[#allocation7 + $0x38] sm:$0xff]
    %v276 = vld [vmem:[#allocation7 + $0x40] sm:$0xff]
    %v277 = vld [vmem:[#allocation7 + $0x48] sm:$0xff]
    %v278 = vld [vmem:[#allocation7 + $0x50] sm:$0xff]
    %v279 = vld [vmem:[#allocation7 + $0x58] sm:$0xff]
    %v280 = vld [vmem:[#allocation7 + $0x60] sm:$0xff]
    %v281 = vld [vmem:[#allocation7 + $0x68] sm:$0xff]
    %v282 = vld [vmem:[#allocation7 + $0x70] sm:$0xff]
    %v283 = vld [vmem:[#allocation7 + $0x78] sm:$0xff]
    %v284 = vld [vmem:[#allocation7 + $0x80] sm:$0xff]
    %v285 = vld [vmem:[#allocation7 + $0x88] sm:$0xff]
    %v286 = vld [vmem:[#allocation7 + $0x90] sm:$0xff]
    %v287 = vld [vmem:[#allocation7 + $0x98] sm:$0xff]
    %v288 = vld [vmem:[#allocation7 + $0xa0] sm:$0xff]
    %v289 = vld [vmem:[#allocation7 + $0xa8] sm:$0xff]
    %v290 = vld [vmem:[#allocation7 + $0xb0] sm:$0xff]
    %v291 = vld [vmem:[#allocation7 + $0xb8] sm:$0xff]
    %v292 = vld [vmem:[#allocation7 + $0xc0] sm:$0xff]
    %v293 = vld [vmem:[#allocation7 + $0xc8] sm:$0xff]
    %v294 = vld [vmem:[#allocation7 + $0xd0] sm:$0xff]
    %v295 = vld [vmem:[#allocation7 + $0xd8] sm:$0xff]
    %v296 = vld [vmem:[#allocation7 + $0xe0] sm:$0xff]
    %v297 = vld [vmem:[#allocation7 + $0xe8] sm:$0xff]
    %v298 = vld [vmem:[#allocation7 + $0xf0] sm:$0xff]
    %v299 = vld [vmem:[#allocation7 + $0xf8] sm:$0xff]
    %v300 = vld [vmem:[#allocation7 + $0x100] sm:$0xff]
    %v301 = vld [vmem:[#allocation7 + $0x108] sm:$0xff]
    %v302 = vld [vmem:[#allocation7 + $0x110] sm:$0xff]
    %v303 = vld [vmem:[#allocation7 + $0x118] sm:$0xff]
    %v304 = vld [vmem:[#allocation7 + $0x120] sm:$0xff]
    %v305 = vld [vmem:[#allocation7 + $0x128] sm:$0xff]
    %v306 = vld [vmem:[#allocation7 + $0x130] sm:$0xff]
    %v307 = vld [vmem:[#allocation7 + $0x138] sm:$0xff]
    %v308 = vld [vmem:[#allocation7 + $0x140] sm:$0xff]
    %v309 = vld [vmem:[#allocation7 + $0x148] sm:$0xff]
    %v310 = vld [vmem:[#allocation7 + $0x150] sm:$0xff]
    %v311 = vld [vmem:[#allocation7 + $0x158] sm:$0xff]
    %v312 = vld [vmem:[#allocation7 + $0x160] sm:$0xff]
    %v313 = vld [vmem:[#allocation7 + $0x168] sm:$0xff]
    %v314 = vld [vmem:[#allocation7 + $0x170] sm:$0xff]
    %v315 = vld [vmem:[#allocation7 + $0x178] sm:$0xff]
    %v316 = vld [vmem:[#allocation7 + $0x180] sm:$0xff]
    %v317 = vld [vmem:[#allocation7 + $0x188] sm:$0xff]
    %v318 = vld [vmem:[#allocation7 + $0x190] sm:$0xff]
    %v319 = vld [vmem:[#allocation7 + $0x198] sm:$0xff]
    %v320 = vld [vmem:[#allocation7 + $0x1a0] sm:$0xff]
    %v321 = vld [vmem:[#allocation7 + $0x1a8] sm:$0xff]
    %v322 = vld [vmem:[#allocation7 + $0x1b0] sm:$0xff]
    %v323 = vld [vmem:[#allocation7 + $0x1b8] sm:$0xff]
    %v324 = vld [vmem:[#allocation7 + $0x1c0] sm:$0xff]
    %v325 = vld [vmem:[#allocation7 + $0x1c8] sm:$0xff]
    %v326 = vld [vmem:[#allocation7 + $0x1d0] sm:$0xff]
    %v327 = vld [vmem:[#allocation7 + $0x1d8] sm:$0xff]
    %v328 = vld [vmem:[#allocation7 + $0x1e0] sm:$0xff]
    %v329 = vld [vmem:[#allocation7 + $0x1e8] sm:$0xff]
    %v330 = vld [vmem:[#allocation7 + $0x1f0] sm:$0xff]
    %v331 = vld [vmem:[#allocation7 + $0x1f8] sm:$0xff]
    %v332 = vld [vmem:[#allocation7 + $0x200] sm:$0xff]
    %v333 = vld [vmem:[#allocation7 + $0x208] sm:$0xff]
    %v334 = vld [vmem:[#allocation7 + $0x210] sm:$0xff]
    %v335 = vld [vmem:[#allocation7 + $0x218] sm:$0xff]
    %v336 = vld [vmem:[#allocation7 + $0x220] sm:$0xff]
    %v337 = vld [vmem:[#allocation7 + $0x228] sm:$0xff]
    %v338 = vld [vmem:[#allocation7 + $0x230] sm:$0xff]
    %v339 = vld [vmem:[#allocation7 + $0x238] sm:$0xff]
    %v340 = vld [vmem:[#allocation7 + $0x240] sm:$0xff]
    %v341 = vld [vmem:[#allocation7 + $0x248] sm:$0xff]
    %v342 = vld [vmem:[#allocation7 + $0x250] sm:$0xff]
    %v343 = vld [vmem:[#allocation7 + $0x258] sm:$0xff]
    %v344 = vld [vmem:[#allocation7 + $0x260] sm:$0xff]
    %v345 = vld [vmem:[#allocation7 + $0x268] sm:$0xff]
    %v346 = vld [vmem:[#allocation7 + $0x270] sm:$0xff]
    %v347 = vld [vmem:[#allocation7 + $0x278] sm:$0xff]
    %v348 = vld [vmem:[#allocation7 + $0x280] sm:$0xff]
    %v349 = vld [vmem:[#allocation7 + $0x288] sm:$0xff]
    %v350 = vld [vmem:[#allocation7 + $0x290] sm:$0xff]
    %v351 = vld [vmem:[#allocation7 + $0x298] sm:$0xff]
    %v352 = vld [vmem:[#allocation7 + $0x2a0] sm:$0xff]
    %v353 = vld [vmem:[#allocation7 + $0x2a8] sm:$0xff]
    %v354 = vld [vmem:[#allocation7 + $0x2b0] sm:$0xff]
    %v355 = vld [vmem:[#allocation7 + $0x2b8] sm:$0xff]
    %v356 = vld [vmem:[#allocation7 + $0x2c0] sm:$0xff]
    %v357 = vld [vmem:[#allocation7 + $0x2c8] sm:$0xff]
    %v358 = vld [vmem:[#allocation7 + $0x2d0] sm:$0xff]
    %v359 = vld [vmem:[#allocation7 + $0x2d8] sm:$0xff]
    %v360 = vld [vmem:[#allocation7 + $0x2e0] sm:$0xff]
    %v361 = vld [vmem:[#allocation7 + $0x2e8] sm:$0xff]
    %v362 = vld [vmem:[#allocation7 + $0x2f0] sm:$0xff]
    %v363 = vld [vmem:[#allocation7 + $0x2f8] sm:$0xff]
    %v364 = vld [vmem:[#allocation7 + $0x300] sm:$0xff]
    %v365 = vld [vmem:[#allocation7 + $0x308] sm:$0xff]
    %v366 = vld [vmem:[#allocation7 + $0x310] sm:$0xff]
    %v367 = vld [vmem:[#allocation7 + $0x318] sm:$0xff]
    %v368 = vld [vmem:[#allocation7 + $0x320] sm:$0xff]
    %v369 = vld [vmem:[#allocation7 + $0x328] sm:$0xff]
    %v370 = vld [vmem:[#allocation7 + $0x330] sm:$0xff]
    %v371 = vld [vmem:[#allocation7 + $0x338] sm:$0xff]
    %v372 = vld [vmem:[#allocation7 + $0x340] sm:$0xff]
    %v373 = vld [vmem:[#allocation7 + $0x348] sm:$0xff]
    %v374 = vld [vmem:[#allocation7 + $0x350] sm:$0xff]
    %v375 = vld [vmem:[#allocation7 + $0x358] sm:$0xff]
    %v376 = vld [vmem:[#allocation7 + $0x360] sm:$0xff]
    %v377 = vld [vmem:[#allocation7 + $0x368] sm:$0xff]
    %v378 = vld [vmem:[#allocation7 + $0x370] sm:$0xff]
    %v379 = vld [vmem:[#allocation7 + $0x378] sm:$0xff]
    %v380 = vld [vmem:[#allocation7 + $0x380] sm:$0xff]
    %v381 = vld [vmem:[#allocation7 + $0x388] sm:$0xff]
    %v382 = vld [vmem:[#allocation7 + $0x390] sm:$0xff]
    %v383 = vld [vmem:[#allocation7 + $0x398] sm:$0xff]
    %v384 = vld [vmem:[#allocation7 + $0x3a0] sm:$0xff]
    %v385 = vld [vmem:[#allocation7 + $0x3a8] sm:$0xff]
    %v386 = vld [vmem:[#allocation7 + $0x3b0] sm:$0xff]
    %v387 = vld [vmem:[#allocation7 + $0x3b8] sm:$0xff]
    %v388 = vld [vmem:[#allocation7 + $0x3c0] sm:$0xff]
    %v389 = vld [vmem:[#allocation7 + $0x3c8] sm:$0xff]
    %v390 = vld [vmem:[#allocation7 + $0x3d0] sm:$0xff]
    %v391 = vld [vmem:[#allocation7 + $0x3d8] sm:$0xff]
    %v392 = vld [vmem:[#allocation7 + $0x3e0] sm:$0xff]
    %v393 = vld [vmem:[#allocation7 + $0x3e8] sm:$0xff]
    %v394 = vld [vmem:[#allocation7 + $0x3f0] sm:$0xff]
    %v395 = vld [vmem:[#allocation7 + $0x3f8] sm:$0xff]
    %v396 = vld [vmem:[#allocation7 + $0x400] sm:$0xff]
    %v397 = vld [vmem:[#allocation7 + $0x408] sm:$0xff]
    %v398 = vld [vmem:[#allocation7 + $0x410] sm:$0xff]
    %v399 = vld [vmem:[#allocation7 + $0x418] sm:$0xff]
    %v400 = vld [vmem:[#allocation7 + $0x420] sm:$0xff]
    %v401 = vld [vmem:[#allocation7 + $0x428] sm:$0xff]
    %v402 = vld [vmem:[#allocation7 + $0x430] sm:$0xff]
    %v403 = vld [vmem:[#allocation7 + $0x438] sm:$0xff]
    %v404 = vld [vmem:[#allocation7 + $0x440] sm:$0xff]
    %v405 = vld [vmem:[#allocation7 + $0x448] sm:$0xff]
    %v406 = vld [vmem:[#allocation7 + $0x450] sm:$0xff]
    %v407 = vld [vmem:[#allocation7 + $0x458] sm:$0xff]
    %v408 = vld [vmem:[#allocation7 + $0x460] sm:$0xff]
    %v409 = vld [vmem:[#allocation7 + $0x468] sm:$0xff]
    %v410 = vld [vmem:[#allocation7 + $0x470] sm:$0xff]
    %v411 = vld [vmem:[#allocation7 + $0x478] sm:$0xff]
    %v412 = vld [vmem:[#allocation7 + $0x480] sm:$0xff]
    %v413 = vld [vmem:[#allocation7 + $0x488] sm:$0xff]
    %v414 = vld [vmem:[#allocation7 + $0x490] sm:$0xff]
    %v415 = vld [vmem:[#allocation7 + $0x498] sm:$0xff]
    %v416 = vld [vmem:[#allocation7 + $0x4a0] sm:$0xff]
    %v417 = vld [vmem:[#allocation7 + $0x4a8] sm:$0xff]
    %v418 = vld [vmem:[#allocation7 + $0x4b0] sm:$0xff]
    %v419 = vld [vmem:[#allocation7 + $0x4b8] sm:$0xff]
    %v420 = vld [vmem:[#allocation7 + $0x4c0] sm:$0xff]
    %v421 = vld [vmem:[#allocation7 + $0x4c8] sm:$0xff]
    %v422 = vld [vmem:[#allocation7 + $0x4d0] sm:$0xff]
    %v423 = vld [vmem:[#allocation7 + $0x4d8] sm:$0xff]
    %v424 = vld [vmem:[#allocation7 + $0x4e0] sm:$0xff]
    %v425 = vld [vmem:[#allocation7 + $0x4e8] sm:$0xff]
    %v426 = vld [vmem:[#allocation7 + $0x4f0] sm:$0xff]
    %v427 = vld [vmem:[#allocation7 + $0x4f8] sm:$0xff]
    %v428 = vld [vmem:[#allocation7 + $0x500] sm:$0xff]
    %v429 = vld [vmem:[#allocation7 + $0x508] sm:$0xff]
    %v430 = vld [vmem:[#allocation7 + $0x510] sm:$0xff]
    %v431 = vld [vmem:[#allocation7 + $0x518] sm:$0xff]
    %v432 = vld [vmem:[#allocation7 + $0x520] sm:$0xff]
    %v433 = vld [vmem:[#allocation7 + $0x528] sm:$0xff]
    %v434 = vld [vmem:[#allocation7 + $0x530] sm:$0xff]
    %v435 = vld [vmem:[#allocation7 + $0x538] sm:$0xff]
    %v436 = vld [vmem:[#allocation7 + $0x540] sm:$0xff]
    %v437 = vld [vmem:[#allocation7 + $0x548] sm:$0xff]
    %v438 = vld [vmem:[#allocation7 + $0x550] sm:$0xff]
    %v439 = vld [vmem:[#allocation7 + $0x558] sm:$0xff]
    %v440 = vld [vmem:[#allocation7 + $0x560] sm:$0xff]
    %v441 = vld [vmem:[#allocation7 + $0x568] sm:$0xff]
    %v442 = vld [vmem:[#allocation7 + $0x570] sm:$0xff]
    %v443 = vld [vmem:[#allocation7 + $0x578] sm:$0xff]
    %v444 = vld [vmem:[#allocation7 + $0x580] sm:$0xff]
    %v445 = vld [vmem:[#allocation7 + $0x588] sm:$0xff]
    %v446 = vld [vmem:[#allocation7 + $0x590] sm:$0xff]
    %v447 = vld [vmem:[#allocation7 + $0x598] sm:$0xff]
    %v448 = vld [vmem:[#allocation7 + $0x5a0] sm:$0xff]
    %v449 = vld [vmem:[#allocation7 + $0x5a8] sm:$0xff]
    %v450 = vld [vmem:[#allocation7 + $0x5b0] sm:$0xff]
    %v451 = vld [vmem:[#allocation7 + $0x5b8] sm:$0xff]
    %v452 = vld [vmem:[#allocation7 + $0x5c0] sm:$0xff]
    %v453 = vld [vmem:[#allocation7 + $0x5c8] sm:$0xff]
    %v454 = vld [vmem:[#allocation7 + $0x5d0] sm:$0xff]
    %v455 = vld [vmem:[#allocation7 + $0x5d8] sm:$0xff]
    %v456 = vld [vmem:[#allocation7 + $0x5e0] sm:$0xff]
    %v457 = vld [vmem:[#allocation7 + $0x5e8] sm:$0xff]
    %v458 = vld [vmem:[#allocation7 + $0x5f0] sm:$0xff]
    %v459 = vld [vmem:[#allocation7 + $0x5f8] sm:$0xff]
    %v460 = vld [vmem:[#allocation7 + $0x600] sm:$0xff]
    %v461 = vld [vmem:[#allocation7 + $0x608] sm:$0xff]
    %v462 = vld [vmem:[#allocation7 + $0x610] sm:$0xff]
    %v463 = vld [vmem:[#allocation7 + $0x618] sm:$0xff]
    %v464 = vld [vmem:[#allocation7 + $0x620] sm:$0xff]
    %v465 = vld [vmem:[#allocation7 + $0x628] sm:$0xff]
    %v466 = vld [vmem:[#allocation7 + $0x630] sm:$0xff]
    %v467 = vld [vmem:[#allocation7 + $0x638] sm:$0xff]
    %v468 = vld [vmem:[#allocation7 + $0x640] sm:$0xff]
    %v469 = vld [vmem:[#allocation7 + $0x648] sm:$0xff]
    %v470 = vld [vmem:[#allocation7 + $0x650] sm:$0xff]
    %v471 = vld [vmem:[#allocation7 + $0x658] sm:$0xff]
    %v472 = vld [vmem:[#allocation7 + $0x660] sm:$0xff]
    %v473 = vld [vmem:[#allocation7 + $0x668] sm:$0xff]
    %v474 = vld [vmem:[#allocation7 + $0x670] sm:$0xff]
    %v475 = vld [vmem:[#allocation7 + $0x678] sm:$0xff]
    %v476 = vld [vmem:[#allocation7 + $0x680] sm:$0xff]
    %v477 = vld [vmem:[#allocation7 + $0x688] sm:$0xff]
    %v478 = vld [vmem:[#allocation7 + $0x690] sm:$0xff]
    %v479 = vld [vmem:[#allocation7 + $0x698] sm:$0xff]
    %v480 = vld [vmem:[#allocation7 + $0x6a0] sm:$0xff]
    %v481 = vld [vmem:[#allocation7 + $0x6a8] sm:$0xff]
    %v482 = vld [vmem:[#allocation7 + $0x6b0] sm:$0xff]
    %v483 = vld [vmem:[#allocation7 + $0x6b8] sm:$0xff]
    %v484 = vld [vmem:[#allocation7 + $0x6c0] sm:$0xff]
    %v485 = vld [vmem:[#allocation7 + $0x6c8] sm:$0xff]
    %v486 = vld [vmem:[#allocation7 + $0x6d0] sm:$0xff]
    %v487 = vld [vmem:[#allocation7 + $0x6d8] sm:$0xff]
    %v488 = vld [vmem:[#allocation7 + $0x6e0] sm:$0xff]
    %v489 = vld [vmem:[#allocation7 + $0x6e8] sm:$0xff]
    %v490 = vld [vmem:[#allocation7 + $0x6f0] sm:$0xff]
    %v491 = vld [vmem:[#allocation7 + $0x6f8] sm:$0xff]
    %v492 = vld [vmem:[#allocation7 + $0x700] sm:$0xff]
    %v493 = vld [vmem:[#allocation7 + $0x708] sm:$0xff]
    %v494 = vld [vmem:[#allocation7 + $0x710] sm:$0xff]
    %v495 = vld [vmem:[#allocation7 + $0x718] sm:$0xff]
    %v496 = vld [vmem:[#allocation7 + $0x720] sm:$0xff]
    %v497 = vld [vmem:[#allocation7 + $0x728] sm:$0xff]
    %v498 = vld [vmem:[#allocation7 + $0x730] sm:$0xff]
    %v499 = vld [vmem:[#allocation7 + $0x738] sm:$0xff]
    %v500 = vld [vmem:[#allocation7 + $0x740] sm:$0xff]
    %v501 = vld [vmem:[#allocation7 + $0x748] sm:$0xff]
    %v502 = vld [vmem:[#allocation7 + $0x750] sm:$0xff]
    %v503 = vld [vmem:[#allocation7 + $0x758] sm:$0xff]
    %v504 = vld [vmem:[#allocation7 + $0x760] sm:$0xff]
    %v505 = vld [vmem:[#allocation7 + $0x768] sm:$0xff]
    %v506 = vld [vmem:[#allocation7 + $0x770] sm:$0xff]
    %v507 = vld [vmem:[#allocation7 + $0x778] sm:$0xff]
    %v508 = vld [vmem:[#allocation7 + $0x780] sm:$0xff]
    %v509 = vld [vmem:[#allocation7 + $0x788] sm:$0xff]
    %v510 = vld [vmem:[#allocation7 + $0x790] sm:$0xff]
    %v511 = vld [vmem:[#allocation7 + $0x798] sm:$0xff]
    %v512 = vld [vmem:[#allocation7 + $0x7a0] sm:$0xff]
    %v513 = vld [vmem:[#allocation7 + $0x7a8] sm:$0xff]
    %v514 = vld [vmem:[#allocation7 + $0x7b0] sm:$0xff]
    %v515 = vld [vmem:[#allocation7 + $0x7b8] sm:$0xff]
    %v516 = vld [vmem:[#allocation7 + $0x7c0] sm:$0xff]
    %v517 = vld [vmem:[#allocation7 + $0x7c8] sm:$0xff]
    %v518 = vld [vmem:[#allocation7 + $0x7d0] sm:$0xff]
    %v519 = vld [vmem:[#allocation7 + $0x7d8] sm:$0xff]
    %v520 = vld [vmem:[#allocation7 + $0x7e0] sm:$0xff]
    %v521 = vld [vmem:[#allocation7 + $0x7e8] sm:$0xff]
    %v522 = vld [vmem:[#allocation7 + $0x7f0] sm:$0xff]
    %v523 = vld [vmem:[#allocation7 + $0x7f8] sm:$0xff]
    %v524 = vld [vmem:[#allocation7 + $0x800] sm:$0xff]
    %v525 = vld [vmem:[#allocation7 + $0x808] sm:$0xff]
    %v526 = vld [vmem:[#allocation7 + $0x810] sm:$0xff]
    %v527 = vld [vmem:[#allocation7 + $0x818] sm:$0xff]
    %v528 = vld [vmem:[#allocation7 + $0x820] sm:$0xff]
    %v529 = vld [vmem:[#allocation7 + $0x828] sm:$0xff]
    %v530 = vld [vmem:[#allocation7 + $0x830] sm:$0xff]
    %v531 = vld [vmem:[#allocation7 + $0x838] sm:$0xff]
    %v532 = vld [vmem:[#allocation7 + $0x840] sm:$0xff]
    %v533 = vld [vmem:[#allocation7 + $0x848] sm:$0xff]
    %v534 = vld [vmem:[#allocation7 + $0x850] sm:$0xff]
    %v535 = vld [vmem:[#allocation7 + $0x858] sm:$0xff]
    %v536 = vld [vmem:[#allocation7 + $0x860] sm:$0xff]
    %v537 = vld [vmem:[#allocation7 + $0x868] sm:$0xff]
    %v538 = vld [vmem:[#allocation7 + $0x870] sm:$0xff]
    %v539 = vld [vmem:[#allocation7 + $0x878] sm:$0xff]
    %v540 = vld [vmem:[#allocation7 + $0x880] sm:$0xff]
    %v541 = vld [vmem:[#allocation7 + $0x888] sm:$0xff]
    %v542 = vld [vmem:[#allocation7 + $0x890] sm:$0xff]
    %v543 = vld [vmem:[#allocation7 + $0x898] sm:$0xff]
    %v544 = vld [vmem:[#allocation7 + $0x8a0] sm:$0xff]
    %v545 = vld [vmem:[#allocation7 + $0x8a8] sm:$0xff]
    %v546 = vld [vmem:[#allocation7 + $0x8b0] sm:$0xff]
    %v547 = vld [vmem:[#allocation7 + $0x8b8] sm:$0xff]
    %v548 = vld [vmem:[#allocation7 + $0x8c0] sm:$0xff]
    %v549 = vld [vmem:[#allocation7 + $0x8c8] sm:$0xff]
    %v550 = vld [vmem:[#allocation7 + $0x8d0] sm:$0xff]
    %v551 = vld [vmem:[#allocation7 + $0x8d8] sm:$0xff]
    %v552 = vld [vmem:[#allocation7 + $0x8e0] sm:$0xff]
    %v553 = vld [vmem:[#allocation7 + $0x8e8] sm:$0xff]
    %v554 = vld [vmem:[#allocation7 + $0x8f0] sm:$0xff]
    %v555 = vld [vmem:[#allocation7 + $0x8f8] sm:$0xff]
    %v556 = vld [vmem:[#allocation7 + $0x900] sm:$0xff]
    %v557 = vld [vmem:[#allocation7 + $0x908] sm:$0xff]
    %v558 = vld [vmem:[#allocation7 + $0x910] sm:$0xff]
    %v559 = vld [vmem:[#allocation7 + $0x918] sm:$0xff]
    %v560 = vld [vmem:[#allocation7 + $0x920] sm:$0xff]
    %v561 = vld [vmem:[#allocation7 + $0x928] sm:$0xff]
    %v562 = vld [vmem:[#allocation7 + $0x930] sm:$0xff]
    %v563 = vld [vmem:[#allocation7 + $0x938] sm:$0xff]
    %v564 = vld [vmem:[#allocation7 + $0x940] sm:$0xff]
    %v565 = vld [vmem:[#allocation7 + $0x948] sm:$0xff]
    %v566 = vld [vmem:[#allocation7 + $0x950] sm:$0xff]
    %v567 = vld [vmem:[#allocation7 + $0x958] sm:$0xff]
    %v568 = vld [vmem:[#allocation7 + $0x960] sm:$0xff]
    %v569 = vld [vmem:[#allocation7 + $0x968] sm:$0xff]
    %v570 = vld [vmem:[#allocation7 + $0x970] sm:$0xff]
    %v571 = vld [vmem:[#allocation7 + $0x978] sm:$0xff]
    %v572 = vld [vmem:[#allocation7 + $0x980] sm:$0xff]
    %v573 = vld [vmem:[#allocation7 + $0x988] sm:$0xff]
    %v574 = vld [vmem:[#allocation7 + $0x990] sm:$0xff]
    %v575 = vld [vmem:[#allocation7 + $0x998] sm:$0xff]
    %v576 = vld [vmem:[#allocation7 + $0x9a0] sm:$0xff]
    %v577 = vld [vmem:[#allocation7 + $0x9a8] sm:$0xff]
    %v578 = vld [vmem:[#allocation7 + $0x9b0] sm:$0xff]
    %v579 = vld [vmem:[#allocation7 + $0x9b8] sm:$0xff]
    %v580 = vld [vmem:[#allocation7 + $0x9c0] sm:$0xff]
    %v581 = vld [vmem:[#allocation7 + $0x9c8] sm:$0xff]
    %v582 = vld [vmem:[#allocation7 + $0x9d0] sm:$0xff]
    %v583 = vld [vmem:[#allocation7 + $0x9d8] sm:$0xff]
    %v584 = vld [vmem:[#allocation7 + $0x9e0] sm:$0xff]
    %v585 = vld [vmem:[#allocation7 + $0x9e8] sm:$0xff]
    %v586 = vld [vmem:[#allocation7 + $0x9f0] sm:$0xff]
    %v587 = vld [vmem:[#allocation7 + $0x9f8] sm:$0xff]
    %v588 = vld [vmem:[#allocation7 + $0xa00] sm:$0xff]
    %v589 = vld [vmem:[#allocation7 + $0xa08] sm:$0xff]
    %v590 = vld [vmem:[#allocation7 + $0xa10] sm:$0xff]
    %v591 = vld [vmem:[#allocation7 + $0xa18] sm:$0xff]
    %v592 = vld [vmem:[#allocation7 + $0xa20] sm:$0xff]
    %v593 = vld [vmem:[#allocation7 + $0xa28] sm:$0xff]
    %v594 = vld [vmem:[#allocation7 + $0xa30] sm:$0xff]
    %v595 = vld [vmem:[#allocation7 + $0xa38] sm:$0xff]
    %v596 = vld [vmem:[#allocation7 + $0xa40] sm:$0xff]
    %v597 = vld [vmem:[#allocation7 + $0xa48] sm:$0xff]
    %v598 = vld [vmem:[#allocation7 + $0xa50] sm:$0xff]
    %v599 = vld [vmem:[#allocation7 + $0xa58] sm:$0xff]
    %v600 = vld [vmem:[#allocation7 + $0xa60] sm:$0xff]
    %v601 = vld [vmem:[#allocation7 + $0xa68] sm:$0xff]
    %v602 = vld [vmem:[#allocation7 + $0xa70] sm:$0xff]
    %v603 = vld [vmem:[#allocation7 + $0xa78] sm:$0xff]
    %v604 = vld [vmem:[#allocation7 + $0xa80] sm:$0xff]
    %v605 = vld [vmem:[#allocation7 + $0xa88] sm:$0xff]
    %v606 = vld [vmem:[#allocation7 + $0xa90] sm:$0xff]
    %v607 = vld [vmem:[#allocation7 + $0xa98] sm:$0xff]
    %v608 = vld [vmem:[#allocation7 + $0xaa0] sm:$0xff]
    %v609 = vld [vmem:[#allocation7 + $0xaa8] sm:$0xff]
    %v610 = vld [vmem:[#allocation7 + $0xab0] sm:$0xff]
    %v611 = vld [vmem:[#allocation7 + $0xab8] sm:$0xff]
    %v612 = vld [vmem:[#allocation7 + $0xac0] sm:$0xff]
    %v613 = vld [vmem:[#allocation7 + $0xac8] sm:$0xff]
    %v614 = vld [vmem:[#allocation7 + $0xad0] sm:$0xff]
    %v615 = vld [vmem:[#allocation7 + $0xad8] sm:$0xff]
    %v616 = vld [vmem:[#allocation7 + $0xae0] sm:$0xff]
    %v617 = vld [vmem:[#allocation7 + $0xae8] sm:$0xff]
    %v618 = vld [vmem:[#allocation7 + $0xaf0] sm:$0xff]
    %v619 = vld [vmem:[#allocation7 + $0xaf8] sm:$0xff]
    %v620 = vld [vmem:[#allocation7 + $0xb00] sm:$0xff]
    %v621 = vld [vmem:[#allocation7 + $0xb08] sm:$0xff]
    %v622 = vld [vmem:[#allocation7 + $0xb10] sm:$0xff]
    %v623 = vld [vmem:[#allocation7 + $0xb18] sm:$0xff]
    %v624 = vld [vmem:[#allocation7 + $0xb20] sm:$0xff]
    %v625 = vld [vmem:[#allocation7 + $0xb28] sm:$0xff]
    %v626 = vld [vmem:[#allocation7 + $0xb30] sm:$0xff]
    %v627 = vld [vmem:[#allocation7 + $0xb38] sm:$0xff]
    %v628 = vld [vmem:[#allocation7 + $0xb40] sm:$0xff]
    %v629 = vld [vmem:[#allocation7 + $0xb48] sm:$0xff]
    %v630 = vld [vmem:[#allocation7 + $0xb50] sm:$0xff]
    %v631 = vld [vmem:[#allocation7 + $0xb58] sm:$0xff]
    %v632 = vld [vmem:[#allocation7 + $0xb60] sm:$0xff]
    %v633 = vld [vmem:[#allocation7 + $0xb68] sm:$0xff]
    %v634 = vld [vmem:[#allocation7 + $0xb70] sm:$0xff]
    %v635 = vld [vmem:[#allocation7 + $0xb78] sm:$0xff]
    %v636 = vld [vmem:[#allocation7 + $0xb80] sm:$0xff]
    %v637 = vld [vmem:[#allocation7 + $0xb88] sm:$0xff]
    %v638 = vld [vmem:[#allocation7 + $0xb90] sm:$0xff]
    %v639 = vld [vmem:[#allocation7 + $0xb98] sm:$0xff]
    %v640 = vld [vmem:[#allocation7 + $0xba0] sm:$0xff]
    %v641 = vld [vmem:[#allocation7 + $0xba8] sm:$0xff]
    %v642 = vld [vmem:[#allocation7 + $0xbb0] sm:$0xff]
    %v643 = vld [vmem:[#allocation7 + $0xbb8] sm:$0xff]
    %v644 = vld [vmem:[#allocation7 + $0xbc0] sm:$0xff]
    %v645 = vld [vmem:[#allocation7 + $0xbc8] sm:$0xff]
    %v646 = vld [vmem:[#allocation7 + $0xbd0] sm:$0xff]
    %v647 = vld [vmem:[#allocation7 + $0xbd8] sm:$0xff]
    %v648 = vld [vmem:[#allocation7 + $0xbe0] sm:$0xff]
    %v649 = vld [vmem:[#allocation7 + $0xbe8] sm:$0xff]
    %v650 = vld [vmem:[#allocation7 + $0xbf0] sm:$0xff]
    %v651 = vld [vmem:[#allocation7 + $0xbf8] sm:$0xff]
    %v652 = vld [vmem:[#allocation7 + $0xc00] sm:$0xff]
    %v653 = vld [vmem:[#allocation7 + $0xc08] sm:$0xff]
    %v654 = vld [vmem:[#allocation7 + $0xc10] sm:$0xff]
    %v655 = vld [vmem:[#allocation7 + $0xc18] sm:$0xff]
    %v656 = vld [vmem:[#allocation7 + $0xc20] sm:$0xff]
    %v657 = vld [vmem:[#allocation7 + $0xc28] sm:$0xff]
    %v658 = vld [vmem:[#allocation7 + $0xc30] sm:$0xff]
    %v659 = vld [vmem:[#allocation7 + $0xc38] sm:$0xff]
    %v660 = vld [vmem:[#allocation7 + $0xc40] sm:$0xff]
    %v661 = vld [vmem:[#allocation7 + $0xc48] sm:$0xff]
    %v662 = vld [vmem:[#allocation7 + $0xc50] sm:$0xff]
    %v663 = vld [vmem:[#allocation7 + $0xc58] sm:$0xff]
    %v664 = vld [vmem:[#allocation7 + $0xc60] sm:$0xff]
    %v665 = vld [vmem:[#allocation7 + $0xc68] sm:$0xff]
    %v666 = vld [vmem:[#allocation7 + $0xc70] sm:$0xff]
    %v667 = vld [vmem:[#allocation7 + $0xc78] sm:$0xff]
    %v668 = vld [vmem:[#allocation7 + $0xc80] sm:$0xff]
    %v669 = vld [vmem:[#allocation7 + $0xc88] sm:$0xff]
    %v670 = vld [vmem:[#allocation7 + $0xc90] sm:$0xff]
    %v671 = vld [vmem:[#allocation7 + $0xc98] sm:$0xff]
    %v672 = vld [vmem:[#allocation7 + $0xca0] sm:$0xff]
    %v673 = vld [vmem:[#allocation7 + $0xca8] sm:$0xff]
    %v674 = vld [vmem:[#allocation7 + $0xcb0] sm:$0xff]
    %v675 = vld [vmem:[#allocation7 + $0xcb8] sm:$0xff]
    %v676 = vld [vmem:[#allocation7 + $0xcc0] sm:$0xff]
    %v677 = vld [vmem:[#allocation7 + $0xcc8] sm:$0xff]
    %v678 = vld [vmem:[#allocation7 + $0xcd0] sm:$0xff]
    %v679 = vld [vmem:[#allocation7 + $0xcd8] sm:$0xff]
    %v680 = vld [vmem:[#allocation7 + $0xce0] sm:$0xff]
    %v681 = vld [vmem:[#allocation7 + $0xce8] sm:$0xff]
    %v682 = vld [vmem:[#allocation7 + $0xcf0] sm:$0xff]
    %v683 = vld [vmem:[#allocation7 + $0xcf8] sm:$0xff]
    %v684 = vld [vmem:[#allocation7 + $0xd00] sm:$0xff]
    %v685 = vld [vmem:[#allocation7 + $0xd08] sm:$0xff]
    %v686 = vld [vmem:[#allocation7 + $0xd10] sm:$0xff]
    %v687 = vld [vmem:[#allocation7 + $0xd18] sm:$0xff]
    %v688 = vld [vmem:[#allocation7 + $0xd20] sm:$0xff]
    %v689 = vld [vmem:[#allocation7 + $0xd28] sm:$0xff]
    %v690 = vld [vmem:[#allocation7 + $0xd30] sm:$0xff]
    %v691 = vld [vmem:[#allocation7 + $0xd38] sm:$0xff]
    %v692 = vld [vmem:[#allocation7 + $0xd40] sm:$0xff]
    %v693 = vld [vmem:[#allocation7 + $0xd48] sm:$0xff]
    %v694 = vld [vmem:[#allocation7 + $0xd50] sm:$0xff]
    %v695 = vld [vmem:[#allocation7 + $0xd58] sm:$0xff]
    %v696 = vld [vmem:[#allocation7 + $0xd60] sm:$0xff]
    %v697 = vld [vmem:[#allocation7 + $0xd68] sm:$0xff]
    %v698 = vld [vmem:[#allocation7 + $0xd70] sm:$0xff]
    %v699 = vld [vmem:[#allocation7 + $0xd78] sm:$0xff]
    %v700 = vld [vmem:[#allocation7 + $0xd80] sm:$0xff]
    %v701 = vld [vmem:[#allocation7 + $0xd88] sm:$0xff]
    %v702 = vld [vmem:[#allocation7 + $0xd90] sm:$0xff]
    %v703 = vld [vmem:[#allocation7 + $0xd98] sm:$0xff]
    %v704 = vld [vmem:[#allocation7 + $0xda0] sm:$0xff]
    %v705 = vld [vmem:[#allocation7 + $0xda8] sm:$0xff]
    %v706 = vld [vmem:[#allocation7 + $0xdb0] sm:$0xff]
    %v707 = vld [vmem:[#allocation7 + $0xdb8] sm:$0xff]
    %v708 = vld [vmem:[#allocation7 + $0xdc0] sm:$0xff]
    %v709 = vld [vmem:[#allocation7 + $0xdc8] sm:$0xff]
    %v710 = vld [vmem:[#allocation7 + $0xdd0] sm:$0xff]
    %v711 = vld [vmem:[#allocation7 + $0xdd8] sm:$0xff]
    %v712 = vld [vmem:[#allocation7 + $0xde0] sm:$0xff]
    %v713 = vld [vmem:[#allocation7 + $0xde8] sm:$0xff]
    %v714 = vld [vmem:[#allocation7 + $0xdf0] sm:$0xff]
    %v715 = vld [vmem:[#allocation7 + $0xdf8] sm:$0xff]
    %v716 = vld [vmem:[#allocation7 + $0xe00] sm:$0xff]
    %v717 = vld [vmem:[#allocation7 + $0xe08] sm:$0xff]
    %v718 = vld [vmem:[#allocation7 + $0xe10] sm:$0xff]
    %v719 = vld [vmem:[#allocation7 + $0xe18] sm:$0xff]
    %v720 = vld [vmem:[#allocation7 + $0xe20] sm:$0xff]
    %v721 = vld [vmem:[#allocation7 + $0xe28] sm:$0xff]
    %v722 = vld [vmem:[#allocation7 + $0xe30] sm:$0xff]
    %v723 = vld [vmem:[#allocation7 + $0xe38] sm:$0xff]
    %v724 = vld [vmem:[#allocation7 + $0xe40] sm:$0xff]
    %v725 = vld [vmem:[#allocation7 + $0xe48] sm:$0xff]
    %v726 = vld [vmem:[#allocation7 + $0xe50] sm:$0xff]
    %v727 = vld [vmem:[#allocation7 + $0xe58] sm:$0xff]
    %v728 = vld [vmem:[#allocation7 + $0xe60] sm:$0xff]
    %v729 = vld [vmem:[#allocation7 + $0xe68] sm:$0xff]
    %v730 = vld [vmem:[#allocation7 + $0xe70] sm:$0xff]
    %v731 = vld [vmem:[#allocation7 + $0xe78] sm:$0xff]
    %v732 = vld [vmem:[#allocation7 + $0xe80] sm:$0xff]
    %v733 = vld [vmem:[#allocation7 + $0xe88] sm:$0xff]
    %v734 = vld [vmem:[#allocation7 + $0xe90] sm:$0xff]
    %v735 = vld [vmem:[#allocation7 + $0xe98] sm:$0xff]
    %v736 = vld [vmem:[#allocation7 + $0xea0] sm:$0xff]
    %v737 = vld [vmem:[#allocation7 + $0xea8] sm:$0xff]
    %v738 = vld [vmem:[#allocation7 + $0xeb0] sm:$0xff]
    %v739 = vld [vmem:[#allocation7 + $0xeb8] sm:$0xff]
    %v740 = vld [vmem:[#allocation7 + $0xec0] sm:$0xff]
    %v741 = vld [vmem:[#allocation7 + $0xec8] sm:$0xff]
    %v742 = vld [vmem:[#allocation7 + $0xed0] sm:$0xff]
    %v743 = vld [vmem:[#allocation7 + $0xed8] sm:$0xff]
    %v744 = vld [vmem:[#allocation7 + $0xee0] sm:$0xff]
    %v745 = vld [vmem:[#allocation7 + $0xee8] sm:$0xff]
    %v746 = vld [vmem:[#allocation7 + $0xef0] sm:$0xff]
    %v747 = vld [vmem:[#allocation7 + $0xef8] sm:$0xff]
    %v748 = vld [vmem:[#allocation7 + $0xf00] sm:$0xff]
    %v749 = vld [vmem:[#allocation7 + $0xf08] sm:$0xff]
    %v750 = vld [vmem:[#allocation7 + $0xf10] sm:$0xff]
    %v751 = vld [vmem:[#allocation7 + $0xf18] sm:$0xff]
    %v752 = vld [vmem:[#allocation7 + $0xf20] sm:$0xff]
    %v753 = vld [vmem:[#allocation7 + $0xf28] sm:$0xff]
    %v754 = vld [vmem:[#allocation7 + $0xf30] sm:$0xff]
    %v755 = vld [vmem:[#allocation7 + $0xf38] sm:$0xff]
    %v756 = vld [vmem:[#allocation7 + $0xf40] sm:$0xff]
    %v757 = vld [vmem:[#allocation7 + $0xf48] sm:$0xff]
    %v758 = vld [vmem:[#allocation7 + $0xf50] sm:$0xff]
    %v759 = vld [vmem:[#allocation7 + $0xf58] sm:$0xff]
    %v760 = vld [vmem:[#allocation7 + $0xf60] sm:$0xff]
    %v761 = vld [vmem:[#allocation7 + $0xf68] sm:$0xff]
    %v762 = vld [vmem:[#allocation7 + $0xf70] sm:$0xff]
    %v763 = vld [vmem:[#allocation7 + $0xf78] sm:$0xff]
    %v764 = vld [vmem:[#allocation7 + $0xf80] sm:$0xff]
    %v765 = vld [vmem:[#allocation7 + $0xf88] sm:$0xff]
    %v766 = vld [vmem:[#allocation7 + $0xf90] sm:$0xff]
    %v767 = vld [vmem:[#allocation7 + $0xf98] sm:$0xff]
    %v768 = vld [vmem:[#allocation7 + $0xfa0] sm:$0xff]
    %v769 = vld [vmem:[#allocation7 + $0xfa8] sm:$0xff]
    %v770 = vld [vmem:[#allocation7 + $0xfb0] sm:$0xff]
    %v771 = vld [vmem:[#allocation7 + $0xfb8] sm:$0xff]
    %v772 = vld [vmem:[#allocation7 + $0xfc0] sm:$0xff]
    %v773 = vld [vmem:[#allocation7 + $0xfc8] sm:$0xff]
    %v774 = vld [vmem:[#allocation7 + $0xfd0] sm:$0xff]
    %v775 = vld [vmem:[#allocation7 + $0xfd8] sm:$0xff]
    %v776 = vld [vmem:[#allocation7 + $0xfe0] sm:$0xff]
    %v777 = vld [vmem:[#allocation7 + $0xfe8] sm:$0xff]
    %v778 = vld [vmem:[#allocation7 + $0xff0] sm:$0xff]
    %v779 = vld [vmem:[#allocation7 + $0xff8] sm:$0xff]
    %v780 = vld [vmem:[#allocation7 + $0x1000] sm:$0xff]
    %v781 = vld [vmem:[#allocation7 + $0x1008] sm:$0xff]
    %v782 = vld [vmem:[#allocation7 + $0x1010] sm:$0xff]
    %v783 = vld [vmem:[#allocation7 + $0x1018] sm:$0xff]
    %v784 = vld [vmem:[#allocation7 + $0x1020] sm:$0xff]
    %v785 = vld [vmem:[#allocation7 + $0x1028] sm:$0xff]
    %v786 = vld [vmem:[#allocation7 + $0x1030] sm:$0xff]
    %v787 = vld [vmem:[#allocation7 + $0x1038] sm:$0xff]
    %v788 = vld [vmem:[#allocation7 + $0x1040] sm:$0xff]
    %v789 = vld [vmem:[#allocation7 + $0x1048] sm:$0xff]
    %v790 = vld [vmem:[#allocation7 + $0x1050] sm:$0xff]
    %v791 = vld [vmem:[#allocation7 + $0x1058] sm:$0xff]
    %v792 = vld [vmem:[#allocation7 + $0x1060] sm:$0xff]
    %v793 = vld [vmem:[#allocation7 + $0x1068] sm:$0xff]
    %v794 = vld [vmem:[#allocation7 + $0x1070] sm:$0xff]
    %v795 = vld [vmem:[#allocation7 + $0x1078] sm:$0xff]
    %v796 = vld [vmem:[#allocation7 + $0x1080] sm:$0xff]
    %v797 = vld [vmem:[#allocation7 + $0x1088] sm:$0xff]
    %v798 = vld [vmem:[#allocation7 + $0x1090] sm:$0xff]
    %v799 = vld [vmem:[#allocation7 + $0x1098] sm:$0xff]
    %v800 = vld [vmem:[#allocation7 + $0x10a0] sm:$0xff]
    %v801 = vld [vmem:[#allocation7 + $0x10a8] sm:$0xff]
    %v802 = vld [vmem:[#allocation7 + $0x10b0] sm:$0xff]
    %v803 = vld [vmem:[#allocation7 + $0x10b8] sm:$0xff]
    %v804 = vld [vmem:[#allocation7 + $0x10c0] sm:$0xff]
    %v805 = vld [vmem:[#allocation7 + $0x10c8] sm:$0xff]
    %v806 = vld [vmem:[#allocation7 + $0x10d0] sm:$0xff]
    %v807 = vld [vmem:[#allocation7 + $0x10d8] sm:$0xff]
    %v808 = vld [vmem:[#allocation7 + $0x10e0] sm:$0xff]
    %v809 = vld [vmem:[#allocation7 + $0x10e8] sm:$0xff]
    %v810 = vld [vmem:[#allocation7 + $0x10f0] sm:$0xff]
    %v811 = vld [vmem:[#allocation7 + $0x10f8] sm:$0xff]
    %v812 = vld [vmem:[#allocation7 + $0x1100] sm:$0xff]
    %v813 = vld [vmem:[#allocation7 + $0x1108] sm:$0xff]
    %v814 = vld [vmem:[#allocation7 + $0x1110] sm:$0xff]
    %v815 = vld [vmem:[#allocation7 + $0x1118] sm:$0xff]
    %v816 = vld [vmem:[#allocation7 + $0x1120] sm:$0xff]
    %v817 = vld [vmem:[#allocation7 + $0x1128] sm:$0xff]
    %v818 = vld [vmem:[#allocation7 + $0x1130] sm:$0xff]
    %v819 = vld [vmem:[#allocation7 + $0x1138] sm:$0xff]
    %v820 = vld [vmem:[#allocation7 + $0x1140] sm:$0xff]
    %v821 = vld [vmem:[#allocation7 + $0x1148] sm:$0xff]
    %v822 = vld [vmem:[#allocation7 + $0x1150] sm:$0xff]
    %v823 = vld [vmem:[#allocation7 + $0x1158] sm:$0xff]
    %v824 = vld [vmem:[#allocation7 + $0x1160] sm:$0xff]
    %v825 = vld [vmem:[#allocation7 + $0x1168] sm:$0xff]
    %v826 = vld [vmem:[#allocation7 + $0x1170] sm:$0xff]
    %v827 = vld [vmem:[#allocation7 + $0x1178] sm:$0xff]
    %v828 = vld [vmem:[#allocation7 + $0x1180] sm:$0xff]
    %v829 = vld [vmem:[#allocation7 + $0x1188] sm:$0xff]
    %v830 = vld [vmem:[#allocation7 + $0x1190] sm:$0xff]
    %v831 = vld [vmem:[#allocation7 + $0x1198] sm:$0xff]
    %v832 = vld [vmem:[#allocation7 + $0x11a0] sm:$0xff]
    %v833 = vld [vmem:[#allocation7 + $0x11a8] sm:$0xff]
    %v834 = vld [vmem:[#allocation7 + $0x11b0] sm:$0xff]
    %v835 = vld [vmem:[#allocation7 + $0x11b8] sm:$0xff]
    %v836 = vld [vmem:[#allocation7 + $0x11c0] sm:$0xff]
    %v837 = vld [vmem:[#allocation7 + $0x11c8] sm:$0xff]
    %v838 = vld [vmem:[#allocation7 + $0x11d0] sm:$0xff]
    %v839 = vld [vmem:[#allocation7 + $0x11d8] sm:$0xff]
    %v840 = vld [vmem:[#allocation7 + $0x11e0] sm:$0xff]
    %v841 = vld [vmem:[#allocation7 + $0x11e8] sm:$0xff]
    %v842 = vld [vmem:[#allocation7 + $0x11f0] sm:$0xff]
    %v843 = vld [vmem:[#allocation7 + $0x11f8] sm:$0xff]
    %v844 = vld [vmem:[#allocation7 + $0x1200] sm:$0xff]
    %v845 = vld [vmem:[#allocation7 + $0x1208] sm:$0xff]
    %v846 = vld [vmem:[#allocation7 + $0x1210] sm:$0xff]
    %v847 = vld [vmem:[#allocation7 + $0x1218] sm:$0xff]
    %v848 = vld [vmem:[#allocation7 + $0x1220] sm:$0xff]
    %v849 = vld [vmem:[#allocation7 + $0x1228] sm:$0xff]
    %v850 = vld [vmem:[#allocation7 + $0x1230] sm:$0xff]
    %v851 = vld [vmem:[#allocation7 + $0x1238] sm:$0xff]
    %v852 = vld [vmem:[#allocation7 + $0x1240] sm:$0xff]
    %v853 = vld [vmem:[#allocation7 + $0x1248] sm:$0xff]
    %v854 = vld [vmem:[#allocation7 + $0x1250] sm:$0xff]
    %v855 = vld [vmem:[#allocation7 + $0x1258] sm:$0xff]
    %v856 = vld [vmem:[#allocation7 + $0x1260] sm:$0xff]
    %v857 = vld [vmem:[#allocation7 + $0x1268] sm:$0xff]
    %v858 = vld [vmem:[#allocation7 + $0x1270] sm:$0xff]
    %v859 = vld [vmem:[#allocation7 + $0x1278] sm:$0xff]
    %v860 = vld [vmem:[#allocation7 + $0x1280] sm:$0xff]
    %v861 = vld [vmem:[#allocation7 + $0x1288] sm:$0xff]
    %v862 = vld [vmem:[#allocation7 + $0x1290] sm:$0xff]
    %v863 = vld [vmem:[#allocation7 + $0x1298] sm:$0xff]
    %v864 = vld [vmem:[#allocation7 + $0x12a0] sm:$0xff]
    %v865 = vld [vmem:[#allocation7 + $0x12a8] sm:$0xff]
    %v866 = vld [vmem:[#allocation7 + $0x12b0] sm:$0xff]
    %v867 = vld [vmem:[#allocation7 + $0x12b8] sm:$0xff]
    %v868 = vld [vmem:[#allocation7 + $0x12c0] sm:$0xff]
    %v869 = vld [vmem:[#allocation7 + $0x12c8] sm:$0xff]
    %v870 = vld [vmem:[#allocation7 + $0x12d0] sm:$0xff]
    %v871 = vld [vmem:[#allocation7 + $0x12d8] sm:$0xff]
    %v872 = vld [vmem:[#allocation7 + $0x12e0] sm:$0xff]
    %v873 = vld [vmem:[#allocation7 + $0x12e8] sm:$0xff]
    %v874 = vld [vmem:[#allocation7 + $0x12f0] sm:$0xff]
    %v875 = vld [vmem:[#allocation7 + $0x12f8] sm:$0xff]
    %v876 = vld [vmem:[#allocation7 + $0x1300] sm:$0xff]
    %v877 = vld [vmem:[#allocation7 + $0x1308] sm:$0xff]
    %v878 = vld [vmem:[#allocation7 + $0x1310] sm:$0xff]
    %v879 = vld [vmem:[#allocation7 + $0x1318] sm:$0xff]
    %v880 = vld [vmem:[#allocation7 + $0x1320] sm:$0xff]
    %v881 = vld [vmem:[#allocation7 + $0x1328] sm:$0xff]
    %v882 = vld [vmem:[#allocation7 + $0x1330] sm:$0xff]
    %v883 = vld [vmem:[#allocation7 + $0x1338] sm:$0xff]
    %v884 = vld [vmem:[#allocation7 + $0x1340] sm:$0xff]
    %v885 = vld [vmem:[#allocation7 + $0x1348] sm:$0xff]
    %v886 = vld [vmem:[#allocation7 + $0x1350] sm:$0xff]
    %v887 = vld [vmem:[#allocation7 + $0x1358] sm:$0xff]
    %v888 = vld [vmem:[#allocation7 + $0x1360] sm:$0xff]
    %v889 = vld [vmem:[#allocation7 + $0x1368] sm:$0xff]
    %v890 = vld [vmem:[#allocation7 + $0x1370] sm:$0xff]
    %v891 = vld [vmem:[#allocation7 + $0x1378] sm:$0xff]
    %v892 = vld [vmem:[#allocation7 + $0x1380] sm:$0xff]
    %v893 = vld [vmem:[#allocation7 + $0x1388] sm:$0xff]
    %v894 = vld [vmem:[#allocation7 + $0x1390] sm:$0xff]
    %v895 = vld [vmem:[#allocation7 + $0x1398] sm:$0xff]
    %v896 = vld [vmem:[#allocation7 + $0x13a0] sm:$0xff]
    %v897 = vld [vmem:[#allocation7 + $0x13a8] sm:$0xff]
    %v898 = vld [vmem:[#allocation7 + $0x13b0] sm:$0xff]
    %v899 = vld [vmem:[#allocation7 + $0x13b8] sm:$0xff]
    %v900 = vld [vmem:[#allocation7 + $0x13c0] sm:$0xff]
    %v901 = vld [vmem:[#allocation7 + $0x13c8] sm:$0xff]
    %v902 = vld [vmem:[#allocation7 + $0x13d0] sm:$0xff]
    %v903 = vld [vmem:[#allocation7 + $0x13d8] sm:$0xff]
    %v904 = vld [vmem:[#allocation7 + $0x13e0] sm:$0xff]
    %v905 = vld [vmem:[#allocation7 + $0x13e8] sm:$0xff]
    %v906 = vld [vmem:[#allocation7 + $0x13f0] sm:$0xff]
    %v907 = vld [vmem:[#allocation7 + $0x13f8] sm:$0xff]
    %v908 = vld [vmem:[#allocation7 + $0x1400] sm:$0xff]
    %v909 = vld [vmem:[#allocation7 + $0x1408] sm:$0xff]
    %v910 = vld [vmem:[#allocation7 + $0x1410] sm:$0xff]
    %v911 = vld [vmem:[#allocation7 + $0x1418] sm:$0xff]
    %v912 = vld [vmem:[#allocation7 + $0x1420] sm:$0xff]
    %v913 = vld [vmem:[#allocation7 + $0x1428] sm:$0xff]
    %v914 = vld [vmem:[#allocation7 + $0x1430] sm:$0xff]
    %v915 = vld [vmem:[#allocation7 + $0x1438] sm:$0xff]
    %v916 = vld [vmem:[#allocation7 + $0x1440] sm:$0xff]
    %v917 = vld [vmem:[#allocation7 + $0x1448] sm:$0xff]
    %v918 = vld [vmem:[#allocation7 + $0x1450] sm:$0xff]
    %v919 = vld [vmem:[#allocation7 + $0x1458] sm:$0xff]
    %v920 = vld [vmem:[#allocation7 + $0x1460] sm:$0xff]
    %v921 = vld [vmem:[#allocation7 + $0x1468] sm:$0xff]
    %v922 = vld [vmem:[#allocation7 + $0x1470] sm:$0xff]
    %v923 = vld [vmem:[#allocation7 + $0x1478] sm:$0xff]
    %v924 = vld [vmem:[#allocation7 + $0x1480] sm:$0xff]
    %v925 = vld [vmem:[#allocation7 + $0x1488] sm:$0xff]
    %v926 = vld [vmem:[#allocation7 + $0x1490] sm:$0xff]
    %v927 = vld [vmem:[#allocation7 + $0x1498] sm:$0xff]
    %v928 = vld [vmem:[#allocation7 + $0x14a0] sm:$0xff]
    %v929 = vld [vmem:[#allocation7 + $0x14a8] sm:$0xff]
    %v930 = vld [vmem:[#allocation7 + $0x14b0] sm:$0xff]
    %v931 = vld [vmem:[#allocation7 + $0x14b8] sm:$0xff]
    %v932 = vld [vmem:[#allocation7 + $0x14c0] sm:$0xff]
    %v933 = vld [vmem:[#allocation7 + $0x14c8] sm:$0xff]
    %v934 = vld [vmem:[#allocation7 + $0x14d0] sm:$0xff]
    %v935 = vld [vmem:[#allocation7 + $0x14d8] sm:$0xff]
    %v936 = vld [vmem:[#allocation7 + $0x14e0] sm:$0xff]
    %v937 = vld [vmem:[#allocation7 + $0x14e8] sm:$0xff]
    %v938 = vld [vmem:[#allocation7 + $0x14f0] sm:$0xff]
    %v939 = vld [vmem:[#allocation7 + $0x14f8] sm:$0xff]
    %v940 = vld [vmem:[#allocation7 + $0x1500] sm:$0xff]
    %v941 = vld [vmem:[#allocation7 + $0x1508] sm:$0xff]
    %v942 = vld [vmem:[#allocation7 + $0x1510] sm:$0xff]
    %v943 = vld [vmem:[#allocation7 + $0x1518] sm:$0xff]
    %v944 = vld [vmem:[#allocation7 + $0x1520] sm:$0xff]
    %v945 = vld [vmem:[#allocation7 + $0x1528] sm:$0xff]
    %v946 = vld [vmem:[#allocation7 + $0x1530] sm:$0xff]
    %v947 = vld [vmem:[#allocation7 + $0x1538] sm:$0xff]
    %v948 = vld [vmem:[#allocation7 + $0x1540] sm:$0xff]
    %v949 = vld [vmem:[#allocation7 + $0x1548] sm:$0xff]
    %v950 = vld [vmem:[#allocation7 + $0x1550] sm:$0xff]
    %v951 = vld [vmem:[#allocation7 + $0x1558] sm:$0xff]
    %v952 = vld [vmem:[#allocation7 + $0x1560] sm:$0xff]
    %v953 = vld [vmem:[#allocation7 + $0x1568] sm:$0xff]
    %v954 = vld [vmem:[#allocation7 + $0x1570] sm:$0xff]
    %v955 = vld [vmem:[#allocation7 + $0x1578] sm:$0xff]
    %v956 = vld [vmem:[#allocation7 + $0x1580] sm:$0xff]
    %v957 = vld [vmem:[#allocation7 + $0x1588] sm:$0xff]
    %v958 = vld [vmem:[#allocation7 + $0x1590] sm:$0xff]
    %v959 = vld [vmem:[#allocation7 + $0x1598] sm:$0xff]
    %v960 = vld [vmem:[#allocation7 + $0x15a0] sm:$0xff]
    %v961 = vld [vmem:[#allocation7 + $0x15a8] sm:$0xff]
    %v962 = vld [vmem:[#allocation7 + $0x15b0] sm:$0xff]
    %v963 = vld [vmem:[#allocation7 + $0x15b8] sm:$0xff]
    %v964 = vld [vmem:[#allocation7 + $0x15c0] sm:$0xff]
    %v965 = vld [vmem:[#allocation7 + $0x15c8] sm:$0xff]
    %v966 = vld [vmem:[#allocation7 + $0x15d0] sm:$0xff]
    %v967 = vld [vmem:[#allocation7 + $0x15d8] sm:$0xff]
    %v968 = vld [vmem:[#allocation7 + $0x15e0] sm:$0xff]
    %v969 = vld [vmem:[#allocation7 + $0x15e8] sm:$0xff]
    %v970 = vld [vmem:[#allocation7 + $0x15f0] sm:$0xff]
    %v971 = vld [vmem:[#allocation7 + $0x15f8] sm:$0xff]
    %v972 = vld [vmem:[#allocation7 + $0x1600] sm:$0xff]
    %v973 = vld [vmem:[#allocation7 + $0x1608] sm:$0xff]
    %v974 = vld [vmem:[#allocation7 + $0x1610] sm:$0xff]
    %v975 = vld [vmem:[#allocation7 + $0x1618] sm:$0xff]
    %v976 = vld [vmem:[#allocation7 + $0x1620] sm:$0xff]
    %v977 = vld [vmem:[#allocation7 + $0x1628] sm:$0xff]
    %v978 = vld [vmem:[#allocation7 + $0x1630] sm:$0xff]
    %v979 = vld [vmem:[#allocation7 + $0x1638] sm:$0xff]
    %v980 = vld [vmem:[#allocation7 + $0x1640] sm:$0xff]
    %v981 = vld [vmem:[#allocation7 + $0x1648] sm:$0xff]
    %v982 = vld [vmem:[#allocation7 + $0x1650] sm:$0xff]
    %v983 = vld [vmem:[#allocation7 + $0x1658] sm:$0xff]
    %v984 = vld [vmem:[#allocation7 + $0x1660] sm:$0x1]
    %v985 = vld [vmem:[#allocation7 + $0x1668] sm:$0x1]
    %v986 = vld [vmem:[#allocation7 + $0x1670] sm:$0x1]
    %v987 = vld [vmem:[#allocation7 + $0x1678] sm:$0x1]
    %vm988 = vcmask 203776
    %v990 = vsel %vm988, %v183, 0
    %v993 = vsel %vm988, %v195, 0
    %v996 = vsel %vm988, %v207, 0
    %v999 = vsel %vm988, %v219, 0
    %v1002 = vsel %vm988, %v231, 0
    %v1005 = vsel %vm988, %v243, 0
    %v1008 = vsel %vm988, %v255, 0
    %v1011 = vsel %vm988, %v267, 0
    %vm1013 = vcmask 1040384
    %v1015 = vsel %vm1013, %v984, 0
    %v1018 = vsel %vm1013, %v985, 0
    %v1021 = vsel %vm1013, %v986, 0
    %v1024 = vsel %vm1013, %v987, 0
    %1026 = vmatprep.subr.mxu0 %v269
    %1027 = vmatpush1.msra.mxu0 %v268
    %1028 = vmatprep.subr.mxu0 %v273
    %1029 = vmatpush1.msra.mxu0 %v272
    %1030 = vmatprep.subr.mxu0 %v277
    %1031 = vmatpush1.msra.mxu0 %v276
    %1032 = vmatprep.subr.mxu0 %v281
    %1033 = vmatpush1.msra.mxu0 %v280
    %1034 = vmatprep.subr.mxu0 %v285
    %1035 = vmatpush1.msra.mxu0 %v284
    %1036 = vmatprep.subr.mxu0 %v289
    %1037 = vmatpush1.msra.mxu0 %v288
    %1038 = vmatprep.subr.mxu0 %v293
    %1039 = vmatpush1.msra.mxu0 %v292
    %1040 = vmatprep.subr.mxu0 %v297
    %1041 = vmatpush1.msra.mxu0 %v296
    %1042 = vmatprep.subr.mxu0 %v301
    %1043 = vmatpush1.msra.mxu0 %v300
    %1044 = vmatprep.subr.mxu0 %v305
    %1045 = vmatpush1.msra.mxu0 %v304
    %1046 = vmatprep.subr.mxu0 %v309
    %1047 = vmatpush1.msra.mxu0 %v308
    %1048 = vmatprep.subr.mxu0 %v313
    %1049 = vmatpush1.msra.mxu0 %v312
    %1050 = vmatprep.subr.mxu0 %v317
    %1051 = vmatpush1.msra.mxu0 %v316
    %1052 = vmatprep.subr.mxu0 %v321
    %1053 = vmatpush1.msra.mxu0 %v320
    %1054 = vmatprep.subr.mxu0 %v325
    %1055 = vmatpush1.msra.mxu0 %v324
    %1056 = vmatprep.subr.mxu0 %v329
    %1057 = vmatpush1.msra.mxu0 %v328
    %1058 = vmatprep.subr.mxu0 %v333
    %1059 = vmatpush1.msra.mxu0 %v332
    %1060 = vmatprep.subr.mxu0 %v337
    %1061 = vmatpush1.msra.mxu0 %v336
    %1062 = vmatprep.subr.mxu0 %v341
    %1063 = vmatpush1.msra.mxu0 %v340
    %1064 = vmatprep.subr.mxu0 %v345
    %1065 = vmatpush1.msra.mxu0 %v344
    %1066 = vmatprep.subr.mxu0 %v349
    %1067 = vmatpush1.msra.mxu0 %v348
    %1068 = vmatprep.subr.mxu0 %v353
    %1069 = vmatpush1.msra.mxu0 %v352
    %1070 = vmatprep.subr.mxu0 %v357
    %1071 = vmatpush1.msra.mxu0 %v356
    %1072 = vmatprep.subr.mxu0 %v361
    %1073 = vmatpush1.msra.mxu0 %v360
    %1074 = vmatprep.subr.mxu0 %v365
    %1075 = vmatpush1.msra.mxu0 %v364
    %1076 = vmatprep.subr.mxu0 %v369
    %1077 = vmatpush1.msra.mxu0 %v368
    %1078 = vmatprep.subr.mxu0 %v373
    %1079 = vmatpush1.msra.mxu0 %v372
    %1080 = vmatprep.subr.mxu0 %v377
    %1081 = vmatpush1.msra.mxu0 %v376
    %1082 = vmatprep.subr.mxu0 %v381
    %1083 = vmatpush1.msra.mxu0 %v380
    %1084 = vmatprep.subr.mxu0 %v385
    %1085 = vmatpush1.msra.mxu0 %v384
    %1086 = vmatprep.subr.mxu0 %v389
    %1087 = vmatpush1.msra.mxu0 %v388
    %1088 = vmatprep.subr.mxu0 %v393
    %1089 = vmatpush1.msra.mxu0 %v392
    %1090 = vmatprep.mubr.f32.mxu0 %v173
    %1091 = vmatmul.mubr.f32.gmra.mrb[0].mxu0 %v172
    %v1092 = vpop.f32.mrb[0].mxu0
    %v1093 = vadd.f32 0.0, %v1092
    %v1094 = vpop.f32.mrb[0].mxu0
    %v1095 = vadd.f32 0.0, %v1094
    %1096 = vmatprep.mubr.f32.mxu0 %v185
    %1097 = vmatmul.mubr.f32.gmra.mrb[0].mxu0 %v184
    %v1098 = vpop.f32.mrb[0].mxu0
    %v1099 = vadd.f32 0.0, %v1098
    %v1100 = vpop.f32.mrb[0].mxu0
    %v1101 = vadd.f32 0.0, %v1100
    %1102 = vmatprep.mubr.f32.mxu0 %v197
    %1103 = vmatmul.mubr.f32.gmra.mrb[0].mxu0 %v196
    %v1104 = vpop.f32.mrb[0].mxu0
    %v1105 = vadd.f32 0.0, %v1104
    %v1106 = vpop.f32.mrb[0].mxu0
    %v1107 = vadd.f32 0.0, %v1106
    %1108 = vmatprep.mubr.f32.mxu0 %v209
    %1109 = vmatmul.mubr.f32.gmra.mrb[0].mxu0 %v208
    %v1110 = vpop.f32.mrb[0].mxu0
    %v1111 = vadd.f32 0.0, %v1110
    %v1112 = vpop.f32.mrb[0].mxu0
    %v1113 = vadd.f32 0.0, %v1112
    %1114 = vmatprep.mubr.f32.mxu0 %v221
    %1115 = vmatmul.mubr.f32.gmra.mrb[0].mxu0 %v220
    %v1116 = vpop.f32.mrb[0].mxu0
    %v1117 = vadd.f32 0.0, %v1116
    %v1118 = vpop.f32.mrb[0].mxu0
    %v1119 = vadd.f32 0.0, %v1118
    %1120 = vmatprep.mubr.f32.mxu0 %v233
    %1121 = vmatmul.mubr.f32.gmra.mrb[0].mxu0 %v232
    %v1122 = vpop.f32.mrb[0].mxu0
    %v1123 = vadd.f32 0.0, %v1122
    %v1124 = vpop.f32.mrb[0].mxu0
    %v1125 = vadd.f32 0.0, %v1124
    %1126 = vmatprep.mubr.f32.mxu0 %v245
    %1127 = vmatmul.mubr.f32.gmra.mrb[0].mxu0 %v244
    %v1128 = vpop.f32.mrb[0].mxu0
    %v1129 = vadd.f32 0.0, %v1128
    %v1130 = vpop.f32.mrb[0].mxu0
    %v1131 = vadd.f32 0.0, %v1130
    %1132 = vmatprep.mubr.f32.mxu0 %v257
    %1133 = vmatmul.mubr.f32.gmra.mrb[0].mxu0 %v256
    %v1134 = vpop.f32.mrb[0].mxu0
    %v1135 = vadd.f32 0.0, %v1134
    %v1136 = vpop.f32.mrb[0].mxu0
    %v1137 = vadd.f32 0.0, %v1136
    %1138 = vdwg.mxu0
    %1139 = vmatprep.subr.mxu0 %v397
    %1140 = vmatpush1.msra.mxu0 %v396
    %1141 = vmatprep.subr.mxu0 %v401
    %1142 = vmatpush1.msra.mxu0 %v400
    %1143 = vmatprep.subr.mxu0 %v405
    %1144 = vmatpush1.msra.mxu0 %v404
    %1145 = vmatprep.subr.mxu0 %v409
    %1146 = vmatpush1.msra.mxu0 %v408
    %1147 = vmatprep.subr.mxu0 %v413
    %1148 = vmatpush1.msra.mxu0 %v412
    %1149 = vmatprep.subr.mxu0 %v417
    %1150 = vmatpush1.msra.mxu0 %v416
    %1151 = vmatprep.subr.mxu0 %v421
    %1152 = vmatpush1.msra.mxu0 %v420
    %1153 = vmatprep.subr.mxu0 %v425
    %1154 = vmatpush1.msra.mxu0 %v424
    %1155 = vmatprep.subr.mxu0 %v429
    %1156 = vmatpush1.msra.mxu0 %v428
    %1157 = vmatprep.subr.mxu0 %v433
    %1158 = vmatpush1.msra.mxu0 %v432
    %1159 = vmatprep.subr.mxu0 %v437
    %1160 = vmatpush1.msra.mxu0 %v436
    %1161 = vmatprep.subr.mxu0 %v441
    %1162 = vmatpush1.msra.mxu0 %v440
    %1163 = vmatprep.subr.mxu0 %v445
    %1164 = vmatpush1.msra.mxu0 %v444
    %1165 = vmatprep.subr.mxu0 %v449
    %1166 = vmatpush1.msra.mxu0 %v448
    %1167 = vmatprep.subr.mxu0 %v453
    %1168 = vmatpush1.msra.mxu0 %v452
    %1169 = vmatprep.subr.mxu0 %v457
    %1170 = vmatpush1.msra.mxu0 %v456
    %1171 = vmatprep.subr.mxu0 %v461
    %1172 = vmatpush1.msra.mxu0 %v460
    %1173 = vmatprep.subr.mxu0 %v465
    %1174 = vmatpush1.msra.mxu0 %v464
    %1175 = vmatprep.subr.mxu0 %v469
    %1176 = vmatpush1.msra.mxu0 %v468
    %1177 = vmatprep.subr.mxu0 %v473
    %1178 = vmatpush1.msra.mxu0 %v472
    %1179 = vmatprep.subr.mxu0 %v477
    %1180 = vmatpush1.msra.mxu0 %v476
    %1181 = vmatprep.subr.mxu0 %v481
    %1182 = vmatpush1.msra.mxu0 %v480
    %1183 = vmatprep.subr.mxu0 %v485
    %1184 = vmatpush1.msra.mxu0 %v484
    %1185 = vmatprep.subr.mxu0 %v489
    %1186 = vmatpush1.msra.mxu0 %v488
    %1187 = vmatprep.subr.mxu0 %v493
    %1188 = vmatpush1.msra.mxu0 %v492
    %1189 = vmatprep.subr.mxu0 %v497
    %1190 = vmatpush1.msra.mxu0 %v496
    %1191 = vmatprep.subr.mxu0 %v501
    %1192 = vmatpush1.msra.mxu0 %v500
    %1193 = vmatprep.subr.mxu0 %v505
    %1194 = vmatpush1.msra.mxu0 %v504
    %1195 = vmatprep.subr.mxu0 %v509
    %1196 = vmatpush1.msra.mxu0 %v508
    %1197 = vmatprep.subr.mxu0 %v513
    %1198 = vmatpush1.msra.mxu0 %v512
    %1199 = vmatprep.subr.mxu0 %v517
    %1200 = vmatpush1.msra.mxu0 %v516
    %1201 = vmatprep.subr.mxu0 %v521
    %1202 = vmatpush1.msra.mxu0 %v520
    %1203 = vmatprep.mubr.f32.mxu0 %v175
    %1204 = vmatmul.mubr.f32.gmra.mrb[0].mxu0 %v174
    %v1205 = vpop.f32.mrb[0].mxu0
    %v1206 = vadd.f32 %v1093, %v1205
    %v1207 = vpop.f32.mrb[0].mxu0
    %v1208 = vadd.f32 %v1095, %v1207
    %1209 = vmatprep.mubr.f32.mxu0 %v187
    %1210 = vmatmul.mubr.f32.gmra.mrb[0].mxu0 %v186
    %v1211 = vpop.f32.mrb[0].mxu0
    %v1212 = vadd.f32 %v1099, %v1211
    %v1213 = vpop.f32.mrb[0].mxu0
    %v1214 = vadd.f32 %v1101, %v1213
    %1215 = vmatprep.mubr.f32.mxu0 %v199
    %1216 = vmatmul.mubr.f32.gmra.mrb[0].mxu0 %v198
    %v1217 = vpop.f32.mrb[0].mxu0
    %v1218 = vadd.f32 %v1105, %v1217
    %v1219 = vpop.f32.mrb[0].mxu0
    %v1220 = vadd.f32 %v1107, %v1219
    %1221 = vmatprep.mubr.f32.mxu0 %v211
    %1222 = vmatmul.mubr.f32.gmra.mrb[0].mxu0 %v210
    %v1223 = vpop.f32.mrb[0].mxu0
    %v1224 = vadd.f32 %v1111, %v1223
    %v1225 = vpop.f32.mrb[0].mxu0
    %v1226 = vadd.f32 %v1113, %v1225
    %1227 = vmatprep.mubr.f32.mxu0 %v223
    %1228 = vmatmul.mubr.f32.gmra.mrb[0].mxu0 %v222
    %v1229 = vpop.f32.mrb[0].mxu0
    %v1230 = vadd.f32 %v1117, %v1229
    %v1231 = vpop.f32.mrb[0].mxu0
    %v1232 = vadd.f32 %v1119, %v1231
    %1233 = vmatprep.mubr.f32.mxu0 %v235
    %1234 = vmatmul.mubr.f32.gmra.mrb[0].mxu0 %v234
    %v1235 = vpop.f32.mrb[0].mxu0
    %v1236 = vadd.f32 %v1123, %v1235
    %v1237 = vpop.f32.mrb[0].mxu0
    %v1238 = vadd.f32 %v1125, %v1237
    %1239 = vmatprep.mubr.f32.mxu0 %v247
    %1240 = vmatmul.mubr.f32.gmra.mrb[0].mxu0 %v246
    %v1241 = vpop.f32.mrb[0].mxu0
    %v1242 = vadd.f32 %v1129, %v1241
    %v1243 = vpop.f32.mrb[0].mxu0
    %v1244 = vadd.f32 %v1131, %v1243
    %1245 = vmatprep.mubr.f32.mxu0 %v259
    %1246 = vmatmul.mubr.f32.gmra.mrb[0].mxu0 %v258
    %v1247 = vpop.f32.mrb[0].mxu0
    %v1248 = vadd.f32 %v1135, %v1247
    %v1249 = vpop.f32.mrb[0].mxu0
    %v1250 = vadd.f32 %v1137, %v1249
    %1251 = vdwg.mxu0
    %1252 = vmatprep.subr.mxu0 %v525
    %1253 = vmatpush1.msra.mxu0 %v524
    %1254 = vmatprep.subr.mxu0 %v529
    %1255 = vmatpush1.msra.mxu0 %v528
    %1256 = vmatprep.subr.mxu0 %v533
    %1257 = vmatpush1.msra.mxu0 %v532
    %1258 = vmatprep.subr.mxu0 %v537
    %1259 = vmatpush1.msra.mxu0 %v536
    %1260 = vmatprep.subr.mxu0 %v541
    %1261 = vmatpush1.msra.mxu0 %v540
    %1262 = vmatprep.subr.mxu0 %v545
    %1263 = vmatpush1.msra.mxu0 %v544
    %1264 = vmatprep.subr.mxu0 %v549
    %1265 = vmatpush1.msra.mxu0 %v548
    %1266 = vmatprep.subr.mxu0 %v553
    %1267 = vmatpush1.msra.mxu0 %v552
    %1268 = vmatprep.subr.mxu0 %v557
    %1269 = vmatpush1.msra.mxu0 %v556
    %1270 = vmatprep.subr.mxu0 %v561
    %1271 = vmatpush1.msra.mxu0 %v560
    %1272 = vmatprep.subr.mxu0 %v565
    %1273 = vmatpush1.msra.mxu0 %v564
    %1274 = vmatprep.subr.mxu0 %v569
    %1275 = vmatpush1.msra.mxu0 %v568
    %1276 = vmatprep.subr.mxu0 %v573
    %1277 = vmatpush1.msra.mxu0 %v572
    %1278 = vmatprep.subr.mxu0 %v577
    %1279 = vmatpush1.msra.mxu0 %v576
    %1280 = vmatprep.subr.mxu0 %v581
    %1281 = vmatpush1.msra.mxu0 %v580
    %1282 = vmatprep.subr.mxu0 %v585
    %1283 = vmatpush1.msra.mxu0 %v584
    %1284 = vmatprep.subr.mxu0 %v589
    %1285 = vmatpush1.msra.mxu0 %v588
    %1286 = vmatprep.subr.mxu0 %v593
    %1287 = vmatpush1.msra.mxu0 %v592
    %1288 = vmatprep.subr.mxu0 %v597
    %1289 = vmatpush1.msra.mxu0 %v596
    %1290 = vmatprep.subr.mxu0 %v601
    %1291 = vmatpush1.msra.mxu0 %v600
    %1292 = vmatprep.subr.mxu0 %v605
    %1293 = vmatpush1.msra.mxu0 %v604
    %1294 = vmatprep.subr.mxu0 %v609
    %1295 = vmatpush1.msra.mxu0 %v608
    %1296 = vmatprep.subr.mxu0 %v613
    %1297 = vmatpush1.msra.mxu0 %v612
    %1298 = vmatprep.subr.mxu0 %v617
    %1299 = vmatpush1.msra.mxu0 %v616
    %1300 = vmatprep.subr.mxu0 %v621
    %1301 = vmatpush1.msra.mxu0 %v620
    %1302 = vmatprep.subr.mxu0 %v625
    %1303 = vmatpush1.msra.mxu0 %v624
    %1304 = vmatprep.subr.mxu0 %v629
    %1305 = vmatpush1.msra.mxu0 %v628
    %1306 = vmatprep.subr.mxu0 %v633
    %1307 = vmatpush1.msra.mxu0 %v632
    %1308 = vmatprep.subr.mxu0 %v637
    %1309 = vmatpush1.msra.mxu0 %v636
    %1310 = vmatprep.subr.mxu0 %v641
    %1311 = vmatpush1.msra.mxu0 %v640
    %1312 = vmatprep.subr.mxu0 %v645
    %1313 = vmatpush1.msra.mxu0 %v644
    %1314 = vmatprep.subr.mxu0 %v649
    %1315 = vmatpush1.msra.mxu0 %v648
    %1316 = vmatprep.mubr.f32.mxu0 %v177
    %1317 = vmatmul.mubr.f32.gmra.mrb[0].mxu0 %v176
    %v1318 = vpop.f32.mrb[0].mxu0
    %v1319 = vadd.f32 %v1206, %v1318
    %v1320 = vpop.f32.mrb[0].mxu0
    %v1321 = vadd.f32 %v1208, %v1320
    %1322 = vmatprep.mubr.f32.mxu0 %v189
    %1323 = vmatmul.mubr.f32.gmra.mrb[0].mxu0 %v188
    %v1324 = vpop.f32.mrb[0].mxu0
    %v1325 = vadd.f32 %v1212, %v1324
    %v1326 = vpop.f32.mrb[0].mxu0
    %v1327 = vadd.f32 %v1214, %v1326
    %1328 = vmatprep.mubr.f32.mxu0 %v201
    %1329 = vmatmul.mubr.f32.gmra.mrb[0].mxu0 %v200
    %v1330 = vpop.f32.mrb[0].mxu0
    %v1331 = vadd.f32 %v1218, %v1330
    %v1332 = vpop.f32.mrb[0].mxu0
    %v1333 = vadd.f32 %v1220, %v1332
    %1334 = vmatprep.mubr.f32.mxu0 %v213
    %1335 = vmatmul.mubr.f32.gmra.mrb[0].mxu0 %v212
    %v1336 = vpop.f32.mrb[0].mxu0
    %v1337 = vadd.f32 %v1224, %v1336
    %v1338 = vpop.f32.mrb[0].mxu0
    %v1339 = vadd.f32 %v1226, %v1338
    %1340 = vmatprep.mubr.f32.mxu0 %v225
    %1341 = vmatmul.mubr.f32.gmra.mrb[0].mxu0 %v224
    %v1342 = vpop.f32.mrb[0].mxu0
    %v1343 = vadd.f32 %v1230, %v1342
    %v1344 = vpop.f32.mrb[0].mxu0
    %v1345 = vadd.f32 %v1232, %v1344
    %1346 = vmatprep.mubr.f32.mxu0 %v237
    %1347 = vmatmul.mubr.f32.gmra.mrb[0].mxu0 %v236
    %v1348 = vpop.f32.mrb[0].mxu0
    %v1349 = vadd.f32 %v1236, %v1348
    %v1350 = vpop.f32.mrb[0].mxu0
    %v1351 = vadd.f32 %v1238, %v1350
    %1352 = vmatprep.mubr.f32.mxu0 %v249
    %1353 = vmatmul.mubr.f32.gmra.mrb[0].mxu0 %v248
    %v1354 = vpop.f32.mrb[0].mxu0
    %v1355 = vadd.f32 %v1242, %v1354
    %v1356 = vpop.f32.mrb[0].mxu0
    %v1357 = vadd.f32 %v1244, %v1356
    %1358 = vmatprep.mubr.f32.mxu0 %v261
    %1359 = vmatmul.mubr.f32.gmra.mrb[0].mxu0 %v260
    %v1360 = vpop.f32.mrb[0].mxu0
    %v1361 = vadd.f32 %v1248, %v1360
    %v1362 = vpop.f32.mrb[0].mxu0
    %v1363 = vadd.f32 %v1250, %v1362
    %1364 = vdwg.mxu0
    %1365 = vmatprep.subr.mxu0 %v653
    %1366 = vmatpush1.msra.mxu0 %v652
    %1367 = vmatprep.subr.mxu0 %v657
    %1368 = vmatpush1.msra.mxu0 %v656
    %1369 = vmatprep.subr.mxu0 %v661
    %1370 = vmatpush1.msra.mxu0 %v660
    %1371 = vmatprep.subr.mxu0 %v665
    %1372 = vmatpush1.msra.mxu0 %v664
    %1373 = vmatprep.subr.mxu0 %v669
    %1374 = vmatpush1.msra.mxu0 %v668
    %1375 = vmatprep.subr.mxu0 %v673
    %1376 = vmatpush1.msra.mxu0 %v672
    %1377 = vmatprep.subr.mxu0 %v677
    %1378 = vmatpush1.msra.mxu0 %v676
    %1379 = vmatprep.subr.mxu0 %v681
    %1380 = vmatpush1.msra.mxu0 %v680
    %1381 = vmatprep.subr.mxu0 %v685
    %1382 = vmatpush1.msra.mxu0 %v684
    %1383 = vmatprep.subr.mxu0 %v689
    %1384 = vmatpush1.msra.mxu0 %v688
    %1385 = vmatprep.subr.mxu0 %v693
    %1386 = vmatpush1.msra.mxu0 %v692
    %1387 = vmatprep.subr.mxu0 %v697
    %1388 = vmatpush1.msra.mxu0 %v696
    %1389 = vmatprep.subr.mxu0 %v701
    %1390 = vmatpush1.msra.mxu0 %v700
    %1391 = vmatprep.subr.mxu0 %v705
    %1392 = vmatpush1.msra.mxu0 %v704
    %1393 = vmatprep.subr.mxu0 %v709
    %1394 = vmatpush1.msra.mxu0 %v708
    %1395 = vmatprep.subr.mxu0 %v713
    %1396 = vmatpush1.msra.mxu0 %v712
    %1397 = vmatprep.subr.mxu0 %v717
    %1398 = vmatpush1.msra.mxu0 %v716
    %1399 = vmatprep.subr.mxu0 %v721
    %1400 = vmatpush1.msra.mxu0 %v720
    %1401 = vmatprep.subr.mxu0 %v725
    %1402 = vmatpush1.msra.mxu0 %v724
    %1403 = vmatprep.subr.mxu0 %v729
    %1404 = vmatpush1.msra.mxu0 %v728
    %1405 = vmatprep.subr.mxu0 %v733
    %1406 = vmatpush1.msra.mxu0 %v732
    %1407 = vmatprep.subr.mxu0 %v737
    %1408 = vmatpush1.msra.mxu0 %v736
    %1409 = vmatprep.subr.mxu0 %v741
    %1410 = vmatpush1.msra.mxu0 %v740
    %1411 = vmatprep.subr.mxu0 %v745
    %1412 = vmatpush1.msra.mxu0 %v744
    %1413 = vmatprep.subr.mxu0 %v749
    %1414 = vmatpush1.msra.mxu0 %v748
    %1415 = vmatprep.subr.mxu0 %v753
    %1416 = vmatpush1.msra.mxu0 %v752
    %1417 = vmatprep.subr.mxu0 %v757
    %1418 = vmatpush1.msra.mxu0 %v756
    %1419 = vmatprep.subr.mxu0 %v761
    %1420 = vmatpush1.msra.mxu0 %v760
    %1421 = vmatprep.subr.mxu0 %v765
    %1422 = vmatpush1.msra.mxu0 %v764
    %1423 = vmatprep.subr.mxu0 %v769
    %1424 = vmatpush1.msra.mxu0 %v768
    %1425 = vmatprep.subr.mxu0 %v773
    %1426 = vmatpush1.msra.mxu0 %v772
    %1427 = vmatprep.subr.mxu0 %v777
    %1428 = vmatpush1.msra.mxu0 %v776
    %1429 = vmatprep.mubr.f32.mxu0 %v179
    %1430 = vmatmul.mubr.f32.gmra.mrb[0].mxu0 %v178
    %v1431 = vpop.f32.mrb[0].mxu0
    %v1432 = vadd.f32 %v1319, %v1431
    %v1433 = vpop.f32.mrb[0].mxu0
    %v1434 = vadd.f32 %v1321, %v1433
    %1435 = vmatprep.mubr.f32.mxu0 %v191
    %1436 = vmatmul.mubr.f32.gmra.mrb[0].mxu0 %v190
    %v1437 = vpop.f32.mrb[0].mxu0
    %v1438 = vadd.f32 %v1325, %v1437
    %v1439 = vpop.f32.mrb[0].mxu0
    %v1440 = vadd.f32 %v1327, %v1439
    %1441 = vmatprep.mubr.f32.mxu0 %v203
    %1442 = vmatmul.mubr.f32.gmra.mrb[0].mxu0 %v202
    %v1443 = vpop.f32.mrb[0].mxu0
    %v1444 = vadd.f32 %v1331, %v1443
    %v1445 = vpop.f32.mrb[0].mxu0
    %v1446 = vadd.f32 %v1333, %v1445
    %1447 = vmatprep.mubr.f32.mxu0 %v215
    %1448 = vmatmul.mubr.f32.gmra.mrb[0].mxu0 %v214
    %v1449 = vpop.f32.mrb[0].mxu0
    %v1450 = vadd.f32 %v1337, %v1449
    %v1451 = vpop.f32.mrb[0].mxu0
    %v1452 = vadd.f32 %v1339, %v1451
    %1453 = vmatprep.mubr.f32.mxu0 %v227
    %1454 = vmatmul.mubr.f32.gmra.mrb[0].mxu0 %v226
    %v1455 = vpop.f32.mrb[0].mxu0
    %v1456 = vadd.f32 %v1343, %v1455
    %v1457 = vpop.f32.mrb[0].mxu0
    %v1458 = vadd.f32 %v1345, %v1457
    %1459 = vmatprep.mubr.f32.mxu0 %v239
    %1460 = vmatmul.mubr.f32.gmra.mrb[0].mxu0 %v238
    %v1461 = vpop.f32.mrb[0].mxu0
    %v1462 = vadd.f32 %v1349, %v1461
    %v1463 = vpop.f32.mrb[0].mxu0
    %v1464 = vadd.f32 %v1351, %v1463
    %1465 = vmatprep.mubr.f32.mxu0 %v251
    %1466 = vmatmul.mubr.f32.gmra.mrb[0].mxu0 %v250
    %v1467 = vpop.f32.mrb[0].mxu0
    %v1468 = vadd.f32 %v1355, %v1467
    %v1469 = vpop.f32.mrb[0].mxu0
    %v1470 = vadd.f32 %v1357, %v1469
    %1471 = vmatprep.mubr.f32.mxu0 %v263
    %1472 = vmatmul.mubr.f32.gmra.mrb[0].mxu0 %v262
    %v1473 = vpop.f32.mrb[0].mxu0
    %v1474 = vadd.f32 %v1361, %v1473
    %v1475 = vpop.f32.mrb[0].mxu0
    %v1476 = vadd.f32 %v1363, %v1475
    %1477 = vdwg.mxu0
    %1478 = vmatprep.subr.mxu0 %v781
    %1479 = vmatpush1.msra.mxu0 %v780
    %1480 = vmatprep.subr.mxu0 %v785
    %1481 = vmatpush1.msra.mxu0 %v784
    %1482 = vmatprep.subr.mxu0 %v789
    %1483 = vmatpush1.msra.mxu0 %v788
    %1484 = vmatprep.subr.mxu0 %v793
    %1485 = vmatpush1.msra.mxu0 %v792
    %1486 = vmatprep.subr.mxu0 %v797
    %1487 = vmatpush1.msra.mxu0 %v796
    %1488 = vmatprep.subr.mxu0 %v801
    %1489 = vmatpush1.msra.mxu0 %v800
    %1490 = vmatprep.subr.mxu0 %v805
    %1491 = vmatpush1.msra.mxu0 %v804
    %1492 = vmatprep.subr.mxu0 %v809
    %1493 = vmatpush1.msra.mxu0 %v808
    %1494 = vmatprep.subr.mxu0 %v813
    %1495 = vmatpush1.msra.mxu0 %v812
    %1496 = vmatprep.subr.mxu0 %v817
    %1497 = vmatpush1.msra.mxu0 %v816
    %1498 = vmatprep.subr.mxu0 %v821
    %1499 = vmatpush1.msra.mxu0 %v820
    %1500 = vmatprep.subr.mxu0 %v825
    %1501 = vmatpush1.msra.mxu0 %v824
    %1502 = vmatprep.subr.mxu0 %v829
    %1503 = vmatpush1.msra.mxu0 %v828
    %1504 = vmatprep.subr.mxu0 %v833
    %1505 = vmatpush1.msra.mxu0 %v832
    %1506 = vmatprep.subr.mxu0 %v837
    %1507 = vmatpush1.msra.mxu0 %v836
    %1508 = vmatprep.subr.mxu0 %v841
    %1509 = vmatpush1.msra.mxu0 %v840
    %1510 = vmatprep.subr.mxu0 %v845
    %1511 = vmatpush1.msra.mxu0 %v844
    %1512 = vmatprep.subr.mxu0 %v849
    %1513 = vmatpush1.msra.mxu0 %v848
    %1514 = vmatprep.subr.mxu0 %v853
    %1515 = vmatpush1.msra.mxu0 %v852
    %1516 = vmatprep.subr.mxu0 %v857
    %1517 = vmatpush1.msra.mxu0 %v856
    %1518 = vmatprep.subr.mxu0 %v861
    %1519 = vmatpush1.msra.mxu0 %v860
    %1520 = vmatprep.subr.mxu0 %v865
    %1521 = vmatpush1.msra.mxu0 %v864
    %1522 = vmatprep.subr.mxu0 %v869
    %1523 = vmatpush1.msra.mxu0 %v868
    %1524 = vmatprep.subr.mxu0 %v873
    %1525 = vmatpush1.msra.mxu0 %v872
    %1526 = vmatprep.subr.mxu0 %v877
    %1527 = vmatpush1.msra.mxu0 %v876
    %1528 = vmatprep.subr.mxu0 %v881
    %1529 = vmatpush1.msra.mxu0 %v880
    %1530 = vmatprep.subr.mxu0 %v885
    %1531 = vmatpush1.msra.mxu0 %v884
    %1532 = vmatprep.subr.mxu0 %v889
    %1533 = vmatpush1.msra.mxu0 %v888
    %1534 = vmatprep.subr.mxu0 %v893
    %1535 = vmatpush1.msra.mxu0 %v892
    %1536 = vmatprep.subr.mxu0 %v897
    %1537 = vmatpush1.msra.mxu0 %v896
    %1538 = vmatprep.subr.mxu0 %v901
    %1539 = vmatpush1.msra.mxu0 %v900
    %1540 = vmatprep.subr.mxu0 %v905
    %1541 = vmatpush1.msra.mxu0 %v904
    %1542 = vmatprep.mubr.f32.mxu0 %v181
    %1543 = vmatmul.mubr.f32.gmra.mrb[0].mxu0 %v180
    %v1544 = vpop.f32.mrb[0].mxu0
    %v1545 = vadd.f32 %v1432, %v1544
    %v1546 = vpop.f32.mrb[0].mxu0
    %v1547 = vadd.f32 %v1434, %v1546
    %1548 = vmatprep.mubr.f32.mxu0 %v193
    %1549 = vmatmul.mubr.f32.gmra.mrb[0].mxu0 %v192
    %v1550 = vpop.f32.mrb[0].mxu0
    %v1551 = vadd.f32 %v1438, %v1550
    %v1552 = vpop.f32.mrb[0].mxu0
    %v1553 = vadd.f32 %v1440, %v1552
    %1554 = vmatprep.mubr.f32.mxu0 %v205
    %1555 = vmatmul.mubr.f32.gmra.mrb[0].mxu0 %v204
    %v1556 = vpop.f32.mrb[0].mxu0
    %v1557 = vadd.f32 %v1444, %v1556
    %v1558 = vpop.f32.mrb[0].mxu0
    %v1559 = vadd.f32 %v1446, %v1558
    %1560 = vmatprep.mubr.f32.mxu0 %v217
    %1561 = vmatmul.mubr.f32.gmra.mrb[0].mxu0 %v216
    %v1562 = vpop.f32.mrb[0].mxu0
    %v1563 = vadd.f32 %v1450, %v1562
    %v1564 = vpop.f32.mrb[0].mxu0
    %v1565 = vadd.f32 %v1452, %v1564
    %1566 = vmatprep.mubr.f32.mxu0 %v229
    %1567 = vmatmul.mubr.f32.gmra.mrb[0].mxu0 %v228
    %v1568 = vpop.f32.mrb[0].mxu0
    %v1569 = vadd.f32 %v1456, %v1568
    %v1570 = vpop.f32.mrb[0].mxu0
    %v1571 = vadd.f32 %v1458, %v1570
    %1572 = vmatprep.mubr.f32.mxu0 %v241
    %1573 = vmatmul.mubr.f32.gmra.mrb[0].mxu0 %v240
    %v1574 = vpop.f32.mrb[0].mxu0
    %v1575 = vadd.f32 %v1462, %v1574
    %v1576 = vpop.f32.mrb[0].mxu0
    %v1577 = vadd.f32 %v1464, %v1576
    %1578 = vmatprep.mubr.f32.mxu0 %v253
    %1579 = vmatmul.mubr.f32.gmra.mrb[0].mxu0 %v252
    %v1580 = vpop.f32.mrb[0].mxu0
    %v1581 = vadd.f32 %v1468, %v1580
    %v1582 = vpop.f32.mrb[0].mxu0
    %v1583 = vadd.f32 %v1470, %v1582
    %1584 = vmatprep.mubr.f32.mxu0 %v265
    %1585 = vmatmul.mubr.f32.gmra.mrb[0].mxu0 %v264
    %v1586 = vpop.f32.mrb[0].mxu0
    %v1587 = vadd.f32 %v1474, %v1586
    %v1588 = vpop.f32.mrb[0].mxu0
    %v1589 = vadd.f32 %v1476, %v1588
    %1590 = vdwg.mxu0
    %1591 = vmatprep.subr.mxu0 %v909
    %1592 = vmatpush1.msra.mxu0 %v908
    %1593 = vmatprep.subr.mxu0 %v913
    %1594 = vmatpush1.msra.mxu0 %v912
    %1595 = vmatprep.subr.mxu0 %v917
    %1596 = vmatpush1.msra.mxu0 %v916
    %1597 = vmatprep.subr.mxu0 %v921
    %1598 = vmatpush1.msra.mxu0 %v920
    %1599 = vmatprep.subr.mxu0 %v925
    %1600 = vmatpush1.msra.mxu0 %v924
    %1601 = vmatprep.subr.mxu0 %v929
    %1602 = vmatpush1.msra.mxu0 %v928
    %1603 = vmatprep.subr.mxu0 %v933
    %1604 = vmatpush1.msra.mxu0 %v932
    %1605 = vmatprep.subr.mxu0 %v937
    %1606 = vmatpush1.msra.mxu0 %v936
    %1607 = vmatprep.subr.mxu0 %v941
    %1608 = vmatpush1.msra.mxu0 %v940
    %1609 = vmatprep.subr.mxu0 %v945
    %1610 = vmatpush1.msra.mxu0 %v944
    %1611 = vmatprep.subr.mxu0 %v949
    %1612 = vmatpush1.msra.mxu0 %v948
    %1613 = vmatprep.subr.mxu0 %v953
    %1614 = vmatpush1.msra.mxu0 %v952
    %1615 = vmatprep.subr.mxu0 %v957
    %1616 = vmatpush1.msra.mxu0 %v956
    %1617 = vmatprep.subr.mxu0 %v961
    %1618 = vmatpush1.msra.mxu0 %v960
    %1619 = vmatprep.subr.mxu0 %v965
    %1620 = vmatpush1.msra.mxu0 %v964
    %1621 = vmatprep.subr.mxu0 %v969
    %1622 = vmatpush1.msra.mxu0 %v968
    %1623 = vmatprep.subr.mxu0 %v973
    %1624 = vmatpush1.msra.mxu0 %v972
    %1625 = vmatprep.subr.mxu0 %v977
    %1626 = vmatpush1.msra.mxu0 %v976
    %1627 = vmatprep.subr.mxu0 %v981
    %1628 = vmatpush1.msra.mxu0 %v980
    %1629 = vmatprep.subr.mxu0 %v1018
    %1630 = vmatpush1.msra.mxu0 %v1015
    %1631 = vmatprep.subr.mxu0 0.0
    %1632 = vmatpush1.msra.mxu0 0.0
    %1633 = vmatprep.subr.mxu0 0.0
    %1634 = vmatpush1.msra.mxu0 0.0
    %1635 = vmatprep.subr.mxu0 0.0
    %1636 = vmatpush1.msra.mxu0 0.0
    %1637 = vmatprep.subr.mxu0 0.0
    %1638 = vmatpush1.msra.mxu0 0.0
    %1639 = vmatprep.subr.mxu0 0.0
    %1640 = vmatpush1.msra.mxu0 0.0
    %1641 = vmatprep.subr.mxu0 0.0
    %1642 = vmatpush1.msra.mxu0 0.0
    %1643 = vmatprep.subr.mxu0 0.0
    %1644 = vmatpush1.msra.mxu0 0.0
    %1645 = vmatprep.subr.mxu0 0.0
    %1646 = vmatpush1.msra.mxu0 0.0
    %1647 = vmatprep.subr.mxu0 0.0
    %1648 = vmatpush1.msra.mxu0 0.0
    %1649 = vmatprep.subr.mxu0 0.0
    %1650 = vmatpush1.msra.mxu0 0.0
    %1651 = vmatprep.subr.mxu0 0.0
    %1652 = vmatpush1.msra.mxu0 0.0
    %1653 = vmatprep.subr.mxu0 0.0
    %1654 = vmatpush1.msra.mxu0 0.0
    %1655 = vmatprep.mubr.f32.mxu0 %v990
    %1656 = vmatmul.mubr.f32.gmra.mrb[0].mxu0 %v182
    %v1657 = vpop.f32.mrb[0].mxu0
    %v1658 = vadd.f32 %v1545, %v1657
    %v1659 = vpop.f32.mrb[0].mxu0
    %v1660 = vadd.f32 %v1547, %v1659
    %1661 = vmatprep.mubr.f32.mxu0 %v993
    %1662 = vmatmul.mubr.f32.gmra.mrb[0].mxu0 %v194
    %v1663 = vpop.f32.mrb[0].mxu0
    %v1664 = vadd.f32 %v1551, %v1663
    %v1665 = vpop.f32.mrb[0].mxu0
    %v1666 = vadd.f32 %v1553, %v1665
    %1667 = vmatprep.mubr.f32.mxu0 %v996
    %1668 = vmatmul.mubr.f32.gmra.mrb[0].mxu0 %v206
    %v1669 = vpop.f32.mrb[0].mxu0
    %v1670 = vadd.f32 %v1557, %v1669
    %v1671 = vpop.f32.mrb[0].mxu0
    %v1672 = vadd.f32 %v1559, %v1671
    %1673 = vmatprep.mubr.f32.mxu0 %v999
    %1674 = vmatmul.mubr.f32.gmra.mrb[0].mxu0 %v218
    %v1675 = vpop.f32.mrb[0].mxu0
    %v1676 = vadd.f32 %v1563, %v1675
    %v1677 = vpop.f32.mrb[0].mxu0
    %v1678 = vadd.f32 %v1565, %v1677
    %1679 = vmatprep.mubr.f32.mxu0 %v1002
    %1680 = vmatmul.mubr.f32.gmra.mrb[0].mxu0 %v230
    %v1681 = vpop.f32.mrb[0].mxu0
    %v1682 = vadd.f32 %v1569, %v1681
    %v1683 = vpop.f32.mrb[0].mxu0
    %v1684 = vadd.f32 %v1571, %v1683
    %1685 = vmatprep.mubr.f32.mxu0 %v1005
    %1686 = vmatmul.mubr.f32.gmra.mrb[0].mxu0 %v242
    %v1687 = vpop.f32.mrb[0].mxu0
    %v1688 = vadd.f32 %v1575, %v1687
    %v1689 = vpop.f32.mrb[0].mxu0
    %v1690 = vadd.f32 %v1577, %v1689
    %1691 = vmatprep.mubr.f32.mxu0 %v1008
    %1692 = vmatmul.mubr.f32.gmra.mrb[0].mxu0 %v254
    %v1693 = vpop.f32.mrb[0].mxu0
    %v1694 = vadd.f32 %v1581, %v1693
    %v1695 = vpop.f32.mrb[0].mxu0
    %v1696 = vadd.f32 %v1583, %v1695
    %1697 = vmatprep.mubr.f32.mxu0 %v1011
    %1698 = vmatmul.mubr.f32.gmra.mrb[0].mxu0 %v266
    %v1699 = vpop.f32.mrb[0].mxu0
    %v1700 = vadd.f32 %v1587, %v1699
    %v1701 = vpop.f32.mrb[0].mxu0
    %v1702 = vadd.f32 %v1589, %v1701
    %1703 = vdwg.mxu0
    %1704 = vmatprep.subr.mxu0 %v271
    %1705 = vmatpush1.msra.mxu0 %v270
    %1706 = vmatprep.subr.mxu0 %v275
    %1707 = vmatpush1.msra.mxu0 %v274
    %1708 = vmatprep.subr.mxu0 %v279
    %1709 = vmatpush1.msra.mxu0 %v278
    %1710 = vmatprep.subr.mxu0 %v283
    %1711 = vmatpush1.msra.mxu0 %v282
    %1712 = vmatprep.subr.mxu0 %v287
    %1713 = vmatpush1.msra.mxu0 %v286
    %1714 = vmatprep.subr.mxu0 %v291
    %1715 = vmatpush1.msra.mxu0 %v290
    %1716 = vmatprep.subr.mxu0 %v295
    %1717 = vmatpush1.msra.mxu0 %v294
    %1718 = vmatprep.subr.mxu0 %v299
    %1719 = vmatpush1.msra.mxu0 %v298
    %1720 = vmatprep.subr.mxu0 %v303
    %1721 = vmatpush1.msra.mxu0 %v302
    %1722 = vmatprep.subr.mxu0 %v307
    %1723 = vmatpush1.msra.mxu0 %v306
    %1724 = vmatprep.subr.mxu0 %v311
    %1725 = vmatpush1.msra.mxu0 %v310
    %1726 = vmatprep.subr.mxu0 %v315
    %1727 = vmatpush1.msra.mxu0 %v314
    %1728 = vmatprep.subr.mxu0 %v319
    %1729 = vmatpush1.msra.mxu0 %v318
    %1730 = vmatprep.subr.mxu0 %v323
    %1731 = vmatpush1.msra.mxu0 %v322
    %1732 = vmatprep.subr.mxu0 %v327
    %1733 = vmatpush1.msra.mxu0 %v326
    %1734 = vmatprep.subr.mxu0 %v331
    %1735 = vmatpush1.msra.mxu0 %v330
    %1736 = vmatprep.subr.mxu0 %v335
    %1737 = vmatpush1.msra.mxu0 %v334
    %1738 = vmatprep.subr.mxu0 %v339
    %1739 = vmatpush1.msra.mxu0 %v338
    %1740 = vmatprep.subr.mxu0 %v343
    %1741 = vmatpush1.msra.mxu0 %v342
    %1742 = vmatprep.subr.mxu0 %v347
    %1743 = vmatpush1.msra.mxu0 %v346
    %1744 = vmatprep.subr.mxu0 %v351
    %1745 = vmatpush1.msra.mxu0 %v350
    %1746 = vmatprep.subr.mxu0 %v355
    %1747 = vmatpush1.msra.mxu0 %v354
    %1748 = vmatprep.subr.mxu0 %v359
    %1749 = vmatpush1.msra.mxu0 %v358
    %1750 = vmatprep.subr.mxu0 %v363
    %1751 = vmatpush1.msra.mxu0 %v362
    %1752 = vmatprep.subr.mxu0 %v367
    %1753 = vmatpush1.msra.mxu0 %v366
    %1754 = vmatprep.subr.mxu0 %v371
    %1755 = vmatpush1.msra.mxu0 %v370
    %1756 = vmatprep.subr.mxu0 %v375
    %1757 = vmatpush1.msra.mxu0 %v374
    %1758 = vmatprep.subr.mxu0 %v379
    %1759 = vmatpush1.msra.mxu0 %v378
    %1760 = vmatprep.subr.mxu0 %v383
    %1761 = vmatpush1.msra.mxu0 %v382
    %1762 = vmatprep.subr.mxu0 %v387
    %1763 = vmatpush1.msra.mxu0 %v386
    %1764 = vmatprep.subr.mxu0 %v391
    %1765 = vmatpush1.msra.mxu0 %v390
    %1766 = vmatprep.subr.mxu0 %v395
    %1767 = vmatpush1.msra.mxu0 %v394
    %1768 = vmatprep.mubr.f32.mxu0 %v173
    %1769 = vmatmul.mubr.f32.gmra.mrb[0].mxu0 %v172
    %v1770 = vpop.f32.mrb[0].mxu0
    %v1771 = vadd.f32 0.0, %v1770
    %v1772 = vpop.f32.mrb[0].mxu0
    %v1773 = vadd.f32 0.0, %v1772
    %1774 = vmatprep.mubr.f32.mxu0 %v185
    %1775 = vmatmul.mubr.f32.gmra.mrb[0].mxu0 %v184
    %v1776 = vpop.f32.mrb[0].mxu0
    %v1777 = vadd.f32 0.0, %v1776
    %v1778 = vpop.f32.mrb[0].mxu0
    %v1779 = vadd.f32 0.0, %v1778
    %1780 = vmatprep.mubr.f32.mxu0 %v197
    %1781 = vmatmul.mubr.f32.gmra.mrb[0].mxu0 %v196
    %v1782 = vpop.f32.mrb[0].mxu0
    %v1783 = vadd.f32 0.0, %v1782
    %v1784 = vpop.f32.mrb[0].mxu0
    %v1785 = vadd.f32 0.0, %v1784
    %1786 = vmatprep.mubr.f32.mxu0 %v209
    %1787 = vmatmul.mubr.f32.gmra.mrb[0].mxu0 %v208
    %v1788 = vpop.f32.mrb[0].mxu0
    %v1789 = vadd.f32 0.0, %v1788
    %v1790 = vpop.f32.mrb[0].mxu0
    %v1791 = vadd.f32 0.0, %v1790
    %1792 = vmatprep.mubr.f32.mxu0 %v221
    %1793 = vmatmul.mubr.f32.gmra.mrb[0].mxu0 %v220
    %v1794 = vpop.f32.mrb[0].mxu0
    %v1795 = vadd.f32 0.0, %v1794
    %v1796 = vpop.f32.mrb[0].mxu0
    %v1797 = vadd.f32 0.0, %v1796
    %1798 = vmatprep.mubr.f32.mxu0 %v233
    %1799 = vmatmul.mubr.f32.gmra.mrb[0].mxu0 %v232
    %v1800 = vpop.f32.mrb[0].mxu0
    %v1801 = vadd.f32 0.0, %v1800
    %v1802 = vpop.f32.mrb[0].mxu0
    %v1803 = vadd.f32 0.0, %v1802
    %1804 = vmatprep.mubr.f32.mxu0 %v245
    %1805 = vmatmul.mubr.f32.gmra.mrb[0].mxu0 %v244
    %v1806 = vpop.f32.mrb[0].mxu0
    %v1807 = vadd.f32 0.0, %v1806
    %v1808 = vpop.f32.mrb[0].mxu0
    %v1809 = vadd.f32 0.0, %v1808
    %1810 = vmatprep.mubr.f32.mxu0 %v257
    %1811 = vmatmul.mubr.f32.gmra.mrb[0].mxu0 %v256
    %v1812 = vpop.f32.mrb[0].mxu0
    %v1813 = vadd.f32 0.0, %v1812
    %v1814 = vpop.f32.mrb[0].mxu0
    %v1815 = vadd.f32 0.0, %v1814
    %1816 = vdwg.mxu0
    %1817 = vmatprep.subr.mxu0 %v399
    %1818 = vmatpush1.msra.mxu0 %v398
    %1819 = vmatprep.subr.mxu0 %v403
    %1820 = vmatpush1.msra.mxu0 %v402
    %1821 = vmatprep.subr.mxu0 %v407
    %1822 = vmatpush1.msra.mxu0 %v406
    %1823 = vmatprep.subr.mxu0 %v411
    %1824 = vmatpush1.msra.mxu0 %v410
    %1825 = vmatprep.subr.mxu0 %v415
    %1826 = vmatpush1.msra.mxu0 %v414
    %1827 = vmatprep.subr.mxu0 %v419
    %1828 = vmatpush1.msra.mxu0 %v418
    %1829 = vmatprep.subr.mxu0 %v423
    %1830 = vmatpush1.msra.mxu0 %v422
    %1831 = vmatprep.subr.mxu0 %v427
    %1832 = vmatpush1.msra.mxu0 %v426
    %1833 = vmatprep.subr.mxu0 %v431
    %1834 = vmatpush1.msra.mxu0 %v430
    %1835 = vmatprep.subr.mxu0 %v435
    %1836 = vmatpush1.msra.mxu0 %v434
    %1837 = vmatprep.subr.mxu0 %v439
    %1838 = vmatpush1.msra.mxu0 %v438
    %1839 = vmatprep.subr.mxu0 %v443
    %1840 = vmatpush1.msra.mxu0 %v442
    %1841 = vmatprep.subr.mxu0 %v447
    %1842 = vmatpush1.msra.mxu0 %v446
    %1843 = vmatprep.subr.mxu0 %v451
    %1844 = vmatpush1.msra.mxu0 %v450
    %1845 = vmatprep.subr.mxu0 %v455
    %1846 = vmatpush1.msra.mxu0 %v454
    %1847 = vmatprep.subr.mxu0 %v459
    %1848 = vmatpush1.msra.mxu0 %v458
    %1849 = vmatprep.subr.mxu0 %v463
    %1850 = vmatpush1.msra.mxu0 %v462
    %1851 = vmatprep.subr.mxu0 %v467
    %1852 = vmatpush1.msra.mxu0 %v466
    %1853 = vmatprep.subr.mxu0 %v471
    %1854 = vmatpush1.msra.mxu0 %v470
    %1855 = vmatprep.subr.mxu0 %v475
    %1856 = vmatpush1.msra.mxu0 %v474
    %1857 = vmatprep.subr.mxu0 %v479
    %1858 = vmatpush1.msra.mxu0 %v478
    %1859 = vmatprep.subr.mxu0 %v483
    %1860 = vmatpush1.msra.mxu0 %v482
    %1861 = vmatprep.subr.mxu0 %v487
    %1862 = vmatpush1.msra.mxu0 %v486
    %1863 = vmatprep.subr.mxu0 %v491
    %1864 = vmatpush1.msra.mxu0 %v490
    %1865 = vmatprep.subr.mxu0 %v495
    %1866 = vmatpush1.msra.mxu0 %v494
    %1867 = vmatprep.subr.mxu0 %v499
    %1868 = vmatpush1.msra.mxu0 %v498
    %1869 = vmatprep.subr.mxu0 %v503
    %1870 = vmatpush1.msra.mxu0 %v502
    %1871 = vmatprep.subr.mxu0 %v507
    %1872 = vmatpush1.msra.mxu0 %v506
    %1873 = vmatprep.subr.mxu0 %v511
    %1874 = vmatpush1.msra.mxu0 %v510
    %1875 = vmatprep.subr.mxu0 %v515
    %1876 = vmatpush1.msra.mxu0 %v514
    %1877 = vmatprep.subr.mxu0 %v519
    %1878 = vmatpush1.msra.mxu0 %v518
    %1879 = vmatprep.subr.mxu0 %v523
    %1880 = vmatpush1.msra.mxu0 %v522
    %1881 = vmatprep.mubr.f32.mxu0 %v175
    %1882 = vmatmul.mubr.f32.gmra.mrb[0].mxu0 %v174
    %v1883 = vpop.f32.mrb[0].mxu0
    %v1884 = vadd.f32 %v1771, %v1883
    %v1885 = vpop.f32.mrb[0].mxu0
    %v1886 = vadd.f32 %v1773, %v1885
    %1887 = vmatprep.mubr.f32.mxu0 %v187
    %1888 = vmatmul.mubr.f32.gmra.mrb[0].mxu0 %v186
    %v1889 = vpop.f32.mrb[0].mxu0
    %v1890 = vadd.f32 %v1777, %v1889
    %v1891 = vpop.f32.mrb[0].mxu0
    %v1892 = vadd.f32 %v1779, %v1891
    %1893 = vmatprep.mubr.f32.mxu0 %v199
    %1894 = vmatmul.mubr.f32.gmra.mrb[0].mxu0 %v198
    %v1895 = vpop.f32.mrb[0].mxu0
    %v1896 = vadd.f32 %v1783, %v1895
    %v1897 = vpop.f32.mrb[0].mxu0
    %v1898 = vadd.f32 %v1785, %v1897
    %1899 = vmatprep.mubr.f32.mxu0 %v211
    %1900 = vmatmul.mubr.f32.gmra.mrb[0].mxu0 %v210
    %v1901 = vpop.f32.mrb[0].mxu0
    %v1902 = vadd.f32 %v1789, %v1901
    %v1903 = vpop.f32.mrb[0].mxu0
    %v1904 = vadd.f32 %v1791, %v1903
    %1905 = vmatprep.mubr.f32.mxu0 %v223
    %1906 = vmatmul.mubr.f32.gmra.mrb[0].mxu0 %v222
    %v1907 = vpop.f32.mrb[0].mxu0
    %v1908 = vadd.f32 %v1795, %v1907
    %v1909 = vpop.f32.mrb[0].mxu0
    %v1910 = vadd.f32 %v1797, %v1909
    %1911 = vmatprep.mubr.f32.mxu0 %v235
    %1912 = vmatmul.mubr.f32.gmra.mrb[0].mxu0 %v234
    %v1913 = vpop.f32.mrb[0].mxu0
    %v1914 = vadd.f32 %v1801, %v1913
    %v1915 = vpop.f32.mrb[0].mxu0
    %v1916 = vadd.f32 %v1803, %v1915
    %1917 = vmatprep.mubr.f32.mxu0 %v247
    %1918 = vmatmul.mubr.f32.gmra.mrb[0].mxu0 %v246
    %v1919 = vpop.f32.mrb[0].mxu0
    %v1920 = vadd.f32 %v1807, %v1919
    %v1921 = vpop.f32.mrb[0].mxu0
    %v1922 = vadd.f32 %v1809, %v1921
    %1923 = vmatprep.mubr.f32.mxu0 %v259
    %1924 = vmatmul.mubr.f32.gmra.mrb[0].mxu0 %v258
    %v1925 = vpop.f32.mrb[0].mxu0
    %v1926 = vadd.f32 %v1813, %v1925
    %v1927 = vpop.f32.mrb[0].mxu0
    %v1928 = vadd.f32 %v1815, %v1927
    %1929 = vdwg.mxu0
    %1930 = vmatprep.subr.mxu0 %v527
    %1931 = vmatpush1.msra.mxu0 %v526
    %1932 = vmatprep.subr.mxu0 %v531
    %1933 = vmatpush1.msra.mxu0 %v530
    %1934 = vmatprep.subr.mxu0 %v535
    %1935 = vmatpush1.msra.mxu0 %v534
    %1936 = vmatprep.subr.mxu0 %v539
    %1937 = vmatpush1.msra.mxu0 %v538
    %1938 = vmatprep.subr.mxu0 %v543
    %1939 = vmatpush1.msra.mxu0 %v542
    %1940 = vmatprep.subr.mxu0 %v547
    %1941 = vmatpush1.msra.mxu0 %v546
    %1942 = vmatprep.subr.mxu0 %v551
    %1943 = vmatpush1.msra.mxu0 %v550
    %1944 = vmatprep.subr.mxu0 %v555
    %1945 = vmatpush1.msra.mxu0 %v554
    %1946 = vmatprep.subr.mxu0 %v559
    %1947 = vmatpush1.msra.mxu0 %v558
    %1948 = vmatprep.subr.mxu0 %v563
    %1949 = vmatpush1.msra.mxu0 %v562
    %1950 = vmatprep.subr.mxu0 %v567
    %1951 = vmatpush1.msra.mxu0 %v566
    %1952 = vmatprep.subr.mxu0 %v571
    %1953 = vmatpush1.msra.mxu0 %v570
    %1954 = vmatprep.subr.mxu0 %v575
    %1955 = vmatpush1.msra.mxu0 %v574
    %1956 = vmatprep.subr.mxu0 %v579
    %1957 = vmatpush1.msra.mxu0 %v578
    %1958 = vmatprep.subr.mxu0 %v583
    %1959 = vmatpush1.msra.mxu0 %v582
    %1960 = vmatprep.subr.mxu0 %v587
    %1961 = vmatpush1.msra.mxu0 %v586
    %1962 = vmatprep.subr.mxu0 %v591
    %1963 = vmatpush1.msra.mxu0 %v590
    %1964 = vmatprep.subr.mxu0 %v595
    %1965 = vmatpush1.msra.mxu0 %v594
    %1966 = vmatprep.subr.mxu0 %v599
    %1967 = vmatpush1.msra.mxu0 %v598
    %1968 = vmatprep.subr.mxu0 %v603
    %1969 = vmatpush1.msra.mxu0 %v602
    %1970 = vmatprep.subr.mxu0 %v607
    %1971 = vmatpush1.msra.mxu0 %v606
    %1972 = vmatprep.subr.mxu0 %v611
    %1973 = vmatpush1.msra.mxu0 %v610
    %1974 = vmatprep.subr.mxu0 %v615
    %1975 = vmatpush1.msra.mxu0 %v614
    %1976 = vmatprep.subr.mxu0 %v619
    %1977 = vmatpush1.msra.mxu0 %v618
    %1978 = vmatprep.subr.mxu0 %v623
    %1979 = vmatpush1.msra.mxu0 %v622
    %1980 = vmatprep.subr.mxu0 %v627
    %1981 = vmatpush1.msra.mxu0 %v626
    %1982 = vmatprep.subr.mxu0 %v631
    %1983 = vmatpush1.msra.mxu0 %v630
    %1984 = vmatprep.subr.mxu0 %v635
    %1985 = vmatpush1.msra.mxu0 %v634
    %1986 = vmatprep.subr.mxu0 %v639
    %1987 = vmatpush1.msra.mxu0 %v638
    %1988 = vmatprep.subr.mxu0 %v643
    %1989 = vmatpush1.msra.mxu0 %v642
    %1990 = vmatprep.subr.mxu0 %v647
    %1991 = vmatpush1.msra.mxu0 %v646
    %1992 = vmatprep.subr.mxu0 %v651
    %1993 = vmatpush1.msra.mxu0 %v650
    %1994 = vmatprep.mubr.f32.mxu0 %v177
    %1995 = vmatmul.mubr.f32.gmra.mrb[0].mxu0 %v176
    %v1996 = vpop.f32.mrb[0].mxu0
    %v1997 = vadd.f32 %v1884, %v1996
    %v1998 = vpop.f32.mrb[0].mxu0
    %v1999 = vadd.f32 %v1886, %v1998
    %2000 = vmatprep.mubr.f32.mxu0 %v189
    %2001 = vmatmul.mubr.f32.gmra.mrb[0].mxu0 %v188
    %v2002 = vpop.f32.mrb[0].mxu0
    %v2003 = vadd.f32 %v1890, %v2002
    %v2004 = vpop.f32.mrb[0].mxu0
    %v2005 = vadd.f32 %v1892, %v2004
    %2006 = vmatprep.mubr.f32.mxu0 %v201
    %2007 = vmatmul.mubr.f32.gmra.mrb[0].mxu0 %v200
    %v2008 = vpop.f32.mrb[0].mxu0
    %v2009 = vadd.f32 %v1896, %v2008
    %v2010 = vpop.f32.mrb[0].mxu0
    %v2011 = vadd.f32 %v1898, %v2010
    %2012 = vmatprep.mubr.f32.mxu0 %v213
    %2013 = vmatmul.mubr.f32.gmra.mrb[0].mxu0 %v212
    %v2014 = vpop.f32.mrb[0].mxu0
    %v2015 = vadd.f32 %v1902, %v2014
    %v2016 = vpop.f32.mrb[0].mxu0
    %v2017 = vadd.f32 %v1904, %v2016
    %2018 = vmatprep.mubr.f32.mxu0 %v225
    %2019 = vmatmul.mubr.f32.gmra.mrb[0].mxu0 %v224
    %v2020 = vpop.f32.mrb[0].mxu0
    %v2021 = vadd.f32 %v1908, %v2020
    %v2022 = vpop.f32.mrb[0].mxu0
    %v2023 = vadd.f32 %v1910, %v2022
    %2024 = vmatprep.mubr.f32.mxu0 %v237
    %2025 = vmatmul.mubr.f32.gmra.mrb[0].mxu0 %v236
    %v2026 = vpop.f32.mrb[0].mxu0
    %v2027 = vadd.f32 %v1914, %v2026
    %v2028 = vpop.f32.mrb[0].mxu0
    %v2029 = vadd.f32 %v1916, %v2028
    %2030 = vmatprep.mubr.f32.mxu0 %v249
    %2031 = vmatmul.mubr.f32.gmra.mrb[0].mxu0 %v248
    %v2032 = vpop.f32.mrb[0].mxu0
    %v2033 = vadd.f32 %v1920, %v2032
    %v2034 = vpop.f32.mrb[0].mxu0
    %v2035 = vadd.f32 %v1922, %v2034
    %2036 = vmatprep.mubr.f32.mxu0 %v261
    %2037 = vmatmul.mubr.f32.gmra.mrb[0].mxu0 %v260
    %v2038 = vpop.f32.mrb[0].mxu0
    %v2039 = vadd.f32 %v1926, %v2038
    %v2040 = vpop.f32.mrb[0].mxu0
    %v2041 = vadd.f32 %v1928, %v2040
    %2042 = vdwg.mxu0
    %2043 = vmatprep.subr.mxu0 %v655
    %2044 = vmatpush1.msra.mxu0 %v654
    %2045 = vmatprep.subr.mxu0 %v659
    %2046 = vmatpush1.msra.mxu0 %v658
    %2047 = vmatprep.subr.mxu0 %v663
    %2048 = vmatpush1.msra.mxu0 %v662
    %2049 = vmatprep.subr.mxu0 %v667
    %2050 = vmatpush1.msra.mxu0 %v666
    %2051 = vmatprep.subr.mxu0 %v671
    %2052 = vmatpush1.msra.mxu0 %v670
    %2053 = vmatprep.subr.mxu0 %v675
    %2054 = vmatpush1.msra.mxu0 %v674
    %2055 = vmatprep.subr.mxu0 %v679
    %2056 = vmatpush1.msra.mxu0 %v678
    %2057 = vmatprep.subr.mxu0 %v683
    %2058 = vmatpush1.msra.mxu0 %v682
    %2059 = vmatprep.subr.mxu0 %v687
    %2060 = vmatpush1.msra.mxu0 %v686
    %2061 = vmatprep.subr.mxu0 %v691
    %2062 = vmatpush1.msra.mxu0 %v690
    %2063 = vmatprep.subr.mxu0 %v695
    %2064 = vmatpush1.msra.mxu0 %v694
    %2065 = vmatprep.subr.mxu0 %v699
    %2066 = vmatpush1.msra.mxu0 %v698
    %2067 = vmatprep.subr.mxu0 %v703
    %2068 = vmatpush1.msra.mxu0 %v702
    %2069 = vmatprep.subr.mxu0 %v707
    %2070 = vmatpush1.msra.mxu0 %v706
    %2071 = vmatprep.subr.mxu0 %v711
    %2072 = vmatpush1.msra.mxu0 %v710
    %2073 = vmatprep.subr.mxu0 %v715
    %2074 = vmatpush1.msra.mxu0 %v714
    %2075 = vmatprep.subr.mxu0 %v719
    %2076 = vmatpush1.msra.mxu0 %v718
    %2077 = vmatprep.subr.mxu0 %v723
    %2078 = vmatpush1.msra.mxu0 %v722
    %2079 = vmatprep.subr.mxu0 %v727
    %2080 = vmatpush1.msra.mxu0 %v726
    %2081 = vmatprep.subr.mxu0 %v731
    %2082 = vmatpush1.msra.mxu0 %v730
    %2083 = vmatprep.subr.mxu0 %v735
    %2084 = vmatpush1.msra.mxu0 %v734
    %2085 = vmatprep.subr.mxu0 %v739
    %2086 = vmatpush1.msra.mxu0 %v738
    %2087 = vmatprep.subr.mxu0 %v743
    %2088 = vmatpush1.msra.mxu0 %v742
    %2089 = vmatprep.subr.mxu0 %v747
    %2090 = vmatpush1.msra.mxu0 %v746
    %2091 = vmatprep.subr.mxu0 %v751
    %2092 = vmatpush1.msra.mxu0 %v750
    %2093 = vmatprep.subr.mxu0 %v755
    %2094 = vmatpush1.msra.mxu0 %v754
    %2095 = vmatprep.subr.mxu0 %v759
    %2096 = vmatpush1.msra.mxu0 %v758
    %2097 = vmatprep.subr.mxu0 %v763
    %2098 = vmatpush1.msra.mxu0 %v762
    %2099 = vmatprep.subr.mxu0 %v767
    %2100 = vmatpush1.msra.mxu0 %v766
    %2101 = vmatprep.subr.mxu0 %v771
    %2102 = vmatpush1.msra.mxu0 %v770
    %2103 = vmatprep.subr.mxu0 %v775
    %2104 = vmatpush1.msra.mxu0 %v774
    %2105 = vmatprep.subr.mxu0 %v779
    %2106 = vmatpush1.msra.mxu0 %v778
    %2107 = vmatprep.mubr.f32.mxu0 %v179
    %2108 = vmatmul.mubr.f32.gmra.mrb[0].mxu0 %v178
    %v2109 = vpop.f32.mrb[0].mxu0
    %v2110 = vadd.f32 %v1997, %v2109
    %v2111 = vpop.f32.mrb[0].mxu0
    %v2112 = vadd.f32 %v1999, %v2111
    %2113 = vmatprep.mubr.f32.mxu0 %v191
    %2114 = vmatmul.mubr.f32.gmra.mrb[0].mxu0 %v190
    %v2115 = vpop.f32.mrb[0].mxu0
    %v2116 = vadd.f32 %v2003, %v2115
    %v2117 = vpop.f32.mrb[0].mxu0
    %v2118 = vadd.f32 %v2005, %v2117
    %2119 = vmatprep.mubr.f32.mxu0 %v203
    %2120 = vmatmul.mubr.f32.gmra.mrb[0].mxu0 %v202
    %v2121 = vpop.f32.mrb[0].mxu0
    %v2122 = vadd.f32 %v2009, %v2121
    %v2123 = vpop.f32.mrb[0].mxu0
    %v2124 = vadd.f32 %v2011, %v2123
    %2125 = vmatprep.mubr.f32.mxu0 %v215
    %2126 = vmatmul.mubr.f32.gmra.mrb[0].mxu0 %v214
    %v2127 = vpop.f32.mrb[0].mxu0
    %v2128 = vadd.f32 %v2015, %v2127
    %v2129 = vpop.f32.mrb[0].mxu0
    %v2130 = vadd.f32 %v2017, %v2129
    %2131 = vmatprep.mubr.f32.mxu0 %v227
    %2132 = vmatmul.mubr.f32.gmra.mrb[0].mxu0 %v226
    %v2133 = vpop.f32.mrb[0].mxu0
    %v2134 = vadd.f32 %v2021, %v2133
    %v2135 = vpop.f32.mrb[0].mxu0
    %v2136 = vadd.f32 %v2023, %v2135
    %2137 = vmatprep.mubr.f32.mxu0 %v239
    %2138 = vmatmul.mubr.f32.gmra.mrb[0].mxu0 %v238
    %v2139 = vpop.f32.mrb[0].mxu0
    %v2140 = vadd.f32 %v2027, %v2139
    %v2141 = vpop.f32.mrb[0].mxu0
    %v2142 = vadd.f32 %v2029, %v2141
    %2143 = vmatprep.mubr.f32.mxu0 %v251
    %2144 = vmatmul.mubr.f32.gmra.mrb[0].mxu0 %v250
    %v2145 = vpop.f32.mrb[0].mxu0
    %v2146 = vadd.f32 %v2033, %v2145
    %v2147 = vpop.f32.mrb[0].mxu0
    %v2148 = vadd.f32 %v2035, %v2147
    %2149 = vmatprep.mubr.f32.mxu0 %v263
    %2150 = vmatmul.mubr.f32.gmra.mrb[0].mxu0 %v262
    %v2151 = vpop.f32.mrb[0].mxu0
    %v2152 = vadd.f32 %v2039, %v2151
    %v2153 = vpop.f32.mrb[0].mxu0
    %v2154 = vadd.f32 %v2041, %v2153
    %2155 = vdwg.mxu0
    %2156 = vmatprep.subr.mxu0 %v783
    %2157 = vmatpush1.msra.mxu0 %v782
    %2158 = vmatprep.subr.mxu0 %v787
    %2159 = vmatpush1.msra.mxu0 %v786
    %2160 = vmatprep.subr.mxu0 %v791
    %2161 = vmatpush1.msra.mxu0 %v790
    %2162 = vmatprep.subr.mxu0 %v795
    %2163 = vmatpush1.msra.mxu0 %v794
    %2164 = vmatprep.subr.mxu0 %v799
    %2165 = vmatpush1.msra.mxu0 %v798
    %2166 = vmatprep.subr.mxu0 %v803
    %2167 = vmatpush1.msra.mxu0 %v802
    %2168 = vmatprep.subr.mxu0 %v807
    %2169 = vmatpush1.msra.mxu0 %v806
    %2170 = vmatprep.subr.mxu0 %v811
    %2171 = vmatpush1.msra.mxu0 %v810
    %2172 = vmatprep.subr.mxu0 %v815
    %2173 = vmatpush1.msra.mxu0 %v814
    %2174 = vmatprep.subr.mxu0 %v819
    %2175 = vmatpush1.msra.mxu0 %v818
    %2176 = vmatprep.subr.mxu0 %v823
    %2177 = vmatpush1.msra.mxu0 %v822
    %2178 = vmatprep.subr.mxu0 %v827
    %2179 = vmatpush1.msra.mxu0 %v826
    %2180 = vmatprep.subr.mxu0 %v831
    %2181 = vmatpush1.msra.mxu0 %v830
    %2182 = vmatprep.subr.mxu0 %v835
    %2183 = vmatpush1.msra.mxu0 %v834
    %2184 = vmatprep.subr.mxu0 %v839
    %2185 = vmatpush1.msra.mxu0 %v838
    %2186 = vmatprep.subr.mxu0 %v843
    %2187 = vmatpush1.msra.mxu0 %v842
    %2188 = vmatprep.subr.mxu0 %v847
    %2189 = vmatpush1.msra.mxu0 %v846
    %2190 = vmatprep.subr.mxu0 %v851
    %2191 = vmatpush1.msra.mxu0 %v850
    %2192 = vmatprep.subr.mxu0 %v855
    %2193 = vmatpush1.msra.mxu0 %v854
    %2194 = vmatprep.subr.mxu0 %v859
    %2195 = vmatpush1.msra.mxu0 %v858
    %2196 = vmatprep.subr.mxu0 %v863
    %2197 = vmatpush1.msra.mxu0 %v862
    %2198 = vmatprep.subr.mxu0 %v867
    %2199 = vmatpush1.msra.mxu0 %v866
    %2200 = vmatprep.subr.mxu0 %v871
    %2201 = vmatpush1.msra.mxu0 %v870
    %2202 = vmatprep.subr.mxu0 %v875
    %2203 = vmatpush1.msra.mxu0 %v874
    %2204 = vmatprep.subr.mxu0 %v879
    %2205 = vmatpush1.msra.mxu0 %v878
    %2206 = vmatprep.subr.mxu0 %v883
    %2207 = vmatpush1.msra.mxu0 %v882
    %2208 = vmatprep.subr.mxu0 %v887
    %2209 = vmatpush1.msra.mxu0 %v886
    %2210 = vmatprep.subr.mxu0 %v891
    %2211 = vmatpush1.msra.mxu0 %v890
    %2212 = vmatprep.subr.mxu0 %v895
    %2213 = vmatpush1.msra.mxu0 %v894
    %2214 = vmatprep.subr.mxu0 %v899
    %2215 = vmatpush1.msra.mxu0 %v898
    %2216 = vmatprep.subr.mxu0 %v903
    %2217 = vmatpush1.msra.mxu0 %v902
    %2218 = vmatprep.subr.mxu0 %v907
    %2219 = vmatpush1.msra.mxu0 %v906
    %2220 = vmatprep.mubr.f32.mxu0 %v181
    %2221 = vmatmul.mubr.f32.gmra.mrb[0].mxu0 %v180
    %v2222 = vpop.f32.mrb[0].mxu0
    %v2223 = vadd.f32 %v2110, %v2222
    %v2224 = vpop.f32.mrb[0].mxu0
    %v2225 = vadd.f32 %v2112, %v2224
    %2226 = vmatprep.mubr.f32.mxu0 %v193
    %2227 = vmatmul.mubr.f32.gmra.mrb[0].mxu0 %v192
    %v2228 = vpop.f32.mrb[0].mxu0
    %v2229 = vadd.f32 %v2116, %v2228
    %v2230 = vpop.f32.mrb[0].mxu0
    %v2231 = vadd.f32 %v2118, %v2230
    %2232 = vmatprep.mubr.f32.mxu0 %v205
    %2233 = vmatmul.mubr.f32.gmra.mrb[0].mxu0 %v204
    %v2234 = vpop.f32.mrb[0].mxu0
    %v2235 = vadd.f32 %v2122, %v2234
    %v2236 = vpop.f32.mrb[0].mxu0
    %v2237 = vadd.f32 %v2124, %v2236
    %2238 = vmatprep.mubr.f32.mxu0 %v217
    %2239 = vmatmul.mubr.f32.gmra.mrb[0].mxu0 %v216
    %v2240 = vpop.f32.mrb[0].mxu0
    %v2241 = vadd.f32 %v2128, %v2240
    %v2242 = vpop.f32.mrb[0].mxu0
    %v2243 = vadd.f32 %v2130, %v2242
    %2244 = vmatprep.mubr.f32.mxu0 %v229
    %2245 = vmatmul.mubr.f32.gmra.mrb[0].mxu0 %v228
    %v2246 = vpop.f32.mrb[0].mxu0
    %v2247 = vadd.f32 %v2134, %v2246
    %v2248 = vpop.f32.mrb[0].mxu0
    %v2249 = vadd.f32 %v2136, %v2248
    %2250 = vmatprep.mubr.f32.mxu0 %v241
    %2251 = vmatmul.mubr.f32.gmra.mrb[0].mxu0 %v240
    %v2252 = vpop.f32.mrb[0].mxu0
    %v2253 = vadd.f32 %v2140, %v2252
    %v2254 = vpop.f32.mrb[0].mxu0
    %v2255 = vadd.f32 %v2142, %v2254
    %2256 = vmatprep.mubr.f32.mxu0 %v253
    %2257 = vmatmul.mubr.f32.gmra.mrb[0].mxu0 %v252
    %v2258 = vpop.f32.mrb[0].mxu0
    %v2259 = vadd.f32 %v2146, %v2258
    %v2260 = vpop.f32.mrb[0].mxu0
    %v2261 = vadd.f32 %v2148, %v2260
    %2262 = vmatprep.mubr.f32.mxu0 %v265
    %2263 = vmatmul.mubr.f32.gmra.mrb[0].mxu0 %v264
    %v2264 = vpop.f32.mrb[0].mxu0
    %v2265 = vadd.f32 %v2152, %v2264
    %v2266 = vpop.f32.mrb[0].mxu0
    %v2267 = vadd.f32 %v2154, %v2266
    %2268 = vdwg.mxu0
    %2269 = vmatprep.subr.mxu0 %v911
    %2270 = vmatpush1.msra.mxu0 %v910
    %2271 = vmatprep.subr.mxu0 %v915
    %2272 = vmatpush1.msra.mxu0 %v914
    %2273 = vmatprep.subr.mxu0 %v919
    %2274 = vmatpush1.msra.mxu0 %v918
    %2275 = vmatprep.subr.mxu0 %v923
    %2276 = vmatpush1.msra.mxu0 %v922
    %2277 = vmatprep.subr.mxu0 %v927
    %2278 = vmatpush1.msra.mxu0 %v926
    %2279 = vmatprep.subr.mxu0 %v931
    %2280 = vmatpush1.msra.mxu0 %v930
    %2281 = vmatprep.subr.mxu0 %v935
    %2282 = vmatpush1.msra.mxu0 %v934
    %2283 = vmatprep.subr.mxu0 %v939
    %2284 = vmatpush1.msra.mxu0 %v938
    %2285 = vmatprep.subr.mxu0 %v943
    %2286 = vmatpush1.msra.mxu0 %v942
    %2287 = vmatprep.subr.mxu0 %v947
    %2288 = vmatpush1.msra.mxu0 %v946
    %2289 = vmatprep.subr.mxu0 %v951
    %2290 = vmatpush1.msra.mxu0 %v950
    %2291 = vmatprep.subr.mxu0 %v955
    %2292 = vmatpush1.msra.mxu0 %v954
    %2293 = vmatprep.subr.mxu0 %v959
    %2294 = vmatpush1.msra.mxu0 %v958
    %2295 = vmatprep.subr.mxu0 %v963
    %2296 = vmatpush1.msra.mxu0 %v962
    %2297 = vmatprep.subr.mxu0 %v967
    %2298 = vmatpush1.msra.mxu0 %v966
    %2299 = vmatprep.subr.mxu0 %v971
    %2300 = vmatpush1.msra.mxu0 %v970
    %2301 = vmatprep.subr.mxu0 %v975
    %2302 = vmatpush1.msra.mxu0 %v974
    %2303 = vmatprep.subr.mxu0 %v979
    %2304 = vmatpush1.msra.mxu0 %v978
    %2305 = vmatprep.subr.mxu0 %v983
    %2306 = vmatpush1.msra.mxu0 %v982
    %2307 = vmatprep.subr.mxu0 %v1024
    %2308 = vmatpush1.msra.mxu0 %v1021
    %2309 = vmatprep.subr.mxu0 0.0
    %2310 = vmatpush1.msra.mxu0 0.0
    %2311 = vmatprep.subr.mxu0 0.0
    %2312 = vmatpush1.msra.mxu0 0.0
    %2313 = vmatprep.subr.mxu0 0.0
    %2314 = vmatpush1.msra.mxu0 0.0
    %2315 = vmatprep.subr.mxu0 0.0
    %2316 = vmatpush1.msra.mxu0 0.0
    %2317 = vmatprep.subr.mxu0 0.0
    %2318 = vmatpush1.msra.mxu0 0.0
    %2319 = vmatprep.subr.mxu0 0.0
    %2320 = vmatpush1.msra.mxu0 0.0
    %2321 = vmatprep.subr.mxu0 0.0
    %2322 = vmatpush1.msra.mxu0 0.0
    %2323 = vmatprep.subr.mxu0 0.0
    %2324 = vmatpush1.msra.mxu0 0.0
    %2325 = vmatprep.subr.mxu0 0.0
    %2326 = vmatpush1.msra.mxu0 0.0
    %2327 = vmatprep.subr.mxu0 0.0
    %2328 = vmatpush1.msra.mxu0 0.0
    %2329 = vmatprep.subr.mxu0 0.0
    %2330 = vmatpush1.msra.mxu0 0.0
    %2331 = vmatprep.subr.mxu0 0.0
    %2332 = vmatpush1.msra.mxu0 0.0
    %2333 = vmatprep.mubr.f32.mxu0 %v990
    %2334 = vmatmul.mubr.f32.gmra.mrb[0].mxu0 %v182
    %v2335 = vpop.f32.mrb[0].mxu0
    %v2336 = vadd.f32 %v2223, %v2335
    %v2337 = vpop.f32.mrb[0].mxu0
    %v2338 = vadd.f32 %v2225, %v2337
    %2339 = vmatprep.mubr.f32.mxu0 %v993
    %2340 = vmatmul.mubr.f32.gmra.mrb[0].mxu0 %v194
    %v2341 = vpop.f32.mrb[0].mxu0
    %v2342 = vadd.f32 %v2229, %v2341
    %v2343 = vpop.f32.mrb[0].mxu0
    %v2344 = vadd.f32 %v2231, %v2343
    %2345 = vmatprep.mubr.f32.mxu0 %v996
    %2346 = vmatmul.mubr.f32.gmra.mrb[0].mxu0 %v206
    %v2347 = vpop.f32.mrb[0].mxu0
    %v2348 = vadd.f32 %v2235, %v2347
    %v2349 = vpop.f32.mrb[0].mxu0
    %v2350 = vadd.f32 %v2237, %v2349
    %2351 = vmatprep.mubr.f32.mxu0 %v999
    %2352 = vmatmul.mubr.f32.gmra.mrb[0].mxu0 %v218
    %v2353 = vpop.f32.mrb[0].mxu0
    %v2354 = vadd.f32 %v2241, %v2353
    %v2355 = vpop.f32.mrb[0].mxu0
    %v2356 = vadd.f32 %v2243, %v2355
    %2357 = vmatprep.mubr.f32.mxu0 %v1002
    %2358 = vmatmul.mubr.f32.gmra.mrb[0].mxu0 %v230
    %v2359 = vpop.f32.mrb[0].mxu0
    %v2360 = vadd.f32 %v2247, %v2359
    %v2361 = vpop.f32.mrb[0].mxu0
    %v2362 = vadd.f32 %v2249, %v2361
    %2363 = vmatprep.mubr.f32.mxu0 %v1005
    %2364 = vmatmul.mubr.f32.gmra.mrb[0].mxu0 %v242
    %v2365 = vpop.f32.mrb[0].mxu0
    %v2366 = vadd.f32 %v2253, %v2365
    %v2367 = vpop.f32.mrb[0].mxu0
    %v2368 = vadd.f32 %v2255, %v2367
    %2369 = vmatprep.mubr.f32.mxu0 %v1008
    %2370 = vmatmul.mubr.f32.gmra.mrb[0].mxu0 %v254
    %v2371 = vpop.f32.mrb[0].mxu0
    %v2372 = vadd.f32 %v2259, %v2371
    %v2373 = vpop.f32.mrb[0].mxu0
    %v2374 = vadd.f32 %v2261, %v2373
    %2375 = vmatprep.mubr.f32.mxu0 %v1011
    %2376 = vmatmul.mubr.f32.gmra.mrb[0].mxu0 %v266
    %v2377 = vpop.f32.mrb[0].mxu0
    %v2378 = vadd.f32 %v2265, %v2377
    %v2379 = vpop.f32.mrb[0].mxu0
    %v2380 = vadd.f32 %v2267, %v2379
    %2381 = vdwg.mxu0
    %v2382 = vld [vmem:[#allocation8] sm:$0xf]
    %v2384 = vlaneseq
    %v2385 = vshrl.u32 %v2384, 7
    %v2386 = vsub.s32 0, %v2385
    %v2387 = vrot.slane %v2382, %v2386
    %v2388 = vlaneseq
    %v2389 = vshrl.u32 %v2388, 7
    %v2390 = vsub.s32 1, %v2389
    %v2391 = vrot.slane %v2382, %v2390
    %v2392 = vlaneseq
    %v2393 = vshrl.u32 %v2392, 7
    %v2394 = vsub.s32 2, %v2393
    %v2395 = vrot.slane %v2382, %v2394
    %v2396 = vlaneseq
    %v2397 = vshrl.u32 %v2396, 7
    %v2398 = vsub.s32 3, %v2397
    %v2399 = vrot.slane %v2382, %v2398
    %vm2404 = vcmask 523264
    %v2406 = vsel %vm2404, %v164, 0
    %v2409 = vsel %vm2404, %v165, 0
    %v2412 = vsel %vm2404, %v166, 0
    %v2415 = vsel %vm2404, %v167, 0
    %v2418 = vsel %vm2404, %v168, 0
    %v2421 = vsel %vm2404, %v169, 0
    %v2424 = vsel %vm2404, %v170, 0
    %v2427 = vsel %vm2404, %v171, 0
    %2429 = vmatprep.subr.mxu0 %v1660
    %2430 = vmatpush1.msra.mxu0 %v1658
    %2431 = vmatprep.subr.mxu0 %v1666
    %2432 = vmatpush1.msra.mxu0 %v1664
    %2433 = vmatprep.subr.mxu0 %v1672
    %2434 = vmatpush1.msra.mxu0 %v1670
    %2435 = vmatprep.subr.mxu0 %v1678
    %2436 = vmatpush1.msra.mxu0 %v1676
    %2437 = vmatprep.subr.mxu0 %v1684
    %2438 = vmatpush1.msra.mxu0 %v1682
    %2439 = vmatprep.subr.mxu0 %v1690
    %2440 = vmatpush1.msra.mxu0 %v1688
    %2441 = vmatprep.subr.mxu0 %v1696
    %2442 = vmatpush1.msra.mxu0 %v1694
    %2443 = vmatprep.subr.mxu0 %v1702
    %2444 = vmatpush1.msra.mxu0 %v1700
    %2445 = vmatprep.subr.mxu0 0.0
    %2446 = vmatpush1.msra.mxu0 0.0
    %2447 = vmatprep.subr.mxu0 0.0
    %2448 = vmatpush1.msra.mxu0 0.0
    %2449 = vmatprep.subr.mxu0 0.0
    %2450 = vmatpush1.msra.mxu0 0.0
    %2451 = vmatprep.subr.mxu0 0.0
    %2452 = vmatpush1.msra.mxu0 0.0
    %2453 = vmatprep.subr.mxu0 0.0
    %2454 = vmatpush1.msra.mxu0 0.0
    %2455 = vmatprep.subr.mxu0 0.0
    %2456 = vmatpush1.msra.mxu0 0.0
    %2457 = vmatprep.subr.mxu0 0.0
    %2458 = vmatpush1.msra.mxu0 0.0
    %2459 = vmatprep.subr.mxu0 0.0
    %2460 = vmatpush1.msra.mxu0 0.0
    %2461 = vmatprep.subr.mxu0 0.0
    %2462 = vmatpush1.msra.mxu0 0.0
    %2463 = vmatprep.subr.mxu0 0.0
    %2464 = vmatpush1.msra.mxu0 0.0
    %2465 = vmatprep.subr.mxu0 0.0
    %2466 = vmatpush1.msra.mxu0 0.0
    %2467 = vmatprep.subr.mxu0 0.0
    %2468 = vmatpush1.msra.mxu0 0.0
    %2469 = vmatprep.subr.mxu0 0.0
    %2470 = vmatpush1.msra.mxu0 0.0
    %2471 = vmatprep.subr.mxu0 0.0
    %2472 = vmatpush1.msra.mxu0 0.0
    %2473 = vmatprep.subr.mxu0 0.0
    %2474 = vmatpush1.msra.mxu0 0.0
    %2475 = vmatprep.subr.mxu0 0.0
    %2476 = vmatpush1.msra.mxu0 0.0
    %2477 = vmatprep.subr.mxu0 0.0
    %2478 = vmatpush1.msra.mxu0 0.0
    %2479 = vmatprep.subr.mxu0 0.0
    %2480 = vmatpush1.msra.mxu0 0.0
    %2481 = vmatprep.subr.mxu0 0.0
    %2482 = vmatpush1.msra.mxu0 0.0
    %2483 = vmatprep.subr.mxu0 0.0
    %2484 = vmatpush1.msra.mxu0 0.0
    %2485 = vmatprep.subr.mxu0 0.0
    %2486 = vmatpush1.msra.mxu0 0.0
    %2487 = vmatprep.subr.mxu0 0.0
    %2488 = vmatpush1.msra.mxu0 0.0
    %2489 = vmatprep.subr.mxu0 0.0
    %2490 = vmatpush1.msra.mxu0 0.0
    %2491 = vmatprep.subr.mxu0 0.0
    %2492 = vmatpush1.msra.mxu0 0.0
    %2493 = vmatprep.mubr.f32.mxu0 0.0
    %2494 = vmatmul.mubr.f32.gmra.mrb[0].mxu0 %v2406
    %v2495 = vpop.f32.mrb[0].mxu0
    %v2496 = vadd.f32 %v2387, %v2495
    %v2497 = vpop.f32.mrb[0].mxu0
    %v2498 = vadd.f32 %v2391, %v2497
    %2499 = vmatprep.mubr.f32.mxu0 0.0
    %2500 = vmatmul.mubr.f32.gmra.mrb[0].mxu0 %v2409
    %v2501 = vpop.f32.mrb[0].mxu0
    %v2502 = vadd.f32 %v2387, %v2501
    %v2503 = vpop.f32.mrb[0].mxu0
    %v2504 = vadd.f32 %v2391, %v2503
    %2505 = vmatprep.mubr.f32.mxu0 0.0
    %2506 = vmatmul.mubr.f32.gmra.mrb[0].mxu0 %v2412
    %v2507 = vpop.f32.mrb[0].mxu0
    %v2508 = vadd.f32 %v2387, %v2507
    %v2509 = vpop.f32.mrb[0].mxu0
    %v2510 = vadd.f32 %v2391, %v2509
    %2511 = vmatprep.mubr.f32.mxu0 0.0
    %2512 = vmatmul.mubr.f32.gmra.mrb[0].mxu0 %v2415
    %v2513 = vpop.f32.mrb[0].mxu0
    %v2514 = vadd.f32 %v2387, %v2513
    %v2515 = vpop.f32.mrb[0].mxu0
    %v2516 = vadd.f32 %v2391, %v2515
    %2517 = vmatprep.mubr.f32.mxu0 0.0
    %2518 = vmatmul.mubr.f32.gmra.mrb[0].mxu0 %v2418
    %v2519 = vpop.f32.mrb[0].mxu0
    %v2520 = vadd.f32 %v2387, %v2519
    %v2521 = vpop.f32.mrb[0].mxu0
    %v2522 = vadd.f32 %v2391, %v2521
    %2523 = vmatprep.mubr.f32.mxu0 0.0
    %2524 = vmatmul.mubr.f32.gmra.mrb[0].mxu0 %v2421
    %v2525 = vpop.f32.mrb[0].mxu0
    %v2526 = vadd.f32 %v2387, %v2525
    %v2527 = vpop.f32.mrb[0].mxu0
    %v2528 = vadd.f32 %v2391, %v2527
    %2529 = vmatprep.mubr.f32.mxu0 0.0
    %2530 = vmatmul.mubr.f32.gmra.mrb[0].mxu0 %v2424
    %v2531 = vpop.f32.mrb[0].mxu0
    %v2532 = vadd.f32 %v2387, %v2531
    %v2533 = vpop.f32.mrb[0].mxu0
    %v2534 = vadd.f32 %v2391, %v2533
    %2535 = vmatprep.mubr.f32.mxu0 0.0
    %2536 = vmatmul.mubr.f32.gmra.mrb[0].mxu0 %v2427
    %v2537 = vpop.f32.mrb[0].mxu0
    %v2538 = vadd.f32 %v2387, %v2537
    %v2539 = vpop.f32.mrb[0].mxu0
    %v2540 = vadd.f32 %v2391, %v2539
    %2541 = vdwg.mxu0
    %2542 = vmatprep.subr.mxu0 %v2338
    %2543 = vmatpush1.msra.mxu0 %v2336
    %2544 = vmatprep.subr.mxu0 %v2344
    %2545 = vmatpush1.msra.mxu0 %v2342
    %2546 = vmatprep.subr.mxu0 %v2350
    %2547 = vmatpush1.msra.mxu0 %v2348
    %2548 = vmatprep.subr.mxu0 %v2356
    %2549 = vmatpush1.msra.mxu0 %v2354
    %2550 = vmatprep.subr.mxu0 %v2362
    %2551 = vmatpush1.msra.mxu0 %v2360
    %2552 = vmatprep.subr.mxu0 %v2368
    %2553 = vmatpush1.msra.mxu0 %v2366
    %2554 = vmatprep.subr.mxu0 %v2374
    %2555 = vmatpush1.msra.mxu0 %v2372
    %2556 = vmatprep.subr.mxu0 %v2380
    %2557 = vmatpush1.msra.mxu0 %v2378
    %2558 = vmatprep.subr.mxu0 0.0
    %2559 = vmatpush1.msra.mxu0 0.0
    %2560 = vmatprep.subr.mxu0 0.0
    %2561 = vmatpush1.msra.mxu0 0.0
    %2562 = vmatprep.subr.mxu0 0.0
    %2563 = vmatpush1.msra.mxu0 0.0
    %2564 = vmatprep.subr.mxu0 0.0
    %2565 = vmatpush1.msra.mxu0 0.0
    %2566 = vmatprep.subr.mxu0 0.0
    %2567 = vmatpush1.msra.mxu0 0.0
    %2568 = vmatprep.subr.mxu0 0.0
    %2569 = vmatpush1.msra.mxu0 0.0
    %2570 = vmatprep.subr.mxu0 0.0
    %2571 = vmatpush1.msra.mxu0 0.0
    %2572 = vmatprep.subr.mxu0 0.0
    %2573 = vmatpush1.msra.mxu0 0.0
    %2574 = vmatprep.subr.mxu0 0.0
    %2575 = vmatpush1.msra.mxu0 0.0
    %2576 = vmatprep.subr.mxu0 0.0
    %2577 = vmatpush1.msra.mxu0 0.0
    %2578 = vmatprep.subr.mxu0 0.0
    %2579 = vmatpush1.msra.mxu0 0.0
    %2580 = vmatprep.subr.mxu0 0.0
    %2581 = vmatpush1.msra.mxu0 0.0
    %2582 = vmatprep.subr.mxu0 0.0
    %2583 = vmatpush1.msra.mxu0 0.0
    %2584 = vmatprep.subr.mxu0 0.0
    %2585 = vmatpush1.msra.mxu0 0.0
    %2586 = vmatprep.subr.mxu0 0.0
    %2587 = vmatpush1.msra.mxu0 0.0
    %2588 = vmatprep.subr.mxu0 0.0
    %2589 = vmatpush1.msra.mxu0 0.0
    %2590 = vmatprep.subr.mxu0 0.0
    %2591 = vmatpush1.msra.mxu0 0.0
    %2592 = vmatprep.subr.mxu0 0.0
    %2593 = vmatpush1.msra.mxu0 0.0
    %2594 = vmatprep.subr.mxu0 0.0
    %2595 = vmatpush1.msra.mxu0 0.0
    %2596 = vmatprep.subr.mxu0 0.0
    %2597 = vmatpush1.msra.mxu0 0.0
    %2598 = vmatprep.subr.mxu0 0.0
    %2599 = vmatpush1.msra.mxu0 0.0
    %2600 = vmatprep.subr.mxu0 0.0
    %2601 = vmatpush1.msra.mxu0 0.0
    %2602 = vmatprep.subr.mxu0 0.0
    %2603 = vmatpush1.msra.mxu0 0.0
    %2604 = vmatprep.subr.mxu0 0.0
    %2605 = vmatpush1.msra.mxu0 0.0
    %2606 = vmatprep.mubr.f32.mxu0 0.0
    %2607 = vmatmul.mubr.f32.gmra.mrb[0].mxu0 %v2406
    %v2608 = vpop.f32.mrb[0].mxu0
    %v2609 = vadd.f32 %v2395, %v2608
    %v2610 = vpop.f32.mrb[0].mxu0
    %v2611 = vadd.f32 %v2399, %v2610
    %2612 = vmatprep.mubr.f32.mxu0 0.0
    %2613 = vmatmul.mubr.f32.gmra.mrb[0].mxu0 %v2409
    %v2614 = vpop.f32.mrb[0].mxu0
    %v2615 = vadd.f32 %v2395, %v2614
    %v2616 = vpop.f32.mrb[0].mxu0
    %v2617 = vadd.f32 %v2399, %v2616
    %2618 = vmatprep.mubr.f32.mxu0 0.0
    %2619 = vmatmul.mubr.f32.gmra.mrb[0].mxu0 %v2412
    %v2620 = vpop.f32.mrb[0].mxu0
    %v2621 = vadd.f32 %v2395, %v2620
    %v2622 = vpop.f32.mrb[0].mxu0
    %v2623 = vadd.f32 %v2399, %v2622
    %2624 = vmatprep.mubr.f32.mxu0 0.0
    %2625 = vmatmul.mubr.f32.gmra.mrb[0].mxu0 %v2415
    %v2626 = vpop.f32.mrb[0].mxu0
    %v2627 = vadd.f32 %v2395, %v2626
    %v2628 = vpop.f32.mrb[0].mxu0
    %v2629 = vadd.f32 %v2399, %v2628
    %2630 = vmatprep.mubr.f32.mxu0 0.0
    %2631 = vmatmul.mubr.f32.gmra.mrb[0].mxu0 %v2418
    %v2632 = vpop.f32.mrb[0].mxu0
    %v2633 = vadd.f32 %v2395, %v2632
    %v2634 = vpop.f32.mrb[0].mxu0
    %v2635 = vadd.f32 %v2399, %v2634
    %2636 = vmatprep.mubr.f32.mxu0 0.0
    %2637 = vmatmul.mubr.f32.gmra.mrb[0].mxu0 %v2421
    %v2638 = vpop.f32.mrb[0].mxu0
    %v2639 = vadd.f32 %v2395, %v2638
    %v2640 = vpop.f32.mrb[0].mxu0
    %v2641 = vadd.f32 %v2399, %v2640
    %2642 = vmatprep.mubr.f32.mxu0 0.0
    %2643 = vmatmul.mubr.f32.gmra.mrb[0].mxu0 %v2424
    %v2644 = vpop.f32.mrb[0].mxu0
    %v2645 = vadd.f32 %v2395, %v2644
    %v2646 = vpop.f32.mrb[0].mxu0
    %v2647 = vadd.f32 %v2399, %v2646
    %2648 = vmatprep.mubr.f32.mxu0 0.0
    %2649 = vmatmul.mubr.f32.gmra.mrb[0].mxu0 %v2427
    %v2650 = vpop.f32.mrb[0].mxu0
    %v2651 = vadd.f32 %v2395, %v2650
    %v2652 = vpop.f32.mrb[0].mxu0
    %v2653 = vadd.f32 %v2399, %v2652
    %2654 = vdwg.mxu0
    %v2655 = vxor.u32 %v2496, 2147483648
    %v2656 = vxor.u32 %v2498, 2147483648
    %v2657 = vxor.u32 %v2609, 2147483648
    %v2658 = vxor.u32 %v2611, 2147483648
    %v2659 = vxor.u32 %v2502, 2147483648
    %v2660 = vxor.u32 %v2504, 2147483648
    %v2661 = vxor.u32 %v2615, 2147483648
    %v2662 = vxor.u32 %v2617, 2147483648
    %v2663 = vxor.u32 %v2508, 2147483648
    %v2664 = vxor.u32 %v2510, 2147483648
    %v2665 = vxor.u32 %v2621, 2147483648
    %v2666 = vxor.u32 %v2623, 2147483648
    %v2667 = vxor.u32 %v2514, 2147483648
    %v2668 = vxor.u32 %v2516, 2147483648
    %v2669 = vxor.u32 %v2627, 2147483648
    %v2670 = vxor.u32 %v2629, 2147483648
    %v2671 = vxor.u32 %v2520, 2147483648
    %v2672 = vxor.u32 %v2522, 2147483648
    %v2673 = vxor.u32 %v2633, 2147483648
    %v2674 = vxor.u32 %v2635, 2147483648
    %v2675 = vxor.u32 %v2526, 2147483648
    %v2676 = vxor.u32 %v2528, 2147483648
    %v2677 = vxor.u32 %v2639, 2147483648
    %v2678 = vxor.u32 %v2641, 2147483648
    %v2679 = vxor.u32 %v2532, 2147483648
    %v2680 = vxor.u32 %v2534, 2147483648
    %v2681 = vxor.u32 %v2645, 2147483648
    %v2682 = vxor.u32 %v2647, 2147483648
    %v2683 = vxor.u32 %v2538, 2147483648
    %v2684 = vxor.u32 %v2540, 2147483648
    %v2685 = vxor.u32 %v2651, 2147483648
    %v2686 = vxor.u32 %v2653, 2147483648
    %v2687 = vmul.f32 %v2655, 1.442695
    %v2688 = vpow.pop %v2687
    %v2689 = vmul.f32 %v2656, 1.442695
    %v2690 = vpow.pop %v2689
    %v2691 = vmul.f32 %v2657, 1.442695
    %v2692 = vpow.pop %v2691
    %v2693 = vmul.f32 %v2658, 1.442695
    %v2694 = vpow.pop %v2693
    %v2695 = vmul.f32 %v2659, 1.442695
    %v2696 = vpow.pop %v2695
    %v2697 = vmul.f32 %v2660, 1.442695
    %v2698 = vpow.pop %v2697
    %v2699 = vmul.f32 %v2661, 1.442695
    %v2700 = vpow.pop %v2699
    %v2701 = vmul.f32 %v2662, 1.442695
    %v2702 = vpow.pop %v2701
    %v2703 = vmul.f32 %v2663, 1.442695
    %v2704 = vpow.pop %v2703
    %v2705 = vmul.f32 %v2664, 1.442695
    %v2706 = vpow.pop %v2705
    %v2707 = vmul.f32 %v2665, 1.442695
    %v2708 = vpow.pop %v2707
    %v2709 = vmul.f32 %v2666, 1.442695
    %v2710 = vpow.pop %v2709
    %v2711 = vmul.f32 %v2667, 1.442695
    %v2712 = vpow.pop %v2711
    %v2713 = vmul.f32 %v2668, 1.442695
    %v2714 = vpow.pop %v2713
    %v2715 = vmul.f32 %v2669, 1.442695
    %v2716 = vpow.pop %v2715
    %v2717 = vmul.f32 %v2670, 1.442695
    %v2718 = vpow.pop %v2717
    %v2719 = vmul.f32 %v2671, 1.442695
    %v2720 = vpow.pop %v2719
    %v2721 = vmul.f32 %v2672, 1.442695
    %v2722 = vpow.pop %v2721
    %v2723 = vmul.f32 %v2673, 1.442695
    %v2724 = vpow.pop %v2723
    %v2725 = vmul.f32 %v2674, 1.442695
    %v2726 = vpow.pop %v2725
    %v2727 = vmul.f32 %v2675, 1.442695
    %v2728 = vpow.pop %v2727
    %v2729 = vmul.f32 %v2676, 1.442695
    %v2730 = vpow.pop %v2729
    %v2731 = vmul.f32 %v2677, 1.442695
    %v2732 = vpow.pop %v2731
    %v2733 = vmul.f32 %v2678, 1.442695
    %v2734 = vpow.pop %v2733
    %v2735 = vmul.f32 %v2679, 1.442695
    %v2736 = vpow.pop %v2735
    %v2737 = vmul.f32 %v2680, 1.442695
    %v2738 = vpow.pop %v2737
    %v2739 = vmul.f32 %v2681, 1.442695
    %v2740 = vpow.pop %v2739
    %v2741 = vmul.f32 %v2682, 1.442695
    %v2742 = vpow.pop %v2741
    %v2743 = vmul.f32 %v2683, 1.442695
    %v2744 = vpow.pop %v2743
    %v2745 = vmul.f32 %v2684, 1.442695
    %v2746 = vpow.pop %v2745
    %v2747 = vmul.f32 %v2685, 1.442695
    %v2748 = vpow.pop %v2747
    %v2749 = vmul.f32 %v2686, 1.442695
    %v2750 = vpow.pop %v2749
    %v2751 = vadd.f32 %v2688, 1.0
    %v2752 = vadd.f32 %v2690, 1.0
    %v2753 = vadd.f32 %v2692, 1.0
    %v2754 = vadd.f32 %v2694, 1.0
    %v2755 = vadd.f32 %v2696, 1.0
    %v2756 = vadd.f32 %v2698, 1.0
    %v2757 = vadd.f32 %v2700, 1.0
    %v2758 = vadd.f32 %v2702, 1.0
    %v2759 = vadd.f32 %v2704, 1.0
    %v2760 = vadd.f32 %v2706, 1.0
    %v2761 = vadd.f32 %v2708, 1.0
    %v2762 = vadd.f32 %v2710, 1.0
    %v2763 = vadd.f32 %v2712, 1.0
    %v2764 = vadd.f32 %v2714, 1.0
    %v2765 = vadd.f32 %v2716, 1.0
    %v2766 = vadd.f32 %v2718, 1.0
    %v2767 = vadd.f32 %v2720, 1.0
    %v2768 = vadd.f32 %v2722, 1.0
    %v2769 = vadd.f32 %v2724, 1.0
    %v2770 = vadd.f32 %v2726, 1.0
    %v2771 = vadd.f32 %v2728, 1.0
    %v2772 = vadd.f32 %v2730, 1.0
    %v2773 = vadd.f32 %v2732, 1.0
    %v2774 = vadd.f32 %v2734, 1.0
    %v2775 = vadd.f32 %v2736, 1.0
    %v2776 = vadd.f32 %v2738, 1.0
    %v2777 = vadd.f32 %v2740, 1.0
    %v2778 = vadd.f32 %v2742, 1.0
    %v2779 = vadd.f32 %v2744, 1.0
    %v2780 = vadd.f32 %v2746, 1.0
    %v2781 = vadd.f32 %v2748, 1.0
    %v2782 = vadd.f32 %v2750, 1.0
    %v2783 = vrcp.pop %v2751
    %v2784 = vmul.f32 1.0, %v2783
    %v2785 = vrcp.pop %v2752
    %v2786 = vmul.f32 1.0, %v2785
    %v2787 = vrcp.pop %v2753
    %v2788 = vmul.f32 1.0, %v2787
    %v2789 = vrcp.pop %v2754
    %v2790 = vmul.f32 1.0, %v2789
    %v2791 = vrcp.pop %v2755
    %v2792 = vmul.f32 1.0, %v2791
    %v2793 = vrcp.pop %v2756
    %v2794 = vmul.f32 1.0, %v2793
    %v2795 = vrcp.pop %v2757
    %v2796 = vmul.f32 1.0, %v2795
    %v2797 = vrcp.pop %v2758
    %v2798 = vmul.f32 1.0, %v2797
    %v2799 = vrcp.pop %v2759
    %v2800 = vmul.f32 1.0, %v2799
    %v2801 = vrcp.pop %v2760
    %v2802 = vmul.f32 1.0, %v2801
    %v2803 = vrcp.pop %v2761
    %v2804 = vmul.f32 1.0, %v2803
    %v2805 = vrcp.pop %v2762
    %v2806 = vmul.f32 1.0, %v2805
    %v2807 = vrcp.pop %v2763
    %v2808 = vmul.f32 1.0, %v2807
    %v2809 = vrcp.pop %v2764
    %v2810 = vmul.f32 1.0, %v2809
    %v2811 = vrcp.pop %v2765
    %v2812 = vmul.f32 1.0, %v2811
    %v2813 = vrcp.pop %v2766
    %v2814 = vmul.f32 1.0, %v2813
    %v2815 = vrcp.pop %v2767
    %v2816 = vmul.f32 1.0, %v2815
    %v2817 = vrcp.pop %v2768
    %v2818 = vmul.f32 1.0, %v2817
    %v2819 = vrcp.pop %v2769
    %v2820 = vmul.f32 1.0, %v2819
    %v2821 = vrcp.pop %v2770
    %v2822 = vmul.f32 1.0, %v2821
    %v2823 = vrcp.pop %v2771
    %v2824 = vmul.f32 1.0, %v2823
    %v2825 = vrcp.pop %v2772
    %v2826 = vmul.f32 1.0, %v2825
    %v2827 = vrcp.pop %v2773
    %v2828 = vmul.f32 1.0, %v2827
    %v2829 = vrcp.pop %v2774
    %v2830 = vmul.f32 1.0, %v2829
    %v2831 = vrcp.pop %v2775
    %v2832 = vmul.f32 1.0, %v2831
    %v2833 = vrcp.pop %v2776
    %v2834 = vmul.f32 1.0, %v2833
    %v2835 = vrcp.pop %v2777
    %v2836 = vmul.f32 1.0, %v2835
    %v2837 = vrcp.pop %v2778
    %v2838 = vmul.f32 1.0, %v2837
    %v2839 = vrcp.pop %v2779
    %v2840 = vmul.f32 1.0, %v2839
    %v2841 = vrcp.pop %v2780
    %v2842 = vmul.f32 1.0, %v2841
    %v2843 = vrcp.pop %v2781
    %v2844 = vmul.f32 1.0, %v2843
    %v2845 = vrcp.pop %v2782
    %v2846 = vmul.f32 1.0, %v2845
    %v2847 = vld [vmem:[#allocation10] sm:$0xff]
    %v2848 = vld [vmem:[#allocation10 + $0x8] sm:$0xff]
    %v2849 = vld [vmem:[#allocation10 + $0x10] sm:$0xff]
    %v2850 = vld [vmem:[#allocation10 + $0x18] sm:$0xff]
    %v2851 = vld [vmem:[#allocation10 + $0x20] sm:$0xff]
    %v2852 = vld [vmem:[#allocation10 + $0x28] sm:$0xff]
    %v2853 = vld [vmem:[#allocation10 + $0x30] sm:$0xff]
    %v2854 = vld [vmem:[#allocation10 + $0x38] sm:$0xff]
    %v2855 = vld [vmem:[#allocation10 + $0x40] sm:$0xff]
    %v2856 = vld [vmem:[#allocation10 + $0x48] sm:$0xff]
    %v2857 = vld [vmem:[#allocation10 + $0x50] sm:$0xff]
    %v2858 = vld [vmem:[#allocation10 + $0x58] sm:$0xff]
    %v2859 = vld [vmem:[#allocation10 + $0x60] sm:$0xff]
    %v2860 = vld [vmem:[#allocation10 + $0x68] sm:$0xff]
    %v2861 = vld [vmem:[#allocation10 + $0x70] sm:$0xff]
    %v2862 = vld [vmem:[#allocation10 + $0x78] sm:$0xff]
    %v2863 = vld [vmem:[#allocation10 + $0x80] sm:$0xff]
    %v2864 = vld [vmem:[#allocation10 + $0x88] sm:$0xff]
    %v2865 = vld [vmem:[#allocation10 + $0x90] sm:$0xff]
    %v2866 = vld [vmem:[#allocation10 + $0x98] sm:$0xff]
    %v2867 = vld [vmem:[#allocation10 + $0xa0] sm:$0xff]
    %v2868 = vld [vmem:[#allocation10 + $0xa8] sm:$0xff]
    %v2869 = vld [vmem:[#allocation10 + $0xb0] sm:$0xff]
    %v2870 = vld [vmem:[#allocation10 + $0xb8] sm:$0xff]
    %v2871 = vld [vmem:[#allocation10 + $0xc0] sm:$0xff]
    %v2872 = vld [vmem:[#allocation10 + $0xc8] sm:$0xff]
    %v2873 = vld [vmem:[#allocation10 + $0xd0] sm:$0xff]
    %v2874 = vld [vmem:[#allocation10 + $0xd8] sm:$0xff]
    %v2875 = vld [vmem:[#allocation10 + $0xe0] sm:$0xff]
    %v2876 = vld [vmem:[#allocation10 + $0xe8] sm:$0xff]
    %v2877 = vld [vmem:[#allocation10 + $0xf0] sm:$0xff]
    %v2878 = vld [vmem:[#allocation10 + $0xf8] sm:$0xff]
    %v2879 = vld [vmem:[#allocation10 + $0x100] sm:$0xff]
    %v2880 = vld [vmem:[#allocation10 + $0x108] sm:$0xff]
    %v2881 = vld [vmem:[#allocation10 + $0x110] sm:$0xff]
    %v2882 = vld [vmem:[#allocation10 + $0x118] sm:$0xff]
    %v2883 = vld [vmem:[#allocation10 + $0x120] sm:$0xff]
    %v2884 = vld [vmem:[#allocation10 + $0x128] sm:$0xff]
    %v2885 = vld [vmem:[#allocation10 + $0x130] sm:$0xff]
    %v2886 = vld [vmem:[#allocation10 + $0x138] sm:$0xff]
    %v2887 = vld [vmem:[#allocation10 + $0x140] sm:$0xff]
    %v2888 = vld [vmem:[#allocation10 + $0x148] sm:$0xff]
    %v2889 = vld [vmem:[#allocation10 + $0x150] sm:$0xff]
    %v2890 = vld [vmem:[#allocation10 + $0x158] sm:$0xff]
    %v2891 = vld [vmem:[#allocation10 + $0x160] sm:$0xff]
    %v2892 = vld [vmem:[#allocation10 + $0x168] sm:$0xff]
    %v2893 = vld [vmem:[#allocation10 + $0x170] sm:$0xff]
    %v2894 = vld [vmem:[#allocation10 + $0x178] sm:$0xff]
    %v2895 = vld [vmem:[#allocation10 + $0x180] sm:$0xff]
    %v2896 = vld [vmem:[#allocation10 + $0x188] sm:$0xff]
    %v2897 = vld [vmem:[#allocation10 + $0x190] sm:$0xff]
    %v2898 = vld [vmem:[#allocation10 + $0x198] sm:$0xff]
    %v2899 = vld [vmem:[#allocation10 + $0x1a0] sm:$0xff]
    %v2900 = vld [vmem:[#allocation10 + $0x1a8] sm:$0xff]
    %v2901 = vld [vmem:[#allocation10 + $0x1b0] sm:$0xff]
    %v2902 = vld [vmem:[#allocation10 + $0x1b8] sm:$0xff]
    %v2903 = vld [vmem:[#allocation10 + $0x1c0] sm:$0xff]
    %v2904 = vld [vmem:[#allocation10 + $0x1c8] sm:$0xff]
    %v2905 = vld [vmem:[#allocation10 + $0x1d0] sm:$0xff]
    %v2906 = vld [vmem:[#allocation10 + $0x1d8] sm:$0xff]
    %v2907 = vld [vmem:[#allocation10 + $0x1e0] sm:$0xff]
    %v2908 = vld [vmem:[#allocation10 + $0x1e8] sm:$0xff]
    %v2909 = vld [vmem:[#allocation10 + $0x1f0] sm:$0xff]
    %v2910 = vld [vmem:[#allocation10 + $0x1f8] sm:$0xff]
    %2911 = vmatprep.subr.mxu0 0.0
    %2912 = vmatpush1.msra.mxu0 %v2847
    %2913 = vmatprep.subr.mxu0 0.0
    %2914 = vmatpush1.msra.mxu0 %v2848
    %2915 = vmatprep.subr.mxu0 0.0
    %2916 = vmatpush1.msra.mxu0 %v2849
    %2917 = vmatprep.subr.mxu0 0.0
    %2918 = vmatpush1.msra.mxu0 %v2850
    %2919 = vmatprep.subr.mxu0 0.0
    %2920 = vmatpush1.msra.mxu0 %v2851
    %2921 = vmatprep.subr.mxu0 0.0
    %2922 = vmatpush1.msra.mxu0 %v2852
    %2923 = vmatprep.subr.mxu0 0.0
    %2924 = vmatpush1.msra.mxu0 %v2853
    %2925 = vmatprep.subr.mxu0 0.0
    %2926 = vmatpush1.msra.mxu0 %v2854
    %2927 = vmatprep.subr.mxu0 0.0
    %2928 = vmatpush1.msra.mxu0 %v2855
    %2929 = vmatprep.subr.mxu0 0.0
    %2930 = vmatpush1.msra.mxu0 %v2856
    %2931 = vmatprep.subr.mxu0 0.0
    %2932 = vmatpush1.msra.mxu0 %v2857
    %2933 = vmatprep.subr.mxu0 0.0
    %2934 = vmatpush1.msra.mxu0 %v2858
    %2935 = vmatprep.subr.mxu0 0.0
    %2936 = vmatpush1.msra.mxu0 %v2859
    %2937 = vmatprep.subr.mxu0 0.0
    %2938 = vmatpush1.msra.mxu0 %v2860
    %2939 = vmatprep.subr.mxu0 0.0
    %2940 = vmatpush1.msra.mxu0 %v2861
    %2941 = vmatprep.subr.mxu0 0.0
    %2942 = vmatpush1.msra.mxu0 %v2862
    %2943 = vmatprep.subr.mxu0 0.0
    %2944 = vmatpush1.msra.mxu0 %v2863
    %2945 = vmatprep.subr.mxu0 0.0
    %2946 = vmatpush1.msra.mxu0 %v2864
    %2947 = vmatprep.subr.mxu0 0.0
    %2948 = vmatpush1.msra.mxu0 %v2865
    %2949 = vmatprep.subr.mxu0 0.0
    %2950 = vmatpush1.msra.mxu0 %v2866
    %2951 = vmatprep.subr.mxu0 0.0
    %2952 = vmatpush1.msra.mxu0 %v2867
    %2953 = vmatprep.subr.mxu0 0.0
    %2954 = vmatpush1.msra.mxu0 %v2868
    %2955 = vmatprep.subr.mxu0 0.0
    %2956 = vmatpush1.msra.mxu0 %v2869
    %2957 = vmatprep.subr.mxu0 0.0
    %2958 = vmatpush1.msra.mxu0 %v2870
    %2959 = vmatprep.subr.mxu0 0.0
    %2960 = vmatpush1.msra.mxu0 %v2871
    %2961 = vmatprep.subr.mxu0 0.0
    %2962 = vmatpush1.msra.mxu0 %v2872
    %2963 = vmatprep.subr.mxu0 0.0
    %2964 = vmatpush1.msra.mxu0 %v2873
    %2965 = vmatprep.subr.mxu0 0.0
    %2966 = vmatpush1.msra.mxu0 %v2874
    %2967 = vmatprep.subr.mxu0 0.0
    %2968 = vmatpush1.msra.mxu0 %v2875
    %2969 = vmatprep.subr.mxu0 0.0
    %2970 = vmatpush1.msra.mxu0 %v2876
    %2971 = vmatprep.subr.mxu0 0.0
    %2972 = vmatpush1.msra.mxu0 %v2877
    %2973 = vmatprep.subr.mxu0 0.0
    %2974 = vmatpush1.msra.mxu0 %v2878
    %2975 = vmatprep.mubr.f32.mxu0 %v2786
    %2976 = vmatmul.mubr.f32.gmra.mrb[0].mxu0 %v2784
    %v2977 = vpop.f32.mrb[0].mxu0
    %v2978 = vadd.f32 0.0, %v2977
    %v2979 = vpop.f32.mrb[0].mxu0
    %2980 = vmatprep.mubr.f32.mxu0 %v2794
    %2981 = vmatmul.mubr.f32.gmra.mrb[0].mxu0 %v2792
    %v2982 = vpop.f32.mrb[0].mxu0
    %v2983 = vadd.f32 0.0, %v2982
    %v2984 = vpop.f32.mrb[0].mxu0
    %2985 = vmatprep.mubr.f32.mxu0 %v2802
    %2986 = vmatmul.mubr.f32.gmra.mrb[0].mxu0 %v2800
    %v2987 = vpop.f32.mrb[0].mxu0
    %v2988 = vadd.f32 0.0, %v2987
    %v2989 = vpop.f32.mrb[0].mxu0
    %2990 = vmatprep.mubr.f32.mxu0 %v2810
    %2991 = vmatmul.mubr.f32.gmra.mrb[0].mxu0 %v2808
    %v2992 = vpop.f32.mrb[0].mxu0
    %v2993 = vadd.f32 0.0, %v2992
    %v2994 = vpop.f32.mrb[0].mxu0
    %2995 = vmatprep.mubr.f32.mxu0 %v2818
    %2996 = vmatmul.mubr.f32.gmra.mrb[0].mxu0 %v2816
    %v2997 = vpop.f32.mrb[0].mxu0
    %v2998 = vadd.f32 0.0, %v2997
    %v2999 = vpop.f32.mrb[0].mxu0
    %3000 = vmatprep.mubr.f32.mxu0 %v2826
    %3001 = vmatmul.mubr.f32.gmra.mrb[0].mxu0 %v2824
    %v3002 = vpop.f32.mrb[0].mxu0
    %v3003 = vadd.f32 0.0, %v3002
    %v3004 = vpop.f32.mrb[0].mxu0
    %3005 = vmatprep.mubr.f32.mxu0 %v2834
    %3006 = vmatmul.mubr.f32.gmra.mrb[0].mxu0 %v2832
    %v3007 = vpop.f32.mrb[0].mxu0
    %v3008 = vadd.f32 0.0, %v3007
    %v3009 = vpop.f32.mrb[0].mxu0
    %3010 = vmatprep.mubr.f32.mxu0 %v2842
    %3011 = vmatmul.mubr.f32.gmra.mrb[0].mxu0 %v2840
    %v3012 = vpop.f32.mrb[0].mxu0
    %v3013 = vadd.f32 0.0, %v3012
    %v3014 = vpop.f32.mrb[0].mxu0
    %3015 = vdwg.mxu0
    %3016 = vmatprep.subr.mxu0 0.0
    %3017 = vmatpush1.msra.mxu0 %v2879
    %3018 = vmatprep.subr.mxu0 0.0
    %3019 = vmatpush1.msra.mxu0 %v2880
    %3020 = vmatprep.subr.mxu0 0.0
    %3021 = vmatpush1.msra.mxu0 %v2881
    %3022 = vmatprep.subr.mxu0 0.0
    %3023 = vmatpush1.msra.mxu0 %v2882
    %3024 = vmatprep.subr.mxu0 0.0
    %3025 = vmatpush1.msra.mxu0 %v2883
    %3026 = vmatprep.subr.mxu0 0.0
    %3027 = vmatpush1.msra.mxu0 %v2884
    %3028 = vmatprep.subr.mxu0 0.0
    %3029 = vmatpush1.msra.mxu0 %v2885
    %3030 = vmatprep.subr.mxu0 0.0
    %3031 = vmatpush1.msra.mxu0 %v2886
    %3032 = vmatprep.subr.mxu0 0.0
    %3033 = vmatpush1.msra.mxu0 %v2887
    %3034 = vmatprep.subr.mxu0 0.0
    %3035 = vmatpush1.msra.mxu0 %v2888
    %3036 = vmatprep.subr.mxu0 0.0
    %3037 = vmatpush1.msra.mxu0 %v2889
    %3038 = vmatprep.subr.mxu0 0.0
    %3039 = vmatpush1.msra.mxu0 %v2890
    %3040 = vmatprep.subr.mxu0 0.0
    %3041 = vmatpush1.msra.mxu0 %v2891
    %3042 = vmatprep.subr.mxu0 0.0
    %3043 = vmatpush1.msra.mxu0 %v2892
    %3044 = vmatprep.subr.mxu0 0.0
    %3045 = vmatpush1.msra.mxu0 %v2893
    %3046 = vmatprep.subr.mxu0 0.0
    %3047 = vmatpush1.msra.mxu0 %v2894
    %3048 = vmatprep.subr.mxu0 0.0
    %3049 = vmatpush1.msra.mxu0 %v2895
    %3050 = vmatprep.subr.mxu0 0.0
    %3051 = vmatpush1.msra.mxu0 %v2896
    %3052 = vmatprep.subr.mxu0 0.0
    %3053 = vmatpush1.msra.mxu0 %v2897
    %3054 = vmatprep.subr.mxu0 0.0
    %3055 = vmatpush1.msra.mxu0 %v2898
    %3056 = vmatprep.subr.mxu0 0.0
    %3057 = vmatpush1.msra.mxu0 %v2899
    %3058 = vmatprep.subr.mxu0 0.0
    %3059 = vmatpush1.msra.mxu0 %v2900
    %3060 = vmatprep.subr.mxu0 0.0
    %3061 = vmatpush1.msra.mxu0 %v2901
    %3062 = vmatprep.subr.mxu0 0.0
    %3063 = vmatpush1.msra.mxu0 %v2902
    %3064 = vmatprep.subr.mxu0 0.0
    %3065 = vmatpush1.msra.mxu0 %v2903
    %3066 = vmatprep.subr.mxu0 0.0
    %3067 = vmatpush1.msra.mxu0 %v2904
    %3068 = vmatprep.subr.mxu0 0.0
    %3069 = vmatpush1.msra.mxu0 %v2905
    %3070 = vmatprep.subr.mxu0 0.0
    %3071 = vmatpush1.msra.mxu0 %v2906
    %3072 = vmatprep.subr.mxu0 0.0
    %3073 = vmatpush1.msra.mxu0 %v2907
    %3074 = vmatprep.subr.mxu0 0.0
    %3075 = vmatpush1.msra.mxu0 %v2908
    %3076 = vmatprep.subr.mxu0 0.0
    %3077 = vmatpush1.msra.mxu0 %v2909
    %3078 = vmatprep.subr.mxu0 0.0
    %3079 = vmatpush1.msra.mxu0 %v2910
    %3080 = vmatprep.mubr.f32.mxu0 %v2790
    %3081 = vmatmul.mubr.f32.gmra.mrb[0].mxu0 %v2788
    %v3082 = vpop.f32.mrb[0].mxu0
    %v3083 = vadd.f32 %v2978, %v3082
    %v3084 = vpop.f32.mrb[0].mxu0
    %3085 = vmatprep.mubr.f32.mxu0 %v2798
    %3086 = vmatmul.mubr.f32.gmra.mrb[0].mxu0 %v2796
    %v3087 = vpop.f32.mrb[0].mxu0
    %v3088 = vadd.f32 %v2983, %v3087
    %v3089 = vpop.f32.mrb[0].mxu0
    %3090 = vmatprep.mubr.f32.mxu0 %v2806
    %3091 = vmatmul.mubr.f32.gmra.mrb[0].mxu0 %v2804
    %v3092 = vpop.f32.mrb[0].mxu0
    %v3093 = vadd.f32 %v2988, %v3092
    %v3094 = vpop.f32.mrb[0].mxu0
    %3095 = vmatprep.mubr.f32.mxu0 %v2814
    %3096 = vmatmul.mubr.f32.gmra.mrb[0].mxu0 %v2812
    %v3097 = vpop.f32.mrb[0].mxu0
    %v3098 = vadd.f32 %v2993, %v3097
    %v3099 = vpop.f32.mrb[0].mxu0
    %3100 = vmatprep.mubr.f32.mxu0 %v2822
    %3101 = vmatmul.mubr.f32.gmra.mrb[0].mxu0 %v2820
    %v3102 = vpop.f32.mrb[0].mxu0
    %v3103 = vadd.f32 %v2998, %v3102
    %v3104 = vpop.f32.mrb[0].mxu0
    %3105 = vmatprep.mubr.f32.mxu0 %v2830
    %3106 = vmatmul.mubr.f32.gmra.mrb[0].mxu0 %v2828
    %v3107 = vpop.f32.mrb[0].mxu0
    %v3108 = vadd.f32 %v3003, %v3107
    %v3109 = vpop.f32.mrb[0].mxu0
    %3110 = vmatprep.mubr.f32.mxu0 %v2838
    %3111 = vmatmul.mubr.f32.gmra.mrb[0].mxu0 %v2836
    %v3112 = vpop.f32.mrb[0].mxu0
    %v3113 = vadd.f32 %v3008, %v3112
    %v3114 = vpop.f32.mrb[0].mxu0
    %3115 = vmatprep.mubr.f32.mxu0 %v2846
    %3116 = vmatmul.mubr.f32.gmra.mrb[0].mxu0 %v2844
    %v3117 = vpop.f32.mrb[0].mxu0
    %v3118 = vadd.f32 %v3013, %v3117
    %v3119 = vpop.f32.mrb[0].mxu0
    %3120 = vdwg.mxu0
    %v3121 = vld [vmem:[#allocation11] sm:$0x1]
    %v3123 = vlaneseq
    %v3124 = vshrl.u32 %v3123, 7
    %v3125 = vsub.s32 0, %v3124
    %v3126 = vrot.slane %v3121, %v3125
    %3128 = vmatprep.subr.mxu0 0.0
    %3129 = vmatpush1.msra.mxu0 %v3083
    %3130 = vmatprep.subr.mxu0 0.0
    %3131 = vmatpush1.msra.mxu0 %v3088
    %3132 = vmatprep.subr.mxu0 0.0
    %3133 = vmatpush1.msra.mxu0 %v3093
    %3134 = vmatprep.subr.mxu0 0.0
    %3135 = vmatpush1.msra.mxu0 %v3098
    %3136 = vmatprep.subr.mxu0 0.0
    %3137 = vmatpush1.msra.mxu0 %v3103
    %3138 = vmatprep.subr.mxu0 0.0
    %3139 = vmatpush1.msra.mxu0 %v3108
    %3140 = vmatprep.subr.mxu0 0.0
    %3141 = vmatpush1.msra.mxu0 %v3113
    %3142 = vmatprep.subr.mxu0 0.0
    %3143 = vmatpush1.msra.mxu0 %v3118
    %3144 = vmatprep.subr.mxu0 0.0
    %3145 = vmatpush1.msra.mxu0 0.0
    %3146 = vmatprep.subr.mxu0 0.0
    %3147 = vmatpush1.msra.mxu0 0.0
    %3148 = vmatprep.subr.mxu0 0.0
    %3149 = vmatpush1.msra.mxu0 0.0
    %3150 = vmatprep.subr.mxu0 0.0
    %3151 = vmatpush1.msra.mxu0 0.0
    %3152 = vmatprep.subr.mxu0 0.0
    %3153 = vmatpush1.msra.mxu0 0.0
    %3154 = vmatprep.subr.mxu0 0.0
    %3155 = vmatpush1.msra.mxu0 0.0
    %3156 = vmatprep.subr.mxu0 0.0
    %3157 = vmatpush1.msra.mxu0 0.0
    %3158 = vmatprep.subr.mxu0 0.0
    %3159 = vmatpush1.msra.mxu0 0.0
    %3160 = vmatprep.subr.mxu0 0.0
    %3161 = vmatpush1.msra.mxu0 0.0
    %3162 = vmatprep.subr.mxu0 0.0
    %3163 = vmatpush1.msra.mxu0 0.0
    %3164 = vmatprep.subr.mxu0 0.0
    %3165 = vmatpush1.msra.mxu0 0.0
    %3166 = vmatprep.subr.mxu0 0.0
    %3167 = vmatpush1.msra.mxu0 0.0
    %3168 = vmatprep.subr.mxu0 0.0
    %3169 = vmatpush1.msra.mxu0 0.0
    %3170 = vmatprep.subr.mxu0 0.0
    %3171 = vmatpush1.msra.mxu0 0.0
    %3172 = vmatprep.subr.mxu0 0.0
    %3173 = vmatpush1.msra.mxu0 0.0
    %3174 = vmatprep.subr.mxu0 0.0
    %3175 = vmatpush1.msra.mxu0 0.0
    %3176 = vmatprep.subr.mxu0 0.0
    %3177 = vmatpush1.msra.mxu0 0.0
    %3178 = vmatprep.subr.mxu0 0.0
    %3179 = vmatpush1.msra.mxu0 0.0
    %3180 = vmatprep.subr.mxu0 0.0
    %3181 = vmatpush1.msra.mxu0 0.0
    %3182 = vmatprep.subr.mxu0 0.0
    %3183 = vmatpush1.msra.mxu0 0.0
    %3184 = vmatprep.subr.mxu0 0.0
    %3185 = vmatpush1.msra.mxu0 0.0
    %3186 = vmatprep.subr.mxu0 0.0
    %3187 = vmatpush1.msra.mxu0 0.0
    %3188 = vmatprep.subr.mxu0 0.0
    %3189 = vmatpush1.msra.mxu0 0.0
    %3190 = vmatprep.subr.mxu0 0.0
    %3191 = vmatpush1.msra.mxu0 0.0
    %3192 = vmatprep.mubr.f32.mxu0 0.0
    %3193 = vmatmul.mubr.f32.gmra.mrb[0].mxu0 %v2406
    %v3194 = vpop.f32.mrb[0].mxu0
    %v3195 = vadd.f32 %v3126, %v3194
    %v3196 = vpop.f32.mrb[0].mxu0
    %3197 = vmatprep.mubr.f32.mxu0 0.0
    %3198 = vmatmul.mubr.f32.gmra.mrb[0].mxu0 %v2409
    %v3199 = vpop.f32.mrb[0].mxu0
    %v3200 = vadd.f32 %v3126, %v3199
    %v3201 = vpop.f32.mrb[0].mxu0
    %3202 = vmatprep.mubr.f32.mxu0 0.0
    %3203 = vmatmul.mubr.f32.gmra.mrb[0].mxu0 %v2412
    %v3204 = vpop.f32.mrb[0].mxu0
    %v3205 = vadd.f32 %v3126, %v3204
    %v3206 = vpop.f32.mrb[0].mxu0
    %3207 = vmatprep.mubr.f32.mxu0 0.0
    %3208 = vmatmul.mubr.f32.gmra.mrb[0].mxu0 %v2415
    %v3209 = vpop.f32.mrb[0].mxu0
    %v3210 = vadd.f32 %v3126, %v3209
    %v3211 = vpop.f32.mrb[0].mxu0
    %3212 = vmatprep.mubr.f32.mxu0 0.0
    %3213 = vmatmul.mubr.f32.gmra.mrb[0].mxu0 %v2418
    %v3214 = vpop.f32.mrb[0].mxu0
    %v3215 = vadd.f32 %v3126, %v3214
    %v3216 = vpop.f32.mrb[0].mxu0
    %3217 = vmatprep.mubr.f32.mxu0 0.0
    %3218 = vmatmul.mubr.f32.gmra.mrb[0].mxu0 %v2421
    %v3219 = vpop.f32.mrb[0].mxu0
    %v3220 = vadd.f32 %v3126, %v3219
    %v3221 = vpop.f32.mrb[0].mxu0
    %3222 = vmatprep.mubr.f32.mxu0 0.0
    %3223 = vmatmul.mubr.f32.gmra.mrb[0].mxu0 %v2424
    %v3224 = vpop.f32.mrb[0].mxu0
    %v3225 = vadd.f32 %v3126, %v3224
    %v3226 = vpop.f32.mrb[0].mxu0
    %3227 = vmatprep.mubr.f32.mxu0 0.0
    %3228 = vmatmul.mubr.f32.gmra.mrb[0].mxu0 %v2427
    %v3229 = vpop.f32.mrb[0].mxu0
    %v3230 = vadd.f32 %v3126, %v3229
    %v3231 = vpop.f32.mrb[0].mxu0
    %3232 = vdwg.mxu0
    %v3233 = vxor.u32 %v3195, 2147483648
    %v3234 = vxor.u32 %v3200, 2147483648
    %v3235 = vxor.u32 %v3205, 2147483648
    %v3236 = vxor.u32 %v3210, 2147483648
    %v3237 = vxor.u32 %v3215, 2147483648
    %v3238 = vxor.u32 %v3220, 2147483648
    %v3239 = vxor.u32 %v3225, 2147483648
    %v3240 = vxor.u32 %v3230, 2147483648
    %v3241 = vmul.f32 %v3233, 1.442695
    %v3242 = vpow.pop %v3241
    %v3243 = vmul.f32 %v3234, 1.442695
    %v3244 = vpow.pop %v3243
    %v3245 = vmul.f32 %v3235, 1.442695
    %v3246 = vpow.pop %v3245
    %v3247 = vmul.f32 %v3236, 1.442695
    %v3248 = vpow.pop %v3247
    %v3249 = vmul.f32 %v3237, 1.442695
    %v3250 = vpow.pop %v3249
    %v3251 = vmul.f32 %v3238, 1.442695
    %v3252 = vpow.pop %v3251
    %v3253 = vmul.f32 %v3239, 1.442695
    %v3254 = vpow.pop %v3253
    %v3255 = vmul.f32 %v3240, 1.442695
    %v3256 = vpow.pop %v3255
    %v3257 = vadd.f32 %v3242, 1.0
    %v3258 = vadd.f32 %v3244, 1.0
    %v3259 = vadd.f32 %v3246, 1.0
    %v3260 = vadd.f32 %v3248, 1.0
    %v3261 = vadd.f32 %v3250, 1.0
    %v3262 = vadd.f32 %v3252, 1.0
    %v3263 = vadd.f32 %v3254, 1.0
    %v3264 = vadd.f32 %v3256, 1.0
    %v3265 = vrcp.pop %v3257
    %v3266 = vmul.f32 1.0, %v3265
    %v3267 = vrcp.pop %v3258
    %v3268 = vmul.f32 1.0, %v3267
    %v3269 = vrcp.pop %v3259
    %v3270 = vmul.f32 1.0, %v3269
    %v3271 = vrcp.pop %v3260
    %v3272 = vmul.f32 1.0, %v3271
    %v3273 = vrcp.pop %v3261
    %v3274 = vmul.f32 1.0, %v3273
    %v3275 = vrcp.pop %v3262
    %v3276 = vmul.f32 1.0, %v3275
    %v3277 = vrcp.pop %v3263
    %v3278 = vmul.f32 1.0, %v3277
    %v3279 = vrcp.pop %v3264
    %v3280 = vmul.f32 1.0, %v3279
    %v3281 = vld [vmem:[#allocation13] sm:$0xff]
    %v3282 = vld [vmem:[#allocation13 + $0x8] sm:$0xff]
    %v3283 = vld [vmem:[#allocation13 + $0x10] sm:$0xff]
    %v3284 = vld [vmem:[#allocation13 + $0x18] sm:$0xff]
    %v3285 = vld [vmem:[#allocation13 + $0x20] sm:$0xff]
    %v3286 = vld [vmem:[#allocation13 + $0x28] sm:$0xff]
    %v3287 = vld [vmem:[#allocation13 + $0x30] sm:$0xff]
    %v3288 = vld [vmem:[#allocation13 + $0x38] sm:$0xff]
    %v3289 = vld [vmem:[#allocation13 + $0x40] sm:$0xff]
    %v3290 = vld [vmem:[#allocation13 + $0x48] sm:$0xff]
    %v3291 = vld [vmem:[#allocation13 + $0x50] sm:$0xff]
    %v3292 = vld [vmem:[#allocation13 + $0x58] sm:$0xff]
    %v3293 = vld [vmem:[#allocation13 + $0x60] sm:$0xff]
    %v3294 = vld [vmem:[#allocation13 + $0x68] sm:$0xff]
    %v3295 = vld [vmem:[#allocation13 + $0x70] sm:$0xff]
    %v3296 = vld [vmem:[#allocation13 + $0x78] sm:$0xff]
    %3297 = vmatprep.subr.mxu0 0.0
    %3298 = vmatpush1.msra.mxu0 %v3281
    %3299 = vmatprep.subr.mxu0 0.0
    %3300 = vmatpush1.msra.mxu0 %v3282
    %3301 = vmatprep.subr.mxu0 0.0
    %3302 = vmatpush1.msra.mxu0 %v3283
    %3303 = vmatprep.subr.mxu0 0.0
    %3304 = vmatpush1.msra.mxu0 %v3284
    %3305 = vmatprep.subr.mxu0 0.0
    %3306 = vmatpush1.msra.mxu0 %v3285
    %3307 = vmatprep.subr.mxu0 0.0
    %3308 = vmatpush1.msra.mxu0 %v3286
    %3309 = vmatprep.subr.mxu0 0.0
    %3310 = vmatpush1.msra.mxu0 %v3287
    %3311 = vmatprep.subr.mxu0 0.0
    %3312 = vmatpush1.msra.mxu0 %v3288
    %3313 = vmatprep.subr.mxu0 0.0
    %3314 = vmatpush1.msra.mxu0 %v3289
    %3315 = vmatprep.subr.mxu0 0.0
    %3316 = vmatpush1.msra.mxu0 %v3290
    %3317 = vmatprep.subr.mxu0 0.0
    %3318 = vmatpush1.msra.mxu0 %v3291
    %3319 = vmatprep.subr.mxu0 0.0
    %3320 = vmatpush1.msra.mxu0 %v3292
    %3321 = vmatprep.subr.mxu0 0.0
    %3322 = vmatpush1.msra.mxu0 %v3293
    %3323 = vmatprep.subr.mxu0 0.0
    %3324 = vmatpush1.msra.mxu0 %v3294
    %3325 = vmatprep.subr.mxu0 0.0
    %3326 = vmatpush1.msra.mxu0 %v3295
    %3327 = vmatprep.subr.mxu0 0.0
    %3328 = vmatpush1.msra.mxu0 %v3296
    %3329 = vmatprep.subr.mxu0 0.0
    %3330 = vmatpush1.msra.mxu0 0.0
    %3331 = vmatprep.subr.mxu0 0.0
    %3332 = vmatpush1.msra.mxu0 0.0
    %3333 = vmatprep.subr.mxu0 0.0
    %3334 = vmatpush1.msra.mxu0 0.0
    %3335 = vmatprep.subr.mxu0 0.0
    %3336 = vmatpush1.msra.mxu0 0.0
    %3337 = vmatprep.subr.mxu0 0.0
    %3338 = vmatpush1.msra.mxu0 0.0
    %3339 = vmatprep.subr.mxu0 0.0
    %3340 = vmatpush1.msra.mxu0 0.0
    %3341 = vmatprep.subr.mxu0 0.0
    %3342 = vmatpush1.msra.mxu0 0.0
    %3343 = vmatprep.subr.mxu0 0.0
    %3344 = vmatpush1.msra.mxu0 0.0
    %3345 = vmatprep.subr.mxu0 0.0
    %3346 = vmatpush1.msra.mxu0 0.0
    %3347 = vmatprep.subr.mxu0 0.0
    %3348 = vmatpush1.msra.mxu0 0.0
    %3349 = vmatprep.subr.mxu0 0.0
    %3350 = vmatpush1.msra.mxu0 0.0
    %3351 = vmatprep.subr.mxu0 0.0
    %3352 = vmatpush1.msra.mxu0 0.0
    %3353 = vmatprep.subr.mxu0 0.0
    %3354 = vmatpush1.msra.mxu0 0.0
    %3355 = vmatprep.subr.mxu0 0.0
    %3356 = vmatpush1.msra.mxu0 0.0
    %3357 = vmatprep.subr.mxu0 0.0
    %3358 = vmatpush1.msra.mxu0 0.0
    %3359 = vmatprep.subr.mxu0 0.0
    %3360 = vmatpush1.msra.mxu0 0.0
    %3361 = vmatprep.mubr.f32.mxu0 0.0
    %3362 = vmatmul.mubr.f32.gmra.mrb[0].mxu0 %v3266
    %v3363 = vpop.f32.mrb[0].mxu0
    %v3364 = vadd.f32 0.0, %v3363
    %v3365 = vpop.f32.mrb[0].mxu0
    %3366 = vmatprep.mubr.f32.mxu0 0.0
    %3367 = vmatmul.mubr.f32.gmra.mrb[0].mxu0 %v3268
    %v3368 = vpop.f32.mrb[0].mxu0
    %v3369 = vadd.f32 0.0, %v3368
    %v3370 = vpop.f32.mrb[0].mxu0
    %3371 = vmatprep.mubr.f32.mxu0 0.0
    %3372 = vmatmul.mubr.f32.gmra.mrb[0].mxu0 %v3270
    %v3373 = vpop.f32.mrb[0].mxu0
    %v3374 = vadd.f32 0.0, %v3373
    %v3375 = vpop.f32.mrb[0].mxu0
    %3376 = vmatprep.mubr.f32.mxu0 0.0
    %3377 = vmatmul.mubr.f32.gmra.mrb[0].mxu0 %v3272
    %v3378 = vpop.f32.mrb[0].mxu0
    %v3379 = vadd.f32 0.0, %v3378
    %v3380 = vpop.f32.mrb[0].mxu0
    %3381 = vmatprep.mubr.f32.mxu0 0.0
    %3382 = vmatmul.mubr.f32.gmra.mrb[0].mxu0 %v3274
    %v3383 = vpop.f32.mrb[0].mxu0
    %v3384 = vadd.f32 0.0, %v3383
    %v3385 = vpop.f32.mrb[0].mxu0
    %3386 = vmatprep.mubr.f32.mxu0 0.0
    %3387 = vmatmul.mubr.f32.gmra.mrb[0].mxu0 %v3276
    %v3388 = vpop.f32.mrb[0].mxu0
    %v3389 = vadd.f32 0.0, %v3388
    %v3390 = vpop.f32.mrb[0].mxu0
    %3391 = vmatprep.mubr.f32.mxu0 0.0
    %3392 = vmatmul.mubr.f32.gmra.mrb[0].mxu0 %v3278
    %v3393 = vpop.f32.mrb[0].mxu0
    %v3394 = vadd.f32 0.0, %v3393
    %v3395 = vpop.f32.mrb[0].mxu0
    %3396 = vmatprep.mubr.f32.mxu0 0.0
    %3397 = vmatmul.mubr.f32.gmra.mrb[0].mxu0 %v3280
    %v3398 = vpop.f32.mrb[0].mxu0
    %v3399 = vadd.f32 0.0, %v3398
    %v3400 = vpop.f32.mrb[0].mxu0
    %3401 = vdwg.mxu0
    %v3402 = vld [vmem:[#allocation14] sm:$0x1]
    %v3404 = vlaneseq
    %v3405 = vshrl.u32 %v3404, 7
    %v3406 = vsub.s32 0, %v3405
    %v3407 = vrot.slane %v3402, %v3406
    %3409 = vmatprep.subr.mxu0 0.0
    %3410 = vmatpush1.msra.mxu0 %v3364
    %3411 = vmatprep.subr.mxu0 0.0
    %3412 = vmatpush1.msra.mxu0 %v3369
    %3413 = vmatprep.subr.mxu0 0.0
    %3414 = vmatpush1.msra.mxu0 %v3374
    %3415 = vmatprep.subr.mxu0 0.0
    %3416 = vmatpush1.msra.mxu0 %v3379
    %3417 = vmatprep.subr.mxu0 0.0
    %3418 = vmatpush1.msra.mxu0 %v3384
    %3419 = vmatprep.subr.mxu0 0.0
    %3420 = vmatpush1.msra.mxu0 %v3389
    %3421 = vmatprep.subr.mxu0 0.0
    %3422 = vmatpush1.msra.mxu0 %v3394
    %3423 = vmatprep.subr.mxu0 0.0
    %3424 = vmatpush1.msra.mxu0 %v3399
    %3425 = vmatprep.subr.mxu0 0.0
    %3426 = vmatpush1.msra.mxu0 0.0
    %3427 = vmatprep.subr.mxu0 0.0
    %3428 = vmatpush1.msra.mxu0 0.0
    %3429 = vmatprep.subr.mxu0 0.0
    %3430 = vmatpush1.msra.mxu0 0.0
    %3431 = vmatprep.subr.mxu0 0.0
    %3432 = vmatpush1.msra.mxu0 0.0
    %3433 = vmatprep.subr.mxu0 0.0
    %3434 = vmatpush1.msra.mxu0 0.0
    %3435 = vmatprep.subr.mxu0 0.0
    %3436 = vmatpush1.msra.mxu0 0.0
    %3437 = vmatprep.subr.mxu0 0.0
    %3438 = vmatpush1.msra.mxu0 0.0
    %3439 = vmatprep.subr.mxu0 0.0
    %3440 = vmatpush1.msra.mxu0 0.0
    %3441 = vmatprep.subr.mxu0 0.0
    %3442 = vmatpush1.msra.mxu0 0.0
    %3443 = vmatprep.subr.mxu0 0.0
    %3444 = vmatpush1.msra.mxu0 0.0
    %3445 = vmatprep.subr.mxu0 0.0
    %3446 = vmatpush1.msra.mxu0 0.0
    %3447 = vmatprep.subr.mxu0 0.0
    %3448 = vmatpush1.msra.mxu0 0.0
    %3449 = vmatprep.subr.mxu0 0.0
    %3450 = vmatpush1.msra.mxu0 0.0
    %3451 = vmatprep.subr.mxu0 0.0
    %3452 = vmatpush1.msra.mxu0 0.0
    %3453 = vmatprep.subr.mxu0 0.0
    %3454 = vmatpush1.msra.mxu0 0.0
    %3455 = vmatprep.subr.mxu0 0.0
    %3456 = vmatpush1.msra.mxu0 0.0
    %3457 = vmatprep.subr.mxu0 0.0
    %3458 = vmatpush1.msra.mxu0 0.0
    %3459 = vmatprep.subr.mxu0 0.0
    %3460 = vmatpush1.msra.mxu0 0.0
    %3461 = vmatprep.subr.mxu0 0.0
    %3462 = vmatpush1.msra.mxu0 0.0
    %3463 = vmatprep.subr.mxu0 0.0
    %3464 = vmatpush1.msra.mxu0 0.0
    %3465 = vmatprep.subr.mxu0 0.0
    %3466 = vmatpush1.msra.mxu0 0.0
    %3467 = vmatprep.subr.mxu0 0.0
    %3468 = vmatpush1.msra.mxu0 0.0
    %3469 = vmatprep.subr.mxu0 0.0
    %3470 = vmatpush1.msra.mxu0 0.0
    %3471 = vmatprep.subr.mxu0 0.0
    %3472 = vmatpush1.msra.mxu0 0.0
    %3473 = vmatprep.mubr.f32.mxu0 0.0
    %3474 = vmatmul.mubr.f32.gmra.mrb[0].mxu0 %v2406
    %v3475 = vpop.f32.mrb[0].mxu0
    %v3476 = vadd.f32 %v3407, %v3475
    %v3477 = vpop.f32.mrb[0].mxu0
    %3478 = vmatprep.mubr.f32.mxu0 0.0
    %3479 = vmatmul.mubr.f32.gmra.mrb[0].mxu0 %v2409
    %v3480 = vpop.f32.mrb[0].mxu0
    %v3481 = vadd.f32 %v3407, %v3480
    %v3482 = vpop.f32.mrb[0].mxu0
    %3483 = vmatprep.mubr.f32.mxu0 0.0
    %3484 = vmatmul.mubr.f32.gmra.mrb[0].mxu0 %v2412
    %v3485 = vpop.f32.mrb[0].mxu0
    %v3486 = vadd.f32 %v3407, %v3485
    %v3487 = vpop.f32.mrb[0].mxu0
    %3488 = vmatprep.mubr.f32.mxu0 0.0
    %3489 = vmatmul.mubr.f32.gmra.mrb[0].mxu0 %v2415
    %v3490 = vpop.f32.mrb[0].mxu0
    %v3491 = vadd.f32 %v3407, %v3490
    %v3492 = vpop.f32.mrb[0].mxu0
    %3493 = vmatprep.mubr.f32.mxu0 0.0
    %3494 = vmatmul.mubr.f32.gmra.mrb[0].mxu0 %v2418
    %v3495 = vpop.f32.mrb[0].mxu0
    %v3496 = vadd.f32 %v3407, %v3495
    %v3497 = vpop.f32.mrb[0].mxu0
    %3498 = vmatprep.mubr.f32.mxu0 0.0
    %3499 = vmatmul.mubr.f32.gmra.mrb[0].mxu0 %v2421
    %v3500 = vpop.f32.mrb[0].mxu0
    %v3501 = vadd.f32 %v3407, %v3500
    %v3502 = vpop.f32.mrb[0].mxu0
    %3503 = vmatprep.mubr.f32.mxu0 0.0
    %3504 = vmatmul.mubr.f32.gmra.mrb[0].mxu0 %v2424
    %v3505 = vpop.f32.mrb[0].mxu0
    %v3506 = vadd.f32 %v3407, %v3505
    %v3507 = vpop.f32.mrb[0].mxu0
    %3508 = vmatprep.mubr.f32.mxu0 0.0
    %3509 = vmatmul.mubr.f32.gmra.mrb[0].mxu0 %v2427
    %v3510 = vpop.f32.mrb[0].mxu0
    %v3511 = vadd.f32 %v3407, %v3510
    %v3512 = vpop.f32.mrb[0].mxu0
    %3513 = vdwg.mxu0
    %v3514 = vxor.u32 %v3476, 2147483648
    %v3515 = vxor.u32 %v3481, 2147483648
    %v3516 = vxor.u32 %v3486, 2147483648
    %v3517 = vxor.u32 %v3491, 2147483648
    %v3518 = vxor.u32 %v3496, 2147483648
    %v3519 = vxor.u32 %v3501, 2147483648
    %v3520 = vxor.u32 %v3506, 2147483648
    %v3521 = vxor.u32 %v3511, 2147483648
    %v3522 = vmul.f32 %v3514, 1.442695
    %v3523 = vpow.pop %v3522
    %v3524 = vmul.f32 %v3515, 1.442695
    %v3525 = vpow.pop %v3524
    %v3526 = vmul.f32 %v3516, 1.442695
    %v3527 = vpow.pop %v3526
    %v3528 = vmul.f32 %v3517, 1.442695
    %v3529 = vpow.pop %v3528
    %v3530 = vmul.f32 %v3518, 1.442695
    %v3531 = vpow.pop %v3530
    %v3532 = vmul.f32 %v3519, 1.442695
    %v3533 = vpow.pop %v3532
    %v3534 = vmul.f32 %v3520, 1.442695
    %v3535 = vpow.pop %v3534
    %v3536 = vmul.f32 %v3521, 1.442695
    %v3537 = vpow.pop %v3536
    %v3538 = vadd.f32 %v3523, 1.0
    %v3539 = vadd.f32 %v3525, 1.0
    %v3540 = vadd.f32 %v3527, 1.0
    %v3541 = vadd.f32 %v3529, 1.0
    %v3542 = vadd.f32 %v3531, 1.0
    %v3543 = vadd.f32 %v3533, 1.0
    %v3544 = vadd.f32 %v3535, 1.0
    %v3545 = vadd.f32 %v3537, 1.0
    %v3546 = vrcp.pop %v3538
    %v3547 = vmul.f32 1.0, %v3546
    %v3548 = vrcp.pop %v3539
    %v3549 = vmul.f32 1.0, %v3548
    %v3550 = vrcp.pop %v3540
    %v3551 = vmul.f32 1.0, %v3550
    %v3552 = vrcp.pop %v3541
    %v3553 = vmul.f32 1.0, %v3552
    %v3554 = vrcp.pop %v3542
    %v3555 = vmul.f32 1.0, %v3554
    %v3556 = vrcp.pop %v3543
    %v3557 = vmul.f32 1.0, %v3556
    %v3558 = vrcp.pop %v3544
    %v3559 = vmul.f32 1.0, %v3558
    %v3560 = vrcp.pop %v3545
    %v3561 = vmul.f32 1.0, %v3560
    %v3562 = vld [vmem:[#allocation16] sm:$0xff]
    %v3563 = vld [vmem:[#allocation16 + $0x8] sm:$0xff]
    %vm3564 = vcmask 130048
    %v3566 = vsel %vm3564, %v3547, 0
    %v3569 = vsel %vm3564, %v3549, 0
    %v3572 = vsel %vm3564, %v3551, 0
    %v3575 = vsel %vm3564, %v3553, 0
    %v3578 = vsel %vm3564, %v3555, 0
    %v3581 = vsel %vm3564, %v3557, 0
    %v3584 = vsel %vm3564, %v3559, 0
    %v3587 = vsel %vm3564, %v3561, 0
    %3589 = vmatprep.subr.mxu0 0.0
    %3590 = vmatpush1.msra.mxu0 %v3562
    %3591 = vmatprep.subr.mxu0 0.0
    %3592 = vmatpush1.msra.mxu0 %v3563
    %3593 = vmatprep.subr.mxu0 0.0
    %3594 = vmatpush1.msra.mxu0 0.0
    %3595 = vmatprep.subr.mxu0 0.0
    %3596 = vmatpush1.msra.mxu0 0.0
    %3597 = vmatprep.subr.mxu0 0.0
    %3598 = vmatpush1.msra.mxu0 0.0
    %3599 = vmatprep.subr.mxu0 0.0
    %3600 = vmatpush1.msra.mxu0 0.0
    %3601 = vmatprep.subr.mxu0 0.0
    %3602 = vmatpush1.msra.mxu0 0.0
    %3603 = vmatprep.subr.mxu0 0.0
    %3604 = vmatpush1.msra.mxu0 0.0
    %3605 = vmatprep.subr.mxu0 0.0
    %3606 = vmatpush1.msra.mxu0 0.0
    %3607 = vmatprep.subr.mxu0 0.0
    %3608 = vmatpush1.msra.mxu0 0.0
    %3609 = vmatprep.subr.mxu0 0.0
    %3610 = vmatpush1.msra.mxu0 0.0
    %3611 = vmatprep.subr.mxu0 0.0
    %3612 = vmatpush1.msra.mxu0 0.0
    %3613 = vmatprep.subr.mxu0 0.0
    %3614 = vmatpush1.msra.mxu0 0.0
    %3615 = vmatprep.subr.mxu0 0.0
    %3616 = vmatpush1.msra.mxu0 0.0
    %3617 = vmatprep.subr.mxu0 0.0
    %3618 = vmatpush1.msra.mxu0 0.0
    %3619 = vmatprep.subr.mxu0 0.0
    %3620 = vmatpush1.msra.mxu0 0.0
    %3621 = vmatprep.subr.mxu0 0.0
    %3622 = vmatpush1.msra.mxu0 0.0
    %3623 = vmatprep.subr.mxu0 0.0
    %3624 = vmatpush1.msra.mxu0 0.0
    %3625 = vmatprep.subr.mxu0 0.0
    %3626 = vmatpush1.msra.mxu0 0.0
    %3627 = vmatprep.subr.mxu0 0.0
    %3628 = vmatpush1.msra.mxu0 0.0
    %3629 = vmatprep.subr.mxu0 0.0
    %3630 = vmatpush1.msra.mxu0 0.0
    %3631 = vmatprep.subr.mxu0 0.0
    %3632 = vmatpush1.msra.mxu0 0.0
    %3633 = vmatprep.subr.mxu0 0.0
    %3634 = vmatpush1.msra.mxu0 0.0
    %3635 = vmatprep.subr.mxu0 0.0
    %3636 = vmatpush1.msra.mxu0 0.0
    %3637 = vmatprep.subr.mxu0 0.0
    %3638 = vmatpush1.msra.mxu0 0.0
    %3639 = vmatprep.subr.mxu0 0.0
    %3640 = vmatpush1.msra.mxu0 0.0
    %3641 = vmatprep.subr.mxu0 0.0
    %3642 = vmatpush1.msra.mxu0 0.0
    %3643 = vmatprep.subr.mxu0 0.0
    %3644 = vmatpush1.msra.mxu0 0.0
    %3645 = vmatprep.subr.mxu0 0.0
    %3646 = vmatpush1.msra.mxu0 0.0
    %3647 = vmatprep.subr.mxu0 0.0
    %3648 = vmatpush1.msra.mxu0 0.0
    %3649 = vmatprep.subr.mxu0 0.0
    %3650 = vmatpush1.msra.mxu0 0.0
    %3651 = vmatprep.subr.mxu0 0.0
    %3652 = vmatpush1.msra.mxu0 0.0
    %3653 = vmatprep.mubr.f32.mxu0 0.0
    %3654 = vmatmul.mubr.f32.gmra.mrb[0].mxu0 %v3566
    %v3655 = vpop.f32.mrb[0].mxu0
    %v3656 = vadd.f32 0.0, %v3655
    %v3657 = vpop.f32.mrb[0].mxu0
    %3658 = vmatprep.mubr.f32.mxu0 0.0
    %3659 = vmatmul.mubr.f32.gmra.mrb[0].mxu0 %v3569
    %v3660 = vpop.f32.mrb[0].mxu0
    %v3661 = vadd.f32 0.0, %v3660
    %v3662 = vpop.f32.mrb[0].mxu0
    %3663 = vmatprep.mubr.f32.mxu0 0.0
    %3664 = vmatmul.mubr.f32.gmra.mrb[0].mxu0 %v3572
    %v3665 = vpop.f32.mrb[0].mxu0
    %v3666 = vadd.f32 0.0, %v3665
    %v3667 = vpop.f32.mrb[0].mxu0
    %3668 = vmatprep.mubr.f32.mxu0 0.0
    %3669 = vmatmul.mubr.f32.gmra.mrb[0].mxu0 %v3575
    %v3670 = vpop.f32.mrb[0].mxu0
    %v3671 = vadd.f32 0.0, %v3670
    %v3672 = vpop.f32.mrb[0].mxu0
    %3673 = vmatprep.mubr.f32.mxu0 0.0
    %3674 = vmatmul.mubr.f32.gmra.mrb[0].mxu0 %v3578
    %v3675 = vpop.f32.mrb[0].mxu0
    %v3676 = vadd.f32 0.0, %v3675
    %v3677 = vpop.f32.mrb[0].mxu0
    %3678 = vmatprep.mubr.f32.mxu0 0.0
    %3679 = vmatmul.mubr.f32.gmra.mrb[0].mxu0 %v3581
    %v3680 = vpop.f32.mrb[0].mxu0
    %v3681 = vadd.f32 0.0, %v3680
    %v3682 = vpop.f32.mrb[0].mxu0
    %3683 = vmatprep.mubr.f32.mxu0 0.0
    %3684 = vmatmul.mubr.f32.gmra.mrb[0].mxu0 %v3584
    %v3685 = vpop.f32.mrb[0].mxu0
    %v3686 = vadd.f32 0.0, %v3685
    %v3687 = vpop.f32.mrb[0].mxu0
    %3688 = vmatprep.mubr.f32.mxu0 0.0
    %3689 = vmatmul.mubr.f32.gmra.mrb[0].mxu0 %v3587
    %v3690 = vpop.f32.mrb[0].mxu0
    %v3691 = vadd.f32 0.0, %v3690
    %v3692 = vpop.f32.mrb[0].mxu0
    %3693 = vdwg.mxu0
    %v3694 = vld [vmem:[#allocation17] sm:$0x1]
    %v3696 = vlaneseq
    %v3697 = vshrl.u32 %v3696, 7
    %v3698 = vsub.s32 0, %v3697
    %v3699 = vrot.slane %v3694, %v3698
    %3701 = vmatprep.subr.mxu0 0.0
    %3702 = vmatpush1.msra.mxu0 %v3656
    %3703 = vmatprep.subr.mxu0 0.0
    %3704 = vmatpush1.msra.mxu0 %v3661
    %3705 = vmatprep.subr.mxu0 0.0
    %3706 = vmatpush1.msra.mxu0 %v3666
    %3707 = vmatprep.subr.mxu0 0.0
    %3708 = vmatpush1.msra.mxu0 %v3671
    %3709 = vmatprep.subr.mxu0 0.0
    %3710 = vmatpush1.msra.mxu0 %v3676
    %3711 = vmatprep.subr.mxu0 0.0
    %3712 = vmatpush1.msra.mxu0 %v3681
    %3713 = vmatprep.subr.mxu0 0.0
    %3714 = vmatpush1.msra.mxu0 %v3686
    %3715 = vmatprep.subr.mxu0 0.0
    %3716 = vmatpush1.msra.mxu0 %v3691
    %3717 = vmatprep.subr.mxu0 0.0
    %3718 = vmatpush1.msra.mxu0 0.0
    %3719 = vmatprep.subr.mxu0 0.0
    %3720 = vmatpush1.msra.mxu0 0.0
    %3721 = vmatprep.subr.mxu0 0.0
    %3722 = vmatpush1.msra.mxu0 0.0
    %3723 = vmatprep.subr.mxu0 0.0
    %3724 = vmatpush1.msra.mxu0 0.0
    %3725 = vmatprep.subr.mxu0 0.0
    %3726 = vmatpush1.msra.mxu0 0.0
    %3727 = vmatprep.subr.mxu0 0.0
    %3728 = vmatpush1.msra.mxu0 0.0
    %3729 = vmatprep.subr.mxu0 0.0
    %3730 = vmatpush1.msra.mxu0 0.0
    %3731 = vmatprep.subr.mxu0 0.0
    %3732 = vmatpush1.msra.mxu0 0.0
    %3733 = vmatprep.subr.mxu0 0.0
    %3734 = vmatpush1.msra.mxu0 0.0
    %3735 = vmatprep.subr.mxu0 0.0
    %3736 = vmatpush1.msra.mxu0 0.0
    %3737 = vmatprep.subr.mxu0 0.0
    %3738 = vmatpush1.msra.mxu0 0.0
    %3739 = vmatprep.subr.mxu0 0.0
    %3740 = vmatpush1.msra.mxu0 0.0
    %3741 = vmatprep.subr.mxu0 0.0
    %3742 = vmatpush1.msra.mxu0 0.0
    %3743 = vmatprep.subr.mxu0 0.0
    %3744 = vmatpush1.msra.mxu0 0.0
    %3745 = vmatprep.subr.mxu0 0.0
    %3746 = vmatpush1.msra.mxu0 0.0
    %3747 = vmatprep.subr.mxu0 0.0
    %3748 = vmatpush1.msra.mxu0 0.0
    %3749 = vmatprep.subr.mxu0 0.0
    %3750 = vmatpush1.msra.mxu0 0.0
    %3751 = vmatprep.subr.mxu0 0.0
    %3752 = vmatpush1.msra.mxu0 0.0
    %3753 = vmatprep.subr.mxu0 0.0
    %3754 = vmatpush1.msra.mxu0 0.0
    %3755 = vmatprep.subr.mxu0 0.0
    %3756 = vmatpush1.msra.mxu0 0.0
    %3757 = vmatprep.subr.mxu0 0.0
    %3758 = vmatpush1.msra.mxu0 0.0
    %3759 = vmatprep.subr.mxu0 0.0
    %3760 = vmatpush1.msra.mxu0 0.0
    %3761 = vmatprep.subr.mxu0 0.0
    %3762 = vmatpush1.msra.mxu0 0.0
    %3763 = vmatprep.subr.mxu0 0.0
    %3764 = vmatpush1.msra.mxu0 0.0
    %3765 = vmatprep.mubr.f32.mxu0 0.0
    %3766 = vmatmul.mubr.f32.gmra.mrb[0].mxu0 %v2406
    %v3767 = vpop.f32.mrb[0].mxu0
    %v3768 = vadd.f32 %v3699, %v3767
    %v3769 = vpop.f32.mrb[0].mxu0
    %3770 = vmatprep.mubr.f32.mxu0 0.0
    %3771 = vmatmul.mubr.f32.gmra.mrb[0].mxu0 %v2409
    %v3772 = vpop.f32.mrb[0].mxu0
    %v3773 = vadd.f32 %v3699, %v3772
    %v3774 = vpop.f32.mrb[0].mxu0
    %3775 = vmatprep.mubr.f32.mxu0 0.0
    %3776 = vmatmul.mubr.f32.gmra.mrb[0].mxu0 %v2412
    %v3777 = vpop.f32.mrb[0].mxu0
    %v3778 = vadd.f32 %v3699, %v3777
    %v3779 = vpop.f32.mrb[0].mxu0
    %3780 = vmatprep.mubr.f32.mxu0 0.0
    %3781 = vmatmul.mubr.f32.gmra.mrb[0].mxu0 %v2415
    %v3782 = vpop.f32.mrb[0].mxu0
    %v3783 = vadd.f32 %v3699, %v3782
    %v3784 = vpop.f32.mrb[0].mxu0
    %3785 = vmatprep.mubr.f32.mxu0 0.0
    %3786 = vmatmul.mubr.f32.gmra.mrb[0].mxu0 %v2418
    %v3787 = vpop.f32.mrb[0].mxu0
    %v3788 = vadd.f32 %v3699, %v3787
    %v3789 = vpop.f32.mrb[0].mxu0
    %3790 = vmatprep.mubr.f32.mxu0 0.0
    %3791 = vmatmul.mubr.f32.gmra.mrb[0].mxu0 %v2421
    %v3792 = vpop.f32.mrb[0].mxu0
    %v3793 = vadd.f32 %v3699, %v3792
    %v3794 = vpop.f32.mrb[0].mxu0
    %3795 = vmatprep.mubr.f32.mxu0 0.0
    %3796 = vmatmul.mubr.f32.gmra.mrb[0].mxu0 %v2424
    %v3797 = vpop.f32.mrb[0].mxu0
    %v3798 = vadd.f32 %v3699, %v3797
    %v3799 = vpop.f32.mrb[0].mxu0
    %3800 = vmatprep.mubr.f32.mxu0 0.0
    %3801 = vmatmul.mubr.f32.gmra.mrb[0].mxu0 %v2427
    %v3802 = vpop.f32.mrb[0].mxu0
    %v3803 = vadd.f32 %v3699, %v3802
    %v3804 = vpop.f32.mrb[0].mxu0
    %3805 = vdwg.mxu0
    %vm3806 = vcmask 56320
    %3807 = vst.msk [vmem:[#allocation19] sm:$0xff] %vm3806, %v3768
    %3808 = vst.msk [vmem:[#allocation19 + $0x8] sm:$0xff] %vm3806, %v3773
    %3809 = vst.msk [vmem:[#allocation19 + $0x10] sm:$0xff] %vm3806, %v3778
    %3810 = vst.msk [vmem:[#allocation19 + $0x18] sm:$0xff] %vm3806, %v3783
    %3811 = vst.msk [vmem:[#allocation19 + $0x20] sm:$0xff] %vm3806, %v3788
    %3812 = vst.msk [vmem:[#allocation19 + $0x28] sm:$0xff] %vm3806, %v3793
    %3813 = vst.msk [vmem:[#allocation19 + $0x30] sm:$0xff] %vm3806, %v3798
    %3814 = vst.msk [vmem:[#allocation19 + $0x38] sm:$0xff] %vm3806, %v3803
    // Predicated region
    $region82: #{tpu_custom_call.1} parent=1 // pred_check
      _
    $region83: #{tpu_custom_call.1} parent=1 // pred_check_branch
      %3816 = sbr.rel (0) target = $region85
    $region84: #{tpu_custom_call.1} parent=1 // pred_region
      %s3818 = ssub.s32 1024, 1024
      %3819 = vsyncadd [#allocation4], %s3818
      %s3820 = sshll.u32 [#allocation19], 4
      %s3821 = int_to_ptr.vmem [resolvable:$true] %s3820
      %3826 = dma.vmem_to_hbm [thread:$0]  %s3821, 1024, %s10, [#allocation4], 128, 128, 8
    $region85: #{tpu_custom_call.1} parent=1 // pred_fallthru
      _
    // Predicated region
    $region86: #{tpu_custom_call.1} parent=1 // pred_check
      _
    $region87: #{tpu_custom_call.1} parent=1 // pred_check_branch
      %3828 = sbr.rel (0) target = $region89
    $region88: #{tpu_custom_call.1} parent=1 // pred_region
      %3829 = dma.done [#allocation4], 1024
    $region89: #{tpu_custom_call.1} parent=1 // pred_fallthru
      _
    %3830 = vsyncpa [#allocation3], 1
    %3831 = vsyncpa [#allocation6], 1
    %3832 = vsyncpa [#allocation9], 1
    %3833 = vsyncpa [#allocation12], 1
    %3834 = vsyncpa [#allocation15], 1
    %3835 = vsyncpa [#allocation18], 1
    %3836 = vsyncpa [#allocation4], 1

</llo_original>
